<compile_context>
chip_gen: v6e
topology: v6e:2x2x1
jax: 0.10.0
libtpu: 0.0.40
codegen_flags: <defaults>
</compile_context>

<pallas_src>
import functools
import math

import jax
import jax.numpy as jnp
import numpy as np
from jax.experimental import pallas as pl
from jax.experimental.pallas import tpu as pltpu


# ------------------------------ fused kernel --------------------------------

def _decoder_kernel(
    x_ref, mem_ref, tgt_bias_ref, src_bias_ref,
    w_sqkv_ref, b_sqkv_ref, w_so_ref, b_so_ref,
    w_cq_ref, b_cq_ref, w_ckv_ref, b_ckv_ref, w_co_ref, b_co_ref,
    w_ff1_ref, b_ff1_ref, w_ff2_ref, b_ff2_ref,
    ln_a_ref, ln_b_ref, final_a_ref, final_b_ref,
    o_ref,
    x_scratch, attn_scratch, mem_scratch,
    *, num_heads, eps, compute_dtype):
  layer = pl.program_id(1)
  n_layers = pl.num_programs(1)
  cd = compute_dtype

  Bb, T, D = x_ref.shape
  S = mem_ref.shape[1]
  t_pad = x_scratch.shape[0] // Bb          # per-sample row stride in the flat scratches
  s_pad = mem_scratch.shape[0] // Bb
  dk = D // num_heads
  inv_sqrt_dk = 1.0 / math.sqrt(dk)

  # ---- load activations / encoder memory once per batch block (layer 0) ----
  @pl.when(layer == 0)
  def _():
    if t_pad != T:                                    # static (trace-time) conditions
      x_scratch[...] = jnp.zeros_like(x_scratch)
      attn_scratch[...] = jnp.zeros_like(attn_scratch)
    if s_pad != S:
      mem_scratch[...] = jnp.zeros_like(mem_scratch)
    for b in range(Bb):
      x_scratch[b * t_pad:b * t_pad + T, :] = x_ref[b]
      mem_scratch[b * s_pad:b * s_pad + S, :] = mem_ref[b]

  def layer_norm(z, a, b):
    # torch-style: unbiased std (÷(D-1)), eps added to std; per-row exact reciprocal.
    mean = jnp.mean(z, axis=-1, keepdims=True)
    var = jnp.sum((z - mean) ** 2, axis=-1, keepdims=True) * (1.0 / (D - 1))
    inv = pl.reciprocal(jnp.sqrt(var) + eps)
    return a * ((z - mean) * inv) + b

  def matmul_bias(a_f32, w_ref, b_ref):
    # Weights arrive pre-cast to compute_dtype (host side); accumulate in f32.
    return jnp.dot(a_f32.astype(cd), w_ref[0],
                   preferred_element_type=jnp.float32) + b_ref[0]

  def attention(q_f32, k_f32, v_f32, bias_ref, kv_stride, kv_len):
    # q: (Bb*t_pad, D); k, v: (Bb*kv_stride, D); bias: (Bb, T|1, kv_len) additive.
    q_c = (q_f32 * inv_sqrt_dk).astype(cd)       # 1/sqrt(dk) folded into q, once
    k_c = k_f32.astype(cd)
    v_c = v_f32.astype(cd)
    bias = bias_ref[...].astype(jnp.float32)     # mask work hoisted out of the head loop
    for b in range(Bb):
      r0 = b * t_pad
      k0 = b * kv_stride
      q_b = q_c[r0:r0 + T, :]
      k_b = k_c[k0:k0 + kv_len, :]
      v_b = v_c[k0:k0 + kv_len, :]
      bias_b = bias[b]
      for h in range(num_heads):
        cols = slice(h * dk, (h + 1) * dk)
        s = jax.lax.dot_general(q_b[:, cols], k_b[:, cols],
                                (((1,), (1,)), ((), ())),
                                preferred_element_type=jnp.float32)
        s = s + bias_b
        s = s - jnp.max(s, axis=-1, keepdims=True)
        p = jnp.exp(s)
        p = p * pl.reciprocal(jnp.sum(p, axis=-1, keepdims=True))    # exact
        # Scatter the head output into a lane slice of the (rows, D) scratch: keeps the
        # Wo operand lane-dense without a cross-lane concatenate.
        attn_scratch[r0:r0 + T, cols] = jnp.dot(
            p.astype(cd), v_b[:, cols], preferred_element_type=jnp.float32)
    return attn_scratch[...]

  ln_a = ln_a_ref[0]            # (3, D): the 3 pre-norm LayerNorms of this layer
  ln_b = ln_b_ref[0]
  x = x_scratch[...]            # (Bb*t_pad, D) f32 residual stream

  # --- sublayer 0: masked self-attention, x + Wo(attn(LN(x))) ---
  xn = layer_norm(x, ln_a[0:1], ln_b[0:1])
  qkv = matmul_bias(xn, w_sqkv_ref, b_sqkv_ref)                  # fused QKV (rows, 3D)
  attn = attention(qkv[:, :D], qkv[:, D:2 * D], qkv[:, 2 * D:],
                   tgt_bias_ref, t_pad, T)
  x = x + jnp.dot(attn.astype(cd), w_so_ref[0],
                  preferred_element_type=jnp.float32) + b_so_ref[0]

  # --- sublayer 1: cross-attention over encoder memory ---
  xn = layer_norm(x, ln_a[1:2], ln_b[1:2])
  q = matmul_bias(xn, w_cq_ref, b_cq_ref)                        # (rows, D)
  kv = matmul_bias(mem_scratch[...], w_ckv_ref, b_ckv_ref)       # fused KV (mem rows, 2D)
  attn = attention(q, kv[:, :D], kv[:, D:], src_bias_ref, s_pad, S)
  x = x + jnp.dot(attn.astype(cd), w_co_ref[0],
                  preferred_element_type=jnp.float32) + b_co_ref[0]

  # --- sublayer 2: position-wise FFN ---
  xn = layer_norm(x, ln_a[2:3], ln_b[2:3])
  ff = jnp.maximum(matmul_bias(xn, w_ff1_ref, b_ff1_ref), 0.0)
  x = x + jnp.dot(ff.astype(cd), w_ff2_ref[0],
                  preferred_element_type=jnp.float32) + b_ff2_ref[0]

  x_scratch[...] = x

  # Final LayerNorm, written once per batch block (output block revisited over layers).
  @pl.when(layer == n_layers - 1)
  def _():
    y = layer_norm(x, final_a_ref[...], final_b_ref[...])
    for b in range(Bb):
      o_ref[b] = y[b * t_pad:b * t_pad + T, :]


# ------------------------------- wrapper -------------------------------------

def decoder_forward(params, x, memory, src_mask, tgt_mask,
                    compute_dtype=jnp.bfloat16, block_b=None):
  """Pallas-backed equivalent of Decoder.forward(x, memory, src_mask, tgt_mask)."""
  B, T, D = x.shape
  S = memory.shape[1]
  H = params["num_heads"]
  n_layers = params["w_sqkv"].shape[0]
  d_ff = params["w_ff1"].shape[-1]
  cd = compute_dtype

  # Batch block: weights stream once per layer per batch block, so bigger blocks amortize
  # weight HBM traffic and raise the matmul M dimension.  (For v7x megacore with large B,
  # pick block_b so that B // block_b >= 2 to occupy both TensorCores.)
  if block_b is None:
    block_b = B
  if B % block_b != 0:
    raise ValueError("batch must be divisible by block_b")
  nb = B // block_b

  rnd8 = lambda n: ((n + 7) // 8) * 8
  t_pad, s_pad = rnd8(T), rnd8(S)

  # Matmul weights pre-cast to the MXU operand dtype host-side (halves weight DMA for
  # bf16); biases / LayerNorm params / residual stream stay f32.
  wcast = lambda name: params[name].astype(cd)

  # Host-built additive attention biases (mask == 0.0 means masked in the torch module);
  # bf16 halves the (B, T, T) mask DMA and replaces per-head compare+select with one add.
  tgt_bias = jnp.where(tgt_mask == 0.0, -1e9, 0.0).astype(jnp.bfloat16)   # (B, T, T)
  src_bias = jnp.where(src_mask == 0.0, -1e9, 0.0).astype(jnp.bfloat16)   # (B, 1, S)

  batch3 = lambda b, l: (b, 0, 0)   # per-batch-block (constant over layer -> VMEM-resident)
  layer3 = lambda b, l: (l, 0, 0)   # per-layer weight streaming
  const2 = lambda b, l: (0, 0)

  in_specs = [
      pl.BlockSpec((block_b, T, D), batch3),      # x
      pl.BlockSpec((block_b, S, D), batch3),      # memory
      pl.BlockSpec((block_b, T, T), batch3),      # tgt additive bias
      pl.BlockSpec((block_b, 1, S), batch3),      # src additive bias
      pl.BlockSpec((1, D, 3 * D), layer3),        # w_sqkv
      pl.BlockSpec((1, 1, 3 * D), layer3),        # b_sqkv
      pl.BlockSpec((1, D, D), layer3),            # w_so
      pl.BlockSpec((1, 1, D), layer3),            # b_so
      pl.BlockSpec((1, D, D), layer3),            # w_cq
      pl.BlockSpec((1, 1, D), layer3),            # b_cq
      pl.BlockSpec((1, D, 2 * D), layer3),        # w_ckv
      pl.BlockSpec((1, 1, 2 * D), layer3),        # b_ckv
      pl.BlockSpec((1, D, D), layer3),            # w_co
      pl.BlockSpec((1, 1, D), layer3),            # b_co
      pl.BlockSpec((1, D, d_ff), layer3),         # w_ff1
      pl.BlockSpec((1, 1, d_ff), layer3),         # b_ff1
      pl.BlockSpec((1, d_ff, D), layer3),         # w_ff2
      pl.BlockSpec((1, 1, D), layer3),            # b_ff2
      pl.BlockSpec((1, 3, D), layer3),            # ln_a (3 pre-norm LNs per layer)
      pl.BlockSpec((1, 3, D), layer3),            # ln_b
      pl.BlockSpec((1, D), const2),               # final_a
      pl.BlockSpec((1, D), const2),               # final_b
  ]

  # Explicit VMEM budget (double-buffered per-step blocks + scratch + headroom), clamped
  # to v7x's 64 MiB physical ceiling.  v5e/v6e default scoped limits are smaller than this.
  w_itemsize = jnp.dtype(cd).itemsize
  w_elems = D * 3 * D + 3 * D * D + D * 2 * D + 2 * D * d_ff
  small_elems = 3 * D + 3 * D + 2 * D + 3 * D + d_ff + D + 6 * D + 2 * D
  act_block_bytes = 4 * block_b * (2 * T * D + S * D) + 2 * block_b * (T * T + S)
  scratch_bytes = 4 * block_b * (2 * t_pad + s_pad) * D
  per_step_bytes = w_itemsize * w_elems + 4 * small_elems + act_block_bytes
  vmem_limit = int(min(64 * 1024 * 1024,
                       max(8 * 1024 * 1024,
                           2 * per_step_bytes + scratch_bytes + (2 << 20))))

  # Advisory cost estimate for the XLA scheduler.
  flops = 2 * B * n_layers * (
      T * D * 3 * D + 3 * T * D * D + S * D * 2 * D + 2 * T * D * d_ff
      + 2 * T * T * D + 2 * T * S * D)
  transcendentals = B * n_layers * (H * (T * T + T * S) + 3 * T) + B * T
  bytes_accessed = (nb * n_layers * (w_itemsize * w_elems + 4 * small_elems)
                    + 8 * B * T * D + 4 * B * S * D + 2 * B * (T * T + S))
  cost = pl.CostEstimate(flops=int(flops), transcendentals=int(transcendentals),
                         bytes_accessed=int(bytes_accessed))

  kernel = functools.partial(_decoder_kernel, num_heads=H, eps=1e-6,
                             compute_dtype=cd)

  return pl.pallas_call(
      kernel,
      out_shape=jax.ShapeDtypeStruct((B, T, D), jnp.float32),
      grid=(nb, n_layers),
      in_specs=in_specs,
      out_specs=pl.BlockSpec((block_b, T, D), batch3),
      scratch_shapes=[
          pltpu.VMEM((block_b * t_pad, D), jnp.float32),  # residual carry across layers
          pltpu.VMEM((block_b * t_pad, D), jnp.float32),  # attention head assembly
          pltpu.VMEM((block_b * s_pad, D), jnp.float32),  # flattened encoder memory
      ],
      compiler_params=pltpu.CompilerParams(
          dimension_semantics=("parallel", "arbitrary"),
          vmem_limit_bytes=vmem_limit),
      cost_estimate=cost,
  )(x, memory, tgt_bias, src_bias,
    wcast("w_sqkv"), params["b_sqkv"], wcast("w_so"), params["b_so"],
    wcast("w_cq"), params["b_cq"], wcast("w_ckv"), params["b_ckv"],
    wcast("w_co"), params["b_co"],
    wcast("w_ff1"), params["b_ff1"], wcast("w_ff2"), params["b_ff2"],
    params["ln_a"], params["ln_b"], params["final_a"], params["final_b"])


# ------------------------------- parameters ----------------------------------

def init_params(key, n_layers, d_model, d_ff, h):
  ks = iter(jax.random.split(key, 32))

  def w(shape, scale=0.1):
    return scale * jax.random.normal(next(ks), shape, jnp.float32)

  return {
      "num_heads": h,
      "w_sqkv": w((n_layers, d_model, 3 * d_model)),
      "b_sqkv": w((n_layers, 1, 3 * d_model), 0.02),
      "w_so": w((n_layers, d_model, d_model)),
      "b_so": w((n_layers, 1, d_model), 0.02),
      "w_cq": w((n_layers, d_model, d_model)),
      "b_cq": w((n_layers, 1, d_model), 0.02),
      "w_ckv": w((n_layers, d_model, 2 * d_model)),
      "b_ckv": w((n_layers, 1, 2 * d_model), 0.02),
      "w_co": w((n_layers, d_model, d_model)),
      "b_co": w((n_layers, 1, d_model), 0.02),
      "w_ff1": w((n_layers, d_model, d_ff)),
      "b_ff1": w((n_layers, 1, d_ff), 0.02),
      "w_ff2": w((n_layers, d_ff, d_model)),
      "b_ff2": w((n_layers, 1, d_model), 0.02),
      "ln_a": 1.0 + w((n_layers, 3, d_model), 0.05),
      "ln_b": w((n_layers, 3, d_model), 0.05),
      "final_a": 1.0 + w((1, d_model), 0.05),
      "final_b": w((1, d_model), 0.05),
  }


# --------------------------- pure-JAX reference -------------------------------

def decoder_ref(params, x, memory, src_mask, tgt_mask, compute_dtype=jnp.float32):
  """Module semantics; casts operands to compute_dtype at MXU boundaries only."""
  D = x.shape[-1]
  H = params["num_heads"]
  dk = D // H
  n_layers = params["w_sqkv"].shape[0]
  cd = compute_dtype

  def mm(a, w):
    return jnp.dot(a.astype(cd), w.astype(cd), preferred_element_type=jnp.float32)

  def ln(z, a, b, eps=1e-6):
    mean = jnp.mean(z, -1, keepdims=True)
    var = jnp.sum((z - mean) ** 2, -1, keepdims=True) / (D - 1)
    return a * (z - mean) / (jnp.sqrt(var) + eps) + b

  def mha(q, k, v, mask):
    B_, Tq, _ = q.shape
    Tk = k.shape[1]
    q = q * (1.0 / math.sqrt(dk))
    qh = q.reshape(B_, Tq, H, dk).transpose(0, 2, 1, 3).astype(cd)
    kh = k.reshape(B_, Tk, H, dk).transpose(0, 2, 1, 3).astype(cd)
    vh = v.reshape(B_, Tk, H, dk).transpose(0, 2, 1, 3).astype(cd)
    s = jnp.einsum("bhqd,bhkd->bhqk", qh, kh, preferred_element_type=jnp.float32)
    s = jnp.where(mask[:, None] == 0.0, -1e9, s)
    s = s - s.max(-1, keepdims=True)
    p = jnp.exp(s)
    p = p / p.sum(-1, keepdims=True)
    o = jnp.einsum("bhqk,bhkd->bhqd", p.astype(cd), vh,
                   preferred_element_type=jnp.float32)
    return o.transpose(0, 2, 1, 3).reshape(B_, Tq, D)

  for l in range(n_layers):
    xn = ln(x, params["ln_a"][l, 0], params["ln_b"][l, 0])
    qkv = mm(xn, params["w_sqkv"][l]) + params["b_sqkv"][l]
    q, k, v = qkv[..., :D], qkv[..., D:2 * D], qkv[..., 2 * D:]
    x = x + mm(mha(q, k, v, tgt_mask), params["w_so"][l]) + params["b_so"][l]

    xn = ln(x, params["ln_a"][l, 1], params["ln_b"][l, 1])
    q = mm(xn, params["w_cq"][l]) + params["b_cq"][l]
    kv = mm(memory, params["w_ckv"][l]) + params["b_ckv"][l]
    k, v = kv[..., :D], kv[..., D:]
    x = x + mm(mha(q, k, v, src_mask), params["w_co"][l]) + params["b_co"][l]

    xn = ln(x, params["ln_a"][l, 2], params["ln_b"][l, 2])
    ff = jnp.maximum(mm(xn, params["w_ff1"][l]) + params["b_ff1"][l], 0.0)
    x = x + mm(ff, params["w_ff2"][l]) + params["b_ff2"][l]

  return ln(x, params["final_a"], params["final_b"])


# ----------------------------------- main -------------------------------------

if __name__ == "__main__":
  B, T, S = 2, 8, 10                 # batch, target len, source (memory) len
  d_model, d_ff, h, n_layers = 32, 64, 4, 2

  key = jax.random.PRNGKey(0)
  k_p, k_x, k_m = jax.random.split(key, 3)
  params = init_params(k_p, n_layers, d_model, d_ff, h)

  x = 0.5 * jax.random.normal(k_x, (B, T, d_model), jnp.float32)       # embedded target
  memory = 0.5 * jax.random.normal(k_m, (B, S, d_model), jnp.float32)  # encoder output

  # tgt_mask = pad-mask & causal (B, T, T); src_mask = key pad mask (B, 1, S)
  tgt_lens = jnp.array([T, 6])
  src_lens = jnp.array([S, 7])
  tgt_pad = (jnp.arange(T)[None, :] < tgt_lens[:, None])               # (B, T)
  causal = jnp.tril(jnp.ones((T, T), dtype=bool))                      # (T, T)
  tgt_mask = (tgt_pad[:, None, :] & causal[None]).astype(jnp.float32)  # (B, T, T)
  src_mask = (jnp.arange(S)[None, :] < src_lens[:, None])[:, None, :].astype(jnp.float32)

  # 1) f32 MXU-operand path: tight check of the module semantics.
  out_f32 = jax.block_until_ready(
      decoder_forward(params, x, memory, src_mask, tgt_mask,
                      compute_dtype=jnp.float32))
  ref_f32 = decoder_ref(params, x, memory, src_mask, tgt_mask, jnp.float32)
  np.testing.assert_allclose(np.asarray(out_f32), np.asarray(ref_f32),
                             rtol=2e-3, atol=2e-3)

  # 2) bf16 MXU-operand path (performance default): checked against a reference with the
  #    same matmul-boundary casts and f32 accumulation.
  out_bf16 = jax.block_until_ready(
      decoder_forward(params, x, memory, src_mask, tgt_mask,
                      compute_dtype=jnp.bfloat16))
  ref_bf16 = decoder_ref(params, x, memory, src_mask, tgt_mask, jnp.bfloat16)
  np.testing.assert_allclose(np.asarray(out_bf16), np.asarray(ref_bf16),
                             rtol=2e-2, atol=2e-2)

  print("KERNEL_OK")
</pallas_src>

<mosaic_0001>
module attributes {stable_mosaic.version = 11 : i64} {
  func.func @_decoder_kernel(%arg0: i32, %arg1: i32, %arg2: memref<2x8x32xf32, #tpu.memory_space<vmem>>, %arg3: memref<2x10x32xf32, #tpu.memory_space<vmem>>, %arg4: memref<2x8x8xbf16, #tpu.memory_space<vmem>>, %arg5: memref<2x1x10xbf16, #tpu.memory_space<vmem>>, %arg6: memref<1x32x96xf32, #tpu.memory_space<vmem>>, %arg7: memref<1x1x96xf32, #tpu.memory_space<vmem>>, %arg8: memref<1x32x32xf32, #tpu.memory_space<vmem>>, %arg9: memref<1x1x32xf32, #tpu.memory_space<vmem>>, %arg10: memref<1x32x32xf32, #tpu.memory_space<vmem>>, %arg11: memref<1x1x32xf32, #tpu.memory_space<vmem>>, %arg12: memref<1x32x64xf32, #tpu.memory_space<vmem>>, %arg13: memref<1x1x64xf32, #tpu.memory_space<vmem>>, %arg14: memref<1x32x32xf32, #tpu.memory_space<vmem>>, %arg15: memref<1x1x32xf32, #tpu.memory_space<vmem>>, %arg16: memref<1x32x64xf32, #tpu.memory_space<vmem>>, %arg17: memref<1x1x64xf32, #tpu.memory_space<vmem>>, %arg18: memref<1x64x32xf32, #tpu.memory_space<vmem>>, %arg19: memref<1x1x32xf32, #tpu.memory_space<vmem>>, %arg20: memref<1x3x32xf32, #tpu.memory_space<vmem>>, %arg21: memref<1x3x32xf32, #tpu.memory_space<vmem>>, %arg22: memref<1x32xf32, #tpu.memory_space<vmem>>, %arg23: memref<1x32xf32, #tpu.memory_space<vmem>>, %arg24: memref<2x8x32xf32, #tpu.memory_space<vmem>>, %arg25: memref<16x32xf32, #tpu.memory_space<vmem>>, %arg26: memref<16x32xf32, #tpu.memory_space<vmem>>, %arg27: memref<32x32xf32, #tpu.memory_space<vmem>>) attributes {dimension_semantics = [#tpu.dimension_semantics<parallel>, #tpu.dimension_semantics<arbitrary>], iteration_bounds = array<i64: 1, 2>, scalar_prefetch = 0 : i64, scratch_operands = 3 : i64, tpu.core_type = #tpu.core_type<tc>, window_params = [{transform_indices = @transform_0, window_bounds = array<i64: 2, 8, 32>}, {transform_indices = @transform_1, window_bounds = array<i64: 2, 10, 32>}, {transform_indices = @transform_2, window_bounds = array<i64: 2, 8, 8>}, {transform_indices = @transform_3, window_bounds = array<i64: 2, 1, 10>}, {transform_indices = @transform_4, window_bounds = array<i64: 1, 32, 96>}, {transform_indices = @transform_5, window_bounds = array<i64: 1, 1, 96>}, {transform_indices = @transform_6, window_bounds = array<i64: 1, 32, 32>}, {transform_indices = @transform_7, window_bounds = array<i64: 1, 1, 32>}, {transform_indices = @transform_8, window_bounds = array<i64: 1, 32, 32>}, {transform_indices = @transform_9, window_bounds = array<i64: 1, 1, 32>}, {transform_indices = @transform_10, window_bounds = array<i64: 1, 32, 64>}, {transform_indices = @transform_11, window_bounds = array<i64: 1, 1, 64>}, {transform_indices = @transform_12, window_bounds = array<i64: 1, 32, 32>}, {transform_indices = @transform_13, window_bounds = array<i64: 1, 1, 32>}, {transform_indices = @transform_14, window_bounds = array<i64: 1, 32, 64>}, {transform_indices = @transform_15, window_bounds = array<i64: 1, 1, 64>}, {transform_indices = @transform_16, window_bounds = array<i64: 1, 64, 32>}, {transform_indices = @transform_17, window_bounds = array<i64: 1, 1, 32>}, {transform_indices = @transform_18, window_bounds = array<i64: 1, 3, 32>}, {transform_indices = @transform_19, window_bounds = array<i64: 1, 3, 32>}, {pipeline_mode = #tpu.pipeline_mode<synchronous>, transform_indices = @transform_20, window_bounds = array<i64: 1, 32>}, {pipeline_mode = #tpu.pipeline_mode<synchronous>, transform_indices = @transform_21, window_bounds = array<i64: 1, 32>}, {transform_indices = @transform_22, window_bounds = array<i64: 2, 8, 32>}]} {
    %c0_i32 = arith.constant 0 : i32
    %0 = arith.cmpi eq, %arg1, %c0_i32 : i32
    %1 = arith.extui %0 : i1 to i32
    %c0_i32_0 = arith.constant 0 : i32
    %2 = arith.cmpi ne, %1, %c0_i32_0 : i32
    scf.if %2 {
      %cst_182 = arith.constant 0.000000e+00 : f32
      %457 = vector.broadcast %cst_182 : f32 to vector<32x32xf32>
      %c0_183 = arith.constant 0 : index
      %c0_184 = arith.constant 0 : index
      %458 = vector.load %arg27[%c0_183, %c0_184] : memref<32x32xf32, #tpu.memory_space<vmem>>, vector<32x32xf32>
      tpu.vector_store %arg27[%c0_183, %c0_184], %457 {strides = array<i32>} : memref<32x32xf32, #tpu.memory_space<vmem>>, vector<32x32xf32>,
      %c0_185 = arith.constant 0 : index
      %c0_186 = arith.constant 0 : index
      %c0_187 = arith.constant 0 : index
      %459 = vector.load %arg2[%c0_185, %c0_186, %c0_187] : memref<2x8x32xf32, #tpu.memory_space<vmem>>, vector<1x8x32xf32>
      %460 = vector.shape_cast %459 : vector<1x8x32xf32> to vector<8x32xf32>
      %c0_188 = arith.constant 0 : index
      %c0_189 = arith.constant 0 : index
      %461 = vector.load %arg25[%c0_188, %c0_189] : memref<16x32xf32, #tpu.memory_space<vmem>>, vector<8x32xf32>
      tpu.vector_store %arg25[%c0_188, %c0_189], %460 {strides = array<i32>} : memref<16x32xf32, #tpu.memory_space<vmem>>, vector<8x32xf32>,
      %c0_190 = arith.constant 0 : index
      %c0_191 = arith.constant 0 : index
      %c0_192 = arith.constant 0 : index
      %462 = vector.load %arg3[%c0_190, %c0_191, %c0_192] : memref<2x10x32xf32, #tpu.memory_space<vmem>>, vector<1x10x32xf32>
      %463 = vector.shape_cast %462 : vector<1x10x32xf32> to vector<10x32xf32>
      %c0_193 = arith.constant 0 : index
      %c0_194 = arith.constant 0 : index
      %464 = vector.load %arg27[%c0_193, %c0_194] : memref<32x32xf32, #tpu.memory_space<vmem>>, vector<10x32xf32>
      tpu.vector_store %arg27[%c0_193, %c0_194], %463 {strides = array<i32>} : memref<32x32xf32, #tpu.memory_space<vmem>>, vector<10x32xf32>,
      %c1 = arith.constant 1 : index
      %c0_195 = arith.constant 0 : index
      %c0_196 = arith.constant 0 : index
      %465 = vector.load %arg2[%c1, %c0_195, %c0_196] : memref<2x8x32xf32, #tpu.memory_space<vmem>>, vector<1x8x32xf32>
      %466 = vector.shape_cast %465 : vector<1x8x32xf32> to vector<8x32xf32>
      %c8_197 = arith.constant 8 : index
      %c0_198 = arith.constant 0 : index
      %467 = vector.load %arg25[%c8_197, %c0_198] : memref<16x32xf32, #tpu.memory_space<vmem>>, vector<8x32xf32>
      tpu.vector_store %arg25[%c8_197, %c0_198], %466 {strides = array<i32>} : memref<16x32xf32, #tpu.memory_space<vmem>>, vector<8x32xf32>,
      %c1_199 = arith.constant 1 : index
      %c0_200 = arith.constant 0 : index
      %c0_201 = arith.constant 0 : index
      %468 = vector.load %arg3[%c1_199, %c0_200, %c0_201] : memref<2x10x32xf32, #tpu.memory_space<vmem>>, vector<1x10x32xf32>
      %469 = vector.shape_cast %468 : vector<1x10x32xf32> to vector<10x32xf32>
      %c16_202 = arith.constant 16 : index
      %c0_203 = arith.constant 0 : index
      %470 = vector.load %arg27[%c16_202, %c0_203] : memref<32x32xf32, #tpu.memory_space<vmem>>, vector<10x32xf32>
      tpu.vector_store %arg27[%c16_202, %c0_203], %469 {strides = array<i32>} : memref<32x32xf32, #tpu.memory_space<vmem>>, vector<10x32xf32>,
    } else {
    }
    %c0 = arith.constant 0 : index
    %c0_1 = arith.constant 0 : index
    %c0_2 = arith.constant 0 : index
    %3 = vector.load %arg20[%c0, %c0_1, %c0_2] : memref<1x3x32xf32, #tpu.memory_space<vmem>>, vector<1x3x32xf32>
    %4 = vector.shape_cast %3 : vector<1x3x32xf32> to vector<3x32xf32>
    %c0_3 = arith.constant 0 : index
    %c0_4 = arith.constant 0 : index
    %c0_5 = arith.constant 0 : index
    %5 = vector.load %arg21[%c0_3, %c0_4, %c0_5] : memref<1x3x32xf32, #tpu.memory_space<vmem>>, vector<1x3x32xf32>
    %6 = vector.shape_cast %5 : vector<1x3x32xf32> to vector<3x32xf32>
    %c0_6 = arith.constant 0 : index
    %c0_7 = arith.constant 0 : index
    %7 = vector.load %arg25[%c0_6, %c0_7] : memref<16x32xf32, #tpu.memory_space<vmem>>, vector<16x32xf32>
    %8 = vector.extract_strided_slice %4 {offsets = [0, 0], sizes = [1, 32], strides = [1, 1]} : vector<3x32xf32> to vector<1x32xf32>
    %9 = vector.extract_strided_slice %6 {offsets = [0, 0], sizes = [1, 32], strides = [1, 1]} : vector<3x32xf32> to vector<1x32xf32>
    %cst = arith.constant dense<0.000000e+00> : vector<16xf32>
    %10 = vector.multi_reduction <add>, %7, %cst [1] : vector<16x32xf32> to vector<16xf32>
    %11 = vector.shape_cast %10 : vector<16xf32> to vector<16x1xf32>
    %cst_8 = arith.constant 3.200000e+01 : f32
    %12 = vector.broadcast %cst_8 : f32 to vector<16x1xf32>
    %13 = arith.divf %11, %12 : vector<16x1xf32>
    %14 = vector.broadcast %13 : vector<16x1xf32> to vector<16x32xf32>
    %15 = arith.subf %7, %14 : vector<16x32xf32>
    %16 = arith.mulf %15, %15 : vector<16x32xf32>
    %cst_9 = arith.constant dense<0.000000e+00> : vector<16xf32>
    %17 = vector.multi_reduction <add>, %16, %cst_9 [1] : vector<16x32xf32> to vector<16xf32>
    %18 = vector.shape_cast %17 : vector<16xf32> to vector<16x1xf32>
    %cst_10 = arith.constant 0.0322580636 : f32
    %19 = vector.broadcast %cst_10 : f32 to vector<16x1xf32>
    %20 = arith.mulf %18, %19 : vector<16x1xf32>
    %21 = math.sqrt %20 : vector<16x1xf32>
    %cst_11 = arith.constant 9.99999997E-7 : f32
    %22 = vector.broadcast %cst_11 : f32 to vector<16x1xf32>
    %23 = arith.addf %21, %22 : vector<16x1xf32>
    %24 = tpu.reciprocal %23 : vector<16x1xf32> -> vector<16x1xf32>
    %25 = vector.broadcast %13 : vector<16x1xf32> to vector<16x32xf32>
    %26 = arith.subf %7, %25 : vector<16x32xf32>
    %27 = vector.broadcast %24 : vector<16x1xf32> to vector<16x32xf32>
    %28 = arith.mulf %26, %27 : vector<16x32xf32>
    %29 = vector.broadcast %8 : vector<1x32xf32> to vector<16x32xf32>
    %30 = arith.mulf %29, %28 : vector<16x32xf32>
    %31 = vector.broadcast %9 : vector<1x32xf32> to vector<16x32xf32>
    %32 = arith.addf %30, %31 : vector<16x32xf32>
    %c0_12 = arith.constant 0 : index
    %c0_13 = arith.constant 0 : index
    %c0_14 = arith.constant 0 : index
    %33 = vector.load %arg6[%c0_12, %c0_13, %c0_14] : memref<1x32x96xf32, #tpu.memory_space<vmem>>, vector<1x32x96xf32>
    %34 = vector.shape_cast %33 : vector<1x32x96xf32> to vector<32x96xf32>
    %cst_15 = arith.constant dense<0.000000e+00> : vector<16x96xf32>
    %35 = tpu.matmul %32, %34, %cst_15 {dimension_numbers = #tpu.dot_dimension_numbers<[1], [0], [0], [1], [0, 0, 1, 1], [], []>} : vector<16x32xf32>, vector<32x96xf32>, vector<16x96xf32> -> vector<16x96xf32>
    %c0_16 = arith.constant 0 : index
    %c0_17 = arith.constant 0 : index
    %c0_18 = arith.constant 0 : index
    %36 = vector.load %arg7[%c0_16, %c0_17, %c0_18] : memref<1x1x96xf32, #tpu.memory_space<vmem>>, vector<1x1x96xf32>
    %37 = vector.shape_cast %36 : vector<1x1x96xf32> to vector<1x96xf32>
    %38 = vector.broadcast %37 : vector<1x96xf32> to vector<16x96xf32>
    %39 = arith.addf %35, %38 : vector<16x96xf32>
    %40 = vector.extract_strided_slice %39 {offsets = [0, 0], sizes = [16, 32], strides = [1, 1]} : vector<16x96xf32> to vector<16x32xf32>
    %41 = vector.extract_strided_slice %39 {offsets = [0, 32], sizes = [16, 32], strides = [1, 1]} : vector<16x96xf32> to vector<16x32xf32>
    %42 = vector.extract_strided_slice %39 {offsets = [0, 64], sizes = [16, 32], strides = [1, 1]} : vector<16x96xf32> to vector<16x32xf32>
    %cst_19 = arith.constant 0.353553385 : f32
    %43 = vector.broadcast %cst_19 : f32 to vector<16x32xf32>
    %44 = arith.mulf %40, %43 : vector<16x32xf32>
    %c0_20 = arith.constant 0 : index
    %c0_21 = arith.constant 0 : index
    %c0_22 = arith.constant 0 : index
    %45 = vector.load %arg4[%c0_20, %c0_21, %c0_22] : memref<2x8x8xbf16, #tpu.memory_space<vmem>>, vector<2x8x8xbf16>
    %46 = arith.extf %45 : vector<2x8x8xbf16> to vector<2x8x8xf32>
    %47 = vector.extract_strided_slice %44 {offsets = [0, 0], sizes = [8, 32], strides = [1, 1]} : vector<16x32xf32> to vector<8x32xf32>
    %48 = vector.extract_strided_slice %41 {offsets = [0, 0], sizes = [8, 32], strides = [1, 1]} : vector<16x32xf32> to vector<8x32xf32>
    %49 = vector.extract_strided_slice %42 {offsets = [0, 0], sizes = [8, 32], strides = [1, 1]} : vector<16x32xf32> to vector<8x32xf32>
    %50 = vector.extract_strided_slice %46 {offsets = [0, 0, 0], sizes = [1, 8, 8], strides = [1, 1, 1]} : vector<2x8x8xf32> to vector<1x8x8xf32>
    %51 = vector.shape_cast %50 : vector<1x8x8xf32> to vector<8x8xf32>
    %52 = vector.extract_strided_slice %47 {offsets = [0, 0], sizes = [8, 8], strides = [1, 1]} : vector<8x32xf32> to vector<8x8xf32>
    %53 = vector.extract_strided_slice %48 {offsets = [0, 0], sizes = [8, 8], strides = [1, 1]} : vector<8x32xf32> to vector<8x8xf32>
    %cst_23 = arith.constant dense<0.000000e+00> : vector<8x8xf32>
    %54 = tpu.matmul %52, %53, %cst_23 {dimension_numbers = #tpu.dot_dimension_numbers<[1], [1], [0], [0], [0, 0, 1, 0], [], []>} : vector<8x8xf32>, vector<8x8xf32>, vector<8x8xf32> -> vector<8x8xf32>
    %55 = arith.addf %54, %51 : vector<8x8xf32>
    %cst_24 = arith.constant dense<0xFF800000> : vector<8xf32>
    %56 = vector.multi_reduction <maximumf>, %55, %cst_24 [1] : vector<8x8xf32> to vector<8xf32>
    %57 = vector.shape_cast %56 : vector<8xf32> to vector<8x1xf32>
    %58 = vector.broadcast %57 : vector<8x1xf32> to vector<8x8xf32>
    %59 = arith.subf %55, %58 : vector<8x8xf32>
    %60 = math.exp %59 : vector<8x8xf32>
    %cst_25 = arith.constant dense<0.000000e+00> : vector<8xf32>
    %61 = vector.multi_reduction <add>, %60, %cst_25 [1] : vector<8x8xf32> to vector<8xf32>
    %62 = vector.shape_cast %61 : vector<8xf32> to vector<8x1xf32>
    %63 = tpu.reciprocal %62 : vector<8x1xf32> -> vector<8x1xf32>
    %64 = vector.broadcast %63 : vector<8x1xf32> to vector<8x8xf32>
    %65 = arith.mulf %60, %64 : vector<8x8xf32>
    %66 = vector.extract_strided_slice %49 {offsets = [0, 0], sizes = [8, 8], strides = [1, 1]} : vector<8x32xf32> to vector<8x8xf32>
    %cst_26 = arith.constant dense<0.000000e+00> : vector<8x8xf32>
    %67 = tpu.matmul %65, %66, %cst_26 {dimension_numbers = #tpu.dot_dimension_numbers<[1], [0], [0], [1], [0, 0, 1, 1], [], []>} : vector<8x8xf32>, vector<8x8xf32>, vector<8x8xf32> -> vector<8x8xf32>
    %c0_27 = arith.constant 0 : index
    %c0_28 = arith.constant 0 : index
    %68 = vector.load %arg26[%c0_27, %c0_28] : memref<16x32xf32, #tpu.memory_space<vmem>>, vector<8x8xf32>
    tpu.vector_store %arg26[%c0_27, %c0_28], %67 {strides = array<i32>} : memref<16x32xf32, #tpu.memory_space<vmem>>, vector<8x8xf32>,
    %69 = vector.extract_strided_slice %47 {offsets = [0, 8], sizes = [8, 8], strides = [1, 1]} : vector<8x32xf32> to vector<8x8xf32>
    %70 = vector.extract_strided_slice %48 {offsets = [0, 8], sizes = [8, 8], strides = [1, 1]} : vector<8x32xf32> to vector<8x8xf32>
    %cst_29 = arith.constant dense<0.000000e+00> : vector<8x8xf32>
    %71 = tpu.matmul %69, %70, %cst_29 {dimension_numbers = #tpu.dot_dimension_numbers<[1], [1], [0], [0], [0, 0, 1, 0], [], []>} : vector<8x8xf32>, vector<8x8xf32>, vector<8x8xf32> -> vector<8x8xf32>
    %72 = arith.addf %71, %51 : vector<8x8xf32>
    %cst_30 = arith.constant dense<0xFF800000> : vector<8xf32>
    %73 = vector.multi_reduction <maximumf>, %72, %cst_30 [1] : vector<8x8xf32> to vector<8xf32>
    %74 = vector.shape_cast %73 : vector<8xf32> to vector<8x1xf32>
    %75 = vector.broadcast %74 : vector<8x1xf32> to vector<8x8xf32>
    %76 = arith.subf %72, %75 : vector<8x8xf32>
    %77 = math.exp %76 : vector<8x8xf32>
    %cst_31 = arith.constant dense<0.000000e+00> : vector<8xf32>
    %78 = vector.multi_reduction <add>, %77, %cst_31 [1] : vector<8x8xf32> to vector<8xf32>
    %79 = vector.shape_cast %78 : vector<8xf32> to vector<8x1xf32>
    %80 = tpu.reciprocal %79 : vector<8x1xf32> -> vector<8x1xf32>
    %81 = vector.broadcast %80 : vector<8x1xf32> to vector<8x8xf32>
    %82 = arith.mulf %77, %81 : vector<8x8xf32>
    %83 = vector.extract_strided_slice %49 {offsets = [0, 8], sizes = [8, 8], strides = [1, 1]} : vector<8x32xf32> to vector<8x8xf32>
    %cst_32 = arith.constant dense<0.000000e+00> : vector<8x8xf32>
    %84 = tpu.matmul %82, %83, %cst_32 {dimension_numbers = #tpu.dot_dimension_numbers<[1], [0], [0], [1], [0, 0, 1, 1], [], []>} : vector<8x8xf32>, vector<8x8xf32>, vector<8x8xf32> -> vector<8x8xf32>
    %c0_33 = arith.constant 0 : index
    %c8 = arith.constant 8 : index
    %85 = vector.load %arg26[%c0_33, %c8] : memref<16x32xf32, #tpu.memory_space<vmem>>, vector<8x8xf32>
    tpu.vector_store %arg26[%c0_33, %c8], %84 {strides = array<i32>} : memref<16x32xf32, #tpu.memory_space<vmem>>, vector<8x8xf32>,
    %86 = vector.extract_strided_slice %47 {offsets = [0, 16], sizes = [8, 8], strides = [1, 1]} : vector<8x32xf32> to vector<8x8xf32>
    %87 = vector.extract_strided_slice %48 {offsets = [0, 16], sizes = [8, 8], strides = [1, 1]} : vector<8x32xf32> to vector<8x8xf32>
    %cst_34 = arith.constant dense<0.000000e+00> : vector<8x8xf32>
    %88 = tpu.matmul %86, %87, %cst_34 {dimension_numbers = #tpu.dot_dimension_numbers<[1], [1], [0], [0], [0, 0, 1, 0], [], []>} : vector<8x8xf32>, vector<8x8xf32>, vector<8x8xf32> -> vector<8x8xf32>
    %89 = arith.addf %88, %51 : vector<8x8xf32>
    %cst_35 = arith.constant dense<0xFF800000> : vector<8xf32>
    %90 = vector.multi_reduction <maximumf>, %89, %cst_35 [1] : vector<8x8xf32> to vector<8xf32>
    %91 = vector.shape_cast %90 : vector<8xf32> to vector<8x1xf32>
    %92 = vector.broadcast %91 : vector<8x1xf32> to vector<8x8xf32>
    %93 = arith.subf %89, %92 : vector<8x8xf32>
    %94 = math.exp %93 : vector<8x8xf32>
    %cst_36 = arith.constant dense<0.000000e+00> : vector<8xf32>
    %95 = vector.multi_reduction <add>, %94, %cst_36 [1] : vector<8x8xf32> to vector<8xf32>
    %96 = vector.shape_cast %95 : vector<8xf32> to vector<8x1xf32>
    %97 = tpu.reciprocal %96 : vector<8x1xf32> -> vector<8x1xf32>
    %98 = vector.broadcast %97 : vector<8x1xf32> to vector<8x8xf32>
    %99 = arith.mulf %94, %98 : vector<8x8xf32>
    %100 = vector.extract_strided_slice %49 {offsets = [0, 16], sizes = [8, 8], strides = [1, 1]} : vector<8x32xf32> to vector<8x8xf32>
    %cst_37 = arith.constant dense<0.000000e+00> : vector<8x8xf32>
    %101 = tpu.matmul %99, %100, %cst_37 {dimension_numbers = #tpu.dot_dimension_numbers<[1], [0], [0], [1], [0, 0, 1, 1], [], []>} : vector<8x8xf32>, vector<8x8xf32>, vector<8x8xf32> -> vector<8x8xf32>
    %c0_38 = arith.constant 0 : index
    %c16 = arith.constant 16 : index
    %102 = vector.load %arg26[%c0_38, %c16] : memref<16x32xf32, #tpu.memory_space<vmem>>, vector<8x8xf32>
    tpu.vector_store %arg26[%c0_38, %c16], %101 {strides = array<i32>} : memref<16x32xf32, #tpu.memory_space<vmem>>, vector<8x8xf32>,
    %103 = vector.extract_strided_slice %47 {offsets = [0, 24], sizes = [8, 8], strides = [1, 1]} : vector<8x32xf32> to vector<8x8xf32>
    %104 = vector.extract_strided_slice %48 {offsets = [0, 24], sizes = [8, 8], strides = [1, 1]} : vector<8x32xf32> to vector<8x8xf32>
    %cst_39 = arith.constant dense<0.000000e+00> : vector<8x8xf32>
    %105 = tpu.matmul %103, %104, %cst_39 {dimension_numbers = #tpu.dot_dimension_numbers<[1], [1], [0], [0], [0, 0, 1, 0], [], []>} : vector<8x8xf32>, vector<8x8xf32>, vector<8x8xf32> -> vector<8x8xf32>
    %106 = arith.addf %105, %51 : vector<8x8xf32>
    %cst_40 = arith.constant dense<0xFF800000> : vector<8xf32>
    %107 = vector.multi_reduction <maximumf>, %106, %cst_40 [1] : vector<8x8xf32> to vector<8xf32>
    %108 = vector.shape_cast %107 : vector<8xf32> to vector<8x1xf32>
    %109 = vector.broadcast %108 : vector<8x1xf32> to vector<8x8xf32>
    %110 = arith.subf %106, %109 : vector<8x8xf32>
    %111 = math.exp %110 : vector<8x8xf32>
    %cst_41 = arith.constant dense<0.000000e+00> : vector<8xf32>
    %112 = vector.multi_reduction <add>, %111, %cst_41 [1] : vector<8x8xf32> to vector<8xf32>
    %113 = vector.shape_cast %112 : vector<8xf32> to vector<8x1xf32>
    %114 = tpu.reciprocal %113 : vector<8x1xf32> -> vector<8x1xf32>
    %115 = vector.broadcast %114 : vector<8x1xf32> to vector<8x8xf32>
    %116 = arith.mulf %111, %115 : vector<8x8xf32>
    %117 = vector.extract_strided_slice %49 {offsets = [0, 24], sizes = [8, 8], strides = [1, 1]} : vector<8x32xf32> to vector<8x8xf32>
    %cst_42 = arith.constant dense<0.000000e+00> : vector<8x8xf32>
    %118 = tpu.matmul %116, %117, %cst_42 {dimension_numbers = #tpu.dot_dimension_numbers<[1], [0], [0], [1], [0, 0, 1, 1], [], []>} : vector<8x8xf32>, vector<8x8xf32>, vector<8x8xf32> -> vector<8x8xf32>
    %c0_43 = arith.constant 0 : index
    %c24 = arith.constant 24 : index
    %119 = vector.load %arg26[%c0_43, %c24] : memref<16x32xf32, #tpu.memory_space<vmem>>, vector<8x8xf32>
    tpu.vector_store %arg26[%c0_43, %c24], %118 {strides = array<i32>} : memref<16x32xf32, #tpu.memory_space<vmem>>, vector<8x8xf32>,
    %120 = vector.extract_strided_slice %44 {offsets = [8, 0], sizes = [8, 32], strides = [1, 1]} : vector<16x32xf32> to vector<8x32xf32>
    %121 = vector.extract_strided_slice %41 {offsets = [8, 0], sizes = [8, 32], strides = [1, 1]} : vector<16x32xf32> to vector<8x32xf32>
    %122 = vector.extract_strided_slice %42 {offsets = [8, 0], sizes = [8, 32], strides = [1, 1]} : vector<16x32xf32> to vector<8x32xf32>
    %123 = vector.extract_strided_slice %46 {offsets = [1, 0, 0], sizes = [1, 8, 8], strides = [1, 1, 1]} : vector<2x8x8xf32> to vector<1x8x8xf32>
    %124 = vector.shape_cast %123 : vector<1x8x8xf32> to vector<8x8xf32>
    %125 = vector.extract_strided_slice %120 {offsets = [0, 0], sizes = [8, 8], strides = [1, 1]} : vector<8x32xf32> to vector<8x8xf32>
    %126 = vector.extract_strided_slice %121 {offsets = [0, 0], sizes = [8, 8], strides = [1, 1]} : vector<8x32xf32> to vector<8x8xf32>
    %cst_44 = arith.constant dense<0.000000e+00> : vector<8x8xf32>
    %127 = tpu.matmul %125, %126, %cst_44 {dimension_numbers = #tpu.dot_dimension_numbers<[1], [1], [0], [0], [0, 0, 1, 0], [], []>} : vector<8x8xf32>, vector<8x8xf32>, vector<8x8xf32> -> vector<8x8xf32>
    %128 = arith.addf %127, %124 : vector<8x8xf32>
    %cst_45 = arith.constant dense<0xFF800000> : vector<8xf32>
    %129 = vector.multi_reduction <maximumf>, %128, %cst_45 [1] : vector<8x8xf32> to vector<8xf32>
    %130 = vector.shape_cast %129 : vector<8xf32> to vector<8x1xf32>
    %131 = vector.broadcast %130 : vector<8x1xf32> to vector<8x8xf32>
    %132 = arith.subf %128, %131 : vector<8x8xf32>
    %133 = math.exp %132 : vector<8x8xf32>
    %cst_46 = arith.constant dense<0.000000e+00> : vector<8xf32>
    %134 = vector.multi_reduction <add>, %133, %cst_46 [1] : vector<8x8xf32> to vector<8xf32>
    %135 = vector.shape_cast %134 : vector<8xf32> to vector<8x1xf32>
    %136 = tpu.reciprocal %135 : vector<8x1xf32> -> vector<8x1xf32>
    %137 = vector.broadcast %136 : vector<8x1xf32> to vector<8x8xf32>
    %138 = arith.mulf %133, %137 : vector<8x8xf32>
    %139 = vector.extract_strided_slice %122 {offsets = [0, 0], sizes = [8, 8], strides = [1, 1]} : vector<8x32xf32> to vector<8x8xf32>
    %cst_47 = arith.constant dense<0.000000e+00> : vector<8x8xf32>
    %140 = tpu.matmul %138, %139, %cst_47 {dimension_numbers = #tpu.dot_dimension_numbers<[1], [0], [0], [1], [0, 0, 1, 1], [], []>} : vector<8x8xf32>, vector<8x8xf32>, vector<8x8xf32> -> vector<8x8xf32>
    %c8_48 = arith.constant 8 : index
    %c0_49 = arith.constant 0 : index
    %141 = vector.load %arg26[%c8_48, %c0_49] : memref<16x32xf32, #tpu.memory_space<vmem>>, vector<8x8xf32>
    tpu.vector_store %arg26[%c8_48, %c0_49], %140 {strides = array<i32>} : memref<16x32xf32, #tpu.memory_space<vmem>>, vector<8x8xf32>,
    %142 = vector.extract_strided_slice %120 {offsets = [0, 8], sizes = [8, 8], strides = [1, 1]} : vector<8x32xf32> to vector<8x8xf32>
    %143 = vector.extract_strided_slice %121 {offsets = [0, 8], sizes = [8, 8], strides = [1, 1]} : vector<8x32xf32> to vector<8x8xf32>
    %cst_50 = arith.constant dense<0.000000e+00> : vector<8x8xf32>
    %144 = tpu.matmul %142, %143, %cst_50 {dimension_numbers = #tpu.dot_dimension_numbers<[1], [1], [0], [0], [0, 0, 1, 0], [], []>} : vector<8x8xf32>, vector<8x8xf32>, vector<8x8xf32> -> vector<8x8xf32>
    %145 = arith.addf %144, %124 : vector<8x8xf32>
    %cst_51 = arith.constant dense<0xFF800000> : vector<8xf32>
    %146 = vector.multi_reduction <maximumf>, %145, %cst_51 [1] : vector<8x8xf32> to vector<8xf32>
    %147 = vector.shape_cast %146 : vector<8xf32> to vector<8x1xf32>
    %148 = vector.broadcast %147 : vector<8x1xf32> to vector<8x8xf32>
    %149 = arith.subf %145, %148 : vector<8x8xf32>
    %150 = math.exp %149 : vector<8x8xf32>
    %cst_52 = arith.constant dense<0.000000e+00> : vector<8xf32>
    %151 = vector.multi_reduction <add>, %150, %cst_52 [1] : vector<8x8xf32> to vector<8xf32>
    %152 = vector.shape_cast %151 : vector<8xf32> to vector<8x1xf32>
    %153 = tpu.reciprocal %152 : vector<8x1xf32> -> vector<8x1xf32>
    %154 = vector.broadcast %153 : vector<8x1xf32> to vector<8x8xf32>
    %155 = arith.mulf %150, %154 : vector<8x8xf32>
    %156 = vector.extract_strided_slice %122 {offsets = [0, 8], sizes = [8, 8], strides = [1, 1]} : vector<8x32xf32> to vector<8x8xf32>
    %cst_53 = arith.constant dense<0.000000e+00> : vector<8x8xf32>
    %157 = tpu.matmul %155, %156, %cst_53 {dimension_numbers = #tpu.dot_dimension_numbers<[1], [0], [0], [1], [0, 0, 1, 1], [], []>} : vector<8x8xf32>, vector<8x8xf32>, vector<8x8xf32> -> vector<8x8xf32>
    %c8_54 = arith.constant 8 : index
    %c8_55 = arith.constant 8 : index
    %158 = vector.load %arg26[%c8_54, %c8_55] : memref<16x32xf32, #tpu.memory_space<vmem>>, vector<8x8xf32>
    tpu.vector_store %arg26[%c8_54, %c8_55], %157 {strides = array<i32>} : memref<16x32xf32, #tpu.memory_space<vmem>>, vector<8x8xf32>,
    %159 = vector.extract_strided_slice %120 {offsets = [0, 16], sizes = [8, 8], strides = [1, 1]} : vector<8x32xf32> to vector<8x8xf32>
    %160 = vector.extract_strided_slice %121 {offsets = [0, 16], sizes = [8, 8], strides = [1, 1]} : vector<8x32xf32> to vector<8x8xf32>
    %cst_56 = arith.constant dense<0.000000e+00> : vector<8x8xf32>
    %161 = tpu.matmul %159, %160, %cst_56 {dimension_numbers = #tpu.dot_dimension_numbers<[1], [1], [0], [0], [0, 0, 1, 0], [], []>} : vector<8x8xf32>, vector<8x8xf32>, vector<8x8xf32> -> vector<8x8xf32>
    %162 = arith.addf %161, %124 : vector<8x8xf32>
    %cst_57 = arith.constant dense<0xFF800000> : vector<8xf32>
    %163 = vector.multi_reduction <maximumf>, %162, %cst_57 [1] : vector<8x8xf32> to vector<8xf32>
    %164 = vector.shape_cast %163 : vector<8xf32> to vector<8x1xf32>
    %165 = vector.broadcast %164 : vector<8x1xf32> to vector<8x8xf32>
    %166 = arith.subf %162, %165 : vector<8x8xf32>
    %167 = math.exp %166 : vector<8x8xf32>
    %cst_58 = arith.constant dense<0.000000e+00> : vector<8xf32>
    %168 = vector.multi_reduction <add>, %167, %cst_58 [1] : vector<8x8xf32> to vector<8xf32>
    %169 = vector.shape_cast %168 : vector<8xf32> to vector<8x1xf32>
    %170 = tpu.reciprocal %169 : vector<8x1xf32> -> vector<8x1xf32>
    %171 = vector.broadcast %170 : vector<8x1xf32> to vector<8x8xf32>
    %172 = arith.mulf %167, %171 : vector<8x8xf32>
    %173 = vector.extract_strided_slice %122 {offsets = [0, 16], sizes = [8, 8], strides = [1, 1]} : vector<8x32xf32> to vector<8x8xf32>
    %cst_59 = arith.constant dense<0.000000e+00> : vector<8x8xf32>
    %174 = tpu.matmul %172, %173, %cst_59 {dimension_numbers = #tpu.dot_dimension_numbers<[1], [0], [0], [1], [0, 0, 1, 1], [], []>} : vector<8x8xf32>, vector<8x8xf32>, vector<8x8xf32> -> vector<8x8xf32>
    %c8_60 = arith.constant 8 : index
    %c16_61 = arith.constant 16 : index
    %175 = vector.load %arg26[%c8_60, %c16_61] : memref<16x32xf32, #tpu.memory_space<vmem>>, vector<8x8xf32>
    tpu.vector_store %arg26[%c8_60, %c16_61], %174 {strides = array<i32>} : memref<16x32xf32, #tpu.memory_space<vmem>>, vector<8x8xf32>,
    %176 = vector.extract_strided_slice %120 {offsets = [0, 24], sizes = [8, 8], strides = [1, 1]} : vector<8x32xf32> to vector<8x8xf32>
    %177 = vector.extract_strided_slice %121 {offsets = [0, 24], sizes = [8, 8], strides = [1, 1]} : vector<8x32xf32> to vector<8x8xf32>
    %cst_62 = arith.constant dense<0.000000e+00> : vector<8x8xf32>
    %178 = tpu.matmul %176, %177, %cst_62 {dimension_numbers = #tpu.dot_dimension_numbers<[1], [1], [0], [0], [0, 0, 1, 0], [], []>} : vector<8x8xf32>, vector<8x8xf32>, vector<8x8xf32> -> vector<8x8xf32>
    %179 = arith.addf %178, %124 : vector<8x8xf32>
    %cst_63 = arith.constant dense<0xFF800000> : vector<8xf32>
    %180 = vector.multi_reduction <maximumf>, %179, %cst_63 [1] : vector<8x8xf32> to vector<8xf32>
    %181 = vector.shape_cast %180 : vector<8xf32> to vector<8x1xf32>
    %182 = vector.broadcast %181 : vector<8x1xf32> to vector<8x8xf32>
    %183 = arith.subf %179, %182 : vector<8x8xf32>
    %184 = math.exp %183 : vector<8x8xf32>
    %cst_64 = arith.constant dense<0.000000e+00> : vector<8xf32>
    %185 = vector.multi_reduction <add>, %184, %cst_64 [1] : vector<8x8xf32> to vector<8xf32>
    %186 = vector.shape_cast %185 : vector<8xf32> to vector<8x1xf32>
    %187 = tpu.reciprocal %186 : vector<8x1xf32> -> vector<8x1xf32>
    %188 = vector.broadcast %187 : vector<8x1xf32> to vector<8x8xf32>
    %189 = arith.mulf %184, %188 : vector<8x8xf32>
    %190 = vector.extract_strided_slice %122 {offsets = [0, 24], sizes = [8, 8], strides = [1, 1]} : vector<8x32xf32> to vector<8x8xf32>
    %cst_65 = arith.constant dense<0.000000e+00> : vector<8x8xf32>
    %191 = tpu.matmul %189, %190, %cst_65 {dimension_numbers = #tpu.dot_dimension_numbers<[1], [0], [0], [1], [0, 0, 1, 1], [], []>} : vector<8x8xf32>, vector<8x8xf32>, vector<8x8xf32> -> vector<8x8xf32>
    %c8_66 = arith.constant 8 : index
    %c24_67 = arith.constant 24 : index
    %192 = vector.load %arg26[%c8_66, %c24_67] : memref<16x32xf32, #tpu.memory_space<vmem>>, vector<8x8xf32>
    tpu.vector_store %arg26[%c8_66, %c24_67], %191 {strides = array<i32>} : memref<16x32xf32, #tpu.memory_space<vmem>>, vector<8x8xf32>,
    %c0_68 = arith.constant 0 : index
    %c0_69 = arith.constant 0 : index
    %193 = vector.load %arg26[%c0_68, %c0_69] : memref<16x32xf32, #tpu.memory_space<vmem>>, vector<16x32xf32>
    %c0_70 = arith.constant 0 : index
    %c0_71 = arith.constant 0 : index
    %c0_72 = arith.constant 0 : index
    %194 = vector.load %arg8[%c0_70, %c0_71, %c0_72] : memref<1x32x32xf32, #tpu.memory_space<vmem>>, vector<1x32x32xf32>
    %195 = vector.shape_cast %194 : vector<1x32x32xf32> to vector<32x32xf32>
    %cst_73 = arith.constant dense<0.000000e+00> : vector<16x32xf32>
    %196 = tpu.matmul %193, %195, %cst_73 {dimension_numbers = #tpu.dot_dimension_numbers<[1], [0], [0], [1], [0, 0, 1, 1], [], []>} : vector<16x32xf32>, vector<32x32xf32>, vector<16x32xf32> -> vector<16x32xf32>
    %197 = arith.addf %7, %196 : vector<16x32xf32>
    %c0_74 = arith.constant 0 : index
    %c0_75 = arith.constant 0 : index
    %c0_76 = arith.constant 0 : index
    %198 = vector.load %arg9[%c0_74, %c0_75, %c0_76] : memref<1x1x32xf32, #tpu.memory_space<vmem>>, vector<1x1x32xf32>
    %199 = vector.shape_cast %198 : vector<1x1x32xf32> to vector<1x32xf32>
    %200 = vector.broadcast %199 : vector<1x32xf32> to vector<16x32xf32>
    %201 = arith.addf %197, %200 : vector<16x32xf32>
    %202 = vector.extract_strided_slice %4 {offsets = [1, 0], sizes = [1, 32], strides = [1, 1]} : vector<3x32xf32> to vector<1x32xf32>
    %203 = vector.extract_strided_slice %6 {offsets = [1, 0], sizes = [1, 32], strides = [1, 1]} : vector<3x32xf32> to vector<1x32xf32>
    %cst_77 = arith.constant dense<0.000000e+00> : vector<16xf32>
    %204 = vector.multi_reduction <add>, %201, %cst_77 [1] : vector<16x32xf32> to vector<16xf32>
    %205 = vector.shape_cast %204 : vector<16xf32> to vector<16x1xf32>
    %cst_78 = arith.constant 3.200000e+01 : f32
    %206 = vector.broadcast %cst_78 : f32 to vector<16x1xf32>
    %207 = arith.divf %205, %206 : vector<16x1xf32>
    %208 = vector.broadcast %207 : vector<16x1xf32> to vector<16x32xf32>
    %209 = arith.subf %201, %208 : vector<16x32xf32>
    %210 = arith.mulf %209, %209 : vector<16x32xf32>
    %cst_79 = arith.constant dense<0.000000e+00> : vector<16xf32>
    %211 = vector.multi_reduction <add>, %210, %cst_79 [1] : vector<16x32xf32> to vector<16xf32>
    %212 = vector.shape_cast %211 : vector<16xf32> to vector<16x1xf32>
    %cst_80 = arith.constant 0.0322580636 : f32
    %213 = vector.broadcast %cst_80 : f32 to vector<16x1xf32>
    %214 = arith.mulf %212, %213 : vector<16x1xf32>
    %215 = math.sqrt %214 : vector<16x1xf32>
    %cst_81 = arith.constant 9.99999997E-7 : f32
    %216 = vector.broadcast %cst_81 : f32 to vector<16x1xf32>
    %217 = arith.addf %215, %216 : vector<16x1xf32>
    %218 = tpu.reciprocal %217 : vector<16x1xf32> -> vector<16x1xf32>
    %219 = vector.broadcast %207 : vector<16x1xf32> to vector<16x32xf32>
    %220 = arith.subf %201, %219 : vector<16x32xf32>
    %221 = vector.broadcast %218 : vector<16x1xf32> to vector<16x32xf32>
    %222 = arith.mulf %220, %221 : vector<16x32xf32>
    %223 = vector.broadcast %202 : vector<1x32xf32> to vector<16x32xf32>
    %224 = arith.mulf %223, %222 : vector<16x32xf32>
    %225 = vector.broadcast %203 : vector<1x32xf32> to vector<16x32xf32>
    %226 = arith.addf %224, %225 : vector<16x32xf32>
    %c0_82 = arith.constant 0 : index
    %c0_83 = arith.constant 0 : index
    %c0_84 = arith.constant 0 : index
    %227 = vector.load %arg10[%c0_82, %c0_83, %c0_84] : memref<1x32x32xf32, #tpu.memory_space<vmem>>, vector<1x32x32xf32>
    %228 = vector.shape_cast %227 : vector<1x32x32xf32> to vector<32x32xf32>
    %cst_85 = arith.constant dense<0.000000e+00> : vector<16x32xf32>
    %229 = tpu.matmul %226, %228, %cst_85 {dimension_numbers = #tpu.dot_dimension_numbers<[1], [0], [0], [1], [0, 0, 1, 1], [], []>} : vector<16x32xf32>, vector<32x32xf32>, vector<16x32xf32> -> vector<16x32xf32>
    %c0_86 = arith.constant 0 : index
    %c0_87 = arith.constant 0 : index
    %c0_88 = arith.constant 0 : index
    %230 = vector.load %arg11[%c0_86, %c0_87, %c0_88] : memref<1x1x32xf32, #tpu.memory_space<vmem>>, vector<1x1x32xf32>
    %231 = vector.shape_cast %230 : vector<1x1x32xf32> to vector<1x32xf32>
    %232 = vector.broadcast %231 : vector<1x32xf32> to vector<16x32xf32>
    %233 = arith.addf %229, %232 : vector<16x32xf32>
    %c0_89 = arith.constant 0 : index
    %c0_90 = arith.constant 0 : index
    %234 = vector.load %arg27[%c0_89, %c0_90] : memref<32x32xf32, #tpu.memory_space<vmem>>, vector<32x32xf32>
    %c0_91 = arith.constant 0 : index
    %c0_92 = arith.constant 0 : index
    %c0_93 = arith.constant 0 : index
    %235 = vector.load %arg12[%c0_91, %c0_92, %c0_93] : memref<1x32x64xf32, #tpu.memory_space<vmem>>, vector<1x32x64xf32>
    %236 = vector.shape_cast %235 : vector<1x32x64xf32> to vector<32x64xf32>
    %cst_94 = arith.constant dense<0.000000e+00> : vector<32x64xf32>
    %237 = tpu.matmul %234, %236, %cst_94 {dimension_numbers = #tpu.dot_dimension_numbers<[1], [0], [0], [1], [0, 0, 1, 1], [], []>} : vector<32x32xf32>, vector<32x64xf32>, vector<32x64xf32> -> vector<32x64xf32>
    %c0_95 = arith.constant 0 : index
    %c0_96 = arith.constant 0 : index
    %c0_97 = arith.constant 0 : index
    %238 = vector.load %arg13[%c0_95, %c0_96, %c0_97] : memref<1x1x64xf32, #tpu.memory_space<vmem>>, vector<1x1x64xf32>
    %239 = vector.shape_cast %238 : vector<1x1x64xf32> to vector<1x64xf32>
    %240 = vector.broadcast %239 : vector<1x64xf32> to vector<32x64xf32>
    %241 = arith.addf %237, %240 : vector<32x64xf32>
    %242 = vector.extract_strided_slice %241 {offsets = [0, 0], sizes = [32, 32], strides = [1, 1]} : vector<32x64xf32> to vector<32x32xf32>
    %243 = vector.extract_strided_slice %241 {offsets = [0, 32], sizes = [32, 32], strides = [1, 1]} : vector<32x64xf32> to vector<32x32xf32>
    %cst_98 = arith.constant 0.353553385 : f32
    %244 = vector.broadcast %cst_98 : f32 to vector<16x32xf32>
    %245 = arith.mulf %233, %244 : vector<16x32xf32>
    %c0_99 = arith.constant 0 : index
    %c0_100 = arith.constant 0 : index
    %c0_101 = arith.constant 0 : index
    %246 = vector.load %arg5[%c0_99, %c0_100, %c0_101] : memref<2x1x10xbf16, #tpu.memory_space<vmem>>, vector<2x1x10xbf16>
    %247 = arith.extf %246 : vector<2x1x10xbf16> to vector<2x1x10xf32>
    %248 = vector.extract_strided_slice %245 {offsets = [0, 0], sizes = [8, 32], strides = [1, 1]} : vector<16x32xf32> to vector<8x32xf32>
    %249 = vector.extract_strided_slice %242 {offsets = [0, 0], sizes = [10, 32], strides = [1, 1]} : vector<32x32xf32> to vector<10x32xf32>
    %250 = vector.extract_strided_slice %243 {offsets = [0, 0], sizes = [10, 32], strides = [1, 1]} : vector<32x32xf32> to vector<10x32xf32>
    %251 = vector.extract_strided_slice %247 {offsets = [0, 0, 0], sizes = [1, 1, 10], strides = [1, 1, 1]} : vector<2x1x10xf32> to vector<1x1x10xf32>
    %252 = vector.shape_cast %251 : vector<1x1x10xf32> to vector<1x10xf32>
    %253 = vector.extract_strided_slice %248 {offsets = [0, 0], sizes = [8, 8], strides = [1, 1]} : vector<8x32xf32> to vector<8x8xf32>
    %254 = vector.extract_strided_slice %249 {offsets = [0, 0], sizes = [10, 8], strides = [1, 1]} : vector<10x32xf32> to vector<10x8xf32>
    %cst_102 = arith.constant dense<0.000000e+00> : vector<8x10xf32>
    %255 = tpu.matmul %253, %254, %cst_102 {dimension_numbers = #tpu.dot_dimension_numbers<[1], [1], [0], [0], [0, 0, 1, 0], [], []>} : vector<8x8xf32>, vector<10x8xf32>, vector<8x10xf32> -> vector<8x10xf32>
    %256 = vector.broadcast %252 : vector<1x10xf32> to vector<8x10xf32>
    %257 = arith.addf %255, %256 : vector<8x10xf32>
    %cst_103 = arith.constant dense<0xFF800000> : vector<8xf32>
    %258 = vector.multi_reduction <maximumf>, %257, %cst_103 [1] : vector<8x10xf32> to vector<8xf32>
    %259 = vector.shape_cast %258 : vector<8xf32> to vector<8x1xf32>
    %260 = vector.broadcast %259 : vector<8x1xf32> to vector<8x10xf32>
    %261 = arith.subf %257, %260 : vector<8x10xf32>
    %262 = math.exp %261 : vector<8x10xf32>
    %cst_104 = arith.constant dense<0.000000e+00> : vector<8xf32>
    %263 = vector.multi_reduction <add>, %262, %cst_104 [1] : vector<8x10xf32> to vector<8xf32>
    %264 = vector.shape_cast %263 : vector<8xf32> to vector<8x1xf32>
    %265 = tpu.reciprocal %264 : vector<8x1xf32> -> vector<8x1xf32>
    %266 = vector.broadcast %265 : vector<8x1xf32> to vector<8x10xf32>
    %267 = arith.mulf %262, %266 : vector<8x10xf32>
    %268 = vector.extract_strided_slice %250 {offsets = [0, 0], sizes = [10, 8], strides = [1, 1]} : vector<10x32xf32> to vector<10x8xf32>
    %cst_105 = arith.constant dense<0.000000e+00> : vector<8x8xf32>
    %269 = tpu.matmul %267, %268, %cst_105 {dimension_numbers = #tpu.dot_dimension_numbers<[1], [0], [0], [1], [0, 0, 1, 1], [], []>} : vector<8x10xf32>, vector<10x8xf32>, vector<8x8xf32> -> vector<8x8xf32>
    %c0_106 = arith.constant 0 : index
    %c0_107 = arith.constant 0 : index
    %270 = vector.load %arg26[%c0_106, %c0_107] : memref<16x32xf32, #tpu.memory_space<vmem>>, vector<8x8xf32>
    tpu.vector_store %arg26[%c0_106, %c0_107], %269 {strides = array<i32>} : memref<16x32xf32, #tpu.memory_space<vmem>>, vector<8x8xf32>,
    %271 = vector.extract_strided_slice %248 {offsets = [0, 8], sizes = [8, 8], strides = [1, 1]} : vector<8x32xf32> to vector<8x8xf32>
    %272 = vector.extract_strided_slice %249 {offsets = [0, 8], sizes = [10, 8], strides = [1, 1]} : vector<10x32xf32> to vector<10x8xf32>
    %cst_108 = arith.constant dense<0.000000e+00> : vector<8x10xf32>
    %273 = tpu.matmul %271, %272, %cst_108 {dimension_numbers = #tpu.dot_dimension_numbers<[1], [1], [0], [0], [0, 0, 1, 0], [], []>} : vector<8x8xf32>, vector<10x8xf32>, vector<8x10xf32> -> vector<8x10xf32>
    %274 = vector.broadcast %252 : vector<1x10xf32> to vector<8x10xf32>
    %275 = arith.addf %273, %274 : vector<8x10xf32>
    %cst_109 = arith.constant dense<0xFF800000> : vector<8xf32>
    %276 = vector.multi_reduction <maximumf>, %275, %cst_109 [1] : vector<8x10xf32> to vector<8xf32>
    %277 = vector.shape_cast %276 : vector<8xf32> to vector<8x1xf32>
    %278 = vector.broadcast %277 : vector<8x1xf32> to vector<8x10xf32>
    %279 = arith.subf %275, %278 : vector<8x10xf32>
    %280 = math.exp %279 : vector<8x10xf32>
    %cst_110 = arith.constant dense<0.000000e+00> : vector<8xf32>
    %281 = vector.multi_reduction <add>, %280, %cst_110 [1] : vector<8x10xf32> to vector<8xf32>
    %282 = vector.shape_cast %281 : vector<8xf32> to vector<8x1xf32>
    %283 = tpu.reciprocal %282 : vector<8x1xf32> -> vector<8x1xf32>
    %284 = vector.broadcast %283 : vector<8x1xf32> to vector<8x10xf32>
    %285 = arith.mulf %280, %284 : vector<8x10xf32>
    %286 = vector.extract_strided_slice %250 {offsets = [0, 8], sizes = [10, 8], strides = [1, 1]} : vector<10x32xf32> to vector<10x8xf32>
    %cst_111 = arith.constant dense<0.000000e+00> : vector<8x8xf32>
    %287 = tpu.matmul %285, %286, %cst_111 {dimension_numbers = #tpu.dot_dimension_numbers<[1], [0], [0], [1], [0, 0, 1, 1], [], []>} : vector<8x10xf32>, vector<10x8xf32>, vector<8x8xf32> -> vector<8x8xf32>
    %c0_112 = arith.constant 0 : index
    %c8_113 = arith.constant 8 : index
    %288 = vector.load %arg26[%c0_112, %c8_113] : memref<16x32xf32, #tpu.memory_space<vmem>>, vector<8x8xf32>
    tpu.vector_store %arg26[%c0_112, %c8_113], %287 {strides = array<i32>} : memref<16x32xf32, #tpu.memory_space<vmem>>, vector<8x8xf32>,
    %289 = vector.extract_strided_slice %248 {offsets = [0, 16], sizes = [8, 8], strides = [1, 1]} : vector<8x32xf32> to vector<8x8xf32>
    %290 = vector.extract_strided_slice %249 {offsets = [0, 16], sizes = [10, 8], strides = [1, 1]} : vector<10x32xf32> to vector<10x8xf32>
    %cst_114 = arith.constant dense<0.000000e+00> : vector<8x10xf32>
    %291 = tpu.matmul %289, %290, %cst_114 {dimension_numbers = #tpu.dot_dimension_numbers<[1], [1], [0], [0], [0, 0, 1, 0], [], []>} : vector<8x8xf32>, vector<10x8xf32>, vector<8x10xf32> -> vector<8x10xf32>
    %292 = vector.broadcast %252 : vector<1x10xf32> to vector<8x10xf32>
    %293 = arith.addf %291, %292 : vector<8x10xf32>
    %cst_115 = arith.constant dense<0xFF800000> : vector<8xf32>
    %294 = vector.multi_reduction <maximumf>, %293, %cst_115 [1] : vector<8x10xf32> to vector<8xf32>
    %295 = vector.shape_cast %294 : vector<8xf32> to vector<8x1xf32>
    %296 = vector.broadcast %295 : vector<8x1xf32> to vector<8x10xf32>
    %297 = arith.subf %293, %296 : vector<8x10xf32>
    %298 = math.exp %297 : vector<8x10xf32>
    %cst_116 = arith.constant dense<0.000000e+00> : vector<8xf32>
    %299 = vector.multi_reduction <add>, %298, %cst_116 [1] : vector<8x10xf32> to vector<8xf32>
    %300 = vector.shape_cast %299 : vector<8xf32> to vector<8x1xf32>
    %301 = tpu.reciprocal %300 : vector<8x1xf32> -> vector<8x1xf32>
    %302 = vector.broadcast %301 : vector<8x1xf32> to vector<8x10xf32>
    %303 = arith.mulf %298, %302 : vector<8x10xf32>
    %304 = vector.extract_strided_slice %250 {offsets = [0, 16], sizes = [10, 8], strides = [1, 1]} : vector<10x32xf32> to vector<10x8xf32>
    %cst_117 = arith.constant dense<0.000000e+00> : vector<8x8xf32>
    %305 = tpu.matmul %303, %304, %cst_117 {dimension_numbers = #tpu.dot_dimension_numbers<[1], [0], [0], [1], [0, 0, 1, 1], [], []>} : vector<8x10xf32>, vector<10x8xf32>, vector<8x8xf32> -> vector<8x8xf32>
    %c0_118 = arith.constant 0 : index
    %c16_119 = arith.constant 16 : index
    %306 = vector.load %arg26[%c0_118, %c16_119] : memref<16x32xf32, #tpu.memory_space<vmem>>, vector<8x8xf32>
    tpu.vector_store %arg26[%c0_118, %c16_119], %305 {strides = array<i32>} : memref<16x32xf32, #tpu.memory_space<vmem>>, vector<8x8xf32>,
    %307 = vector.extract_strided_slice %248 {offsets = [0, 24], sizes = [8, 8], strides = [1, 1]} : vector<8x32xf32> to vector<8x8xf32>
    %308 = vector.extract_strided_slice %249 {offsets = [0, 24], sizes = [10, 8], strides = [1, 1]} : vector<10x32xf32> to vector<10x8xf32>
    %cst_120 = arith.constant dense<0.000000e+00> : vector<8x10xf32>
    %309 = tpu.matmul %307, %308, %cst_120 {dimension_numbers = #tpu.dot_dimension_numbers<[1], [1], [0], [0], [0, 0, 1, 0], [], []>} : vector<8x8xf32>, vector<10x8xf32>, vector<8x10xf32> -> vector<8x10xf32>
    %310 = vector.broadcast %252 : vector<1x10xf32> to vector<8x10xf32>
    %311 = arith.addf %309, %310 : vector<8x10xf32>
    %cst_121 = arith.constant dense<0xFF800000> : vector<8xf32>
    %312 = vector.multi_reduction <maximumf>, %311, %cst_121 [1] : vector<8x10xf32> to vector<8xf32>
    %313 = vector.shape_cast %312 : vector<8xf32> to vector<8x1xf32>
    %314 = vector.broadcast %313 : vector<8x1xf32> to vector<8x10xf32>
    %315 = arith.subf %311, %314 : vector<8x10xf32>
    %316 = math.exp %315 : vector<8x10xf32>
    %cst_122 = arith.constant dense<0.000000e+00> : vector<8xf32>
    %317 = vector.multi_reduction <add>, %316, %cst_122 [1] : vector<8x10xf32> to vector<8xf32>
    %318 = vector.shape_cast %317 : vector<8xf32> to vector<8x1xf32>
    %319 = tpu.reciprocal %318 : vector<8x1xf32> -> vector<8x1xf32>
    %320 = vector.broadcast %319 : vector<8x1xf32> to vector<8x10xf32>
    %321 = arith.mulf %316, %320 : vector<8x10xf32>
    %322 = vector.extract_strided_slice %250 {offsets = [0, 24], sizes = [10, 8], strides = [1, 1]} : vector<10x32xf32> to vector<10x8xf32>
    %cst_123 = arith.constant dense<0.000000e+00> : vector<8x8xf32>
    %323 = tpu.matmul %321, %322, %cst_123 {dimension_numbers = #tpu.dot_dimension_numbers<[1], [0], [0], [1], [0, 0, 1, 1], [], []>} : vector<8x10xf32>, vector<10x8xf32>, vector<8x8xf32> -> vector<8x8xf32>
    %c0_124 = arith.constant 0 : index
    %c24_125 = arith.constant 24 : index
    %324 = vector.load %arg26[%c0_124, %c24_125] : memref<16x32xf32, #tpu.memory_space<vmem>>, vector<8x8xf32>
    tpu.vector_store %arg26[%c0_124, %c24_125], %323 {strides = array<i32>} : memref<16x32xf32, #tpu.memory_space<vmem>>, vector<8x8xf32>,
    %325 = vector.extract_strided_slice %245 {offsets = [8, 0], sizes = [8, 32], strides = [1, 1]} : vector<16x32xf32> to vector<8x32xf32>
    %326 = vector.extract_strided_slice %242 {offsets = [16, 0], sizes = [10, 32], strides = [1, 1]} : vector<32x32xf32> to vector<10x32xf32>
    %327 = vector.extract_strided_slice %243 {offsets = [16, 0], sizes = [10, 32], strides = [1, 1]} : vector<32x32xf32> to vector<10x32xf32>
    %328 = vector.extract_strided_slice %247 {offsets = [1, 0, 0], sizes = [1, 1, 10], strides = [1, 1, 1]} : vector<2x1x10xf32> to vector<1x1x10xf32>
    %329 = vector.shape_cast %328 : vector<1x1x10xf32> to vector<1x10xf32>
    %330 = vector.extract_strided_slice %325 {offsets = [0, 0], sizes = [8, 8], strides = [1, 1]} : vector<8x32xf32> to vector<8x8xf32>
    %331 = vector.extract_strided_slice %326 {offsets = [0, 0], sizes = [10, 8], strides = [1, 1]} : vector<10x32xf32> to vector<10x8xf32>
    %cst_126 = arith.constant dense<0.000000e+00> : vector<8x10xf32>
    %332 = tpu.matmul %330, %331, %cst_126 {dimension_numbers = #tpu.dot_dimension_numbers<[1], [1], [0], [0], [0, 0, 1, 0], [], []>} : vector<8x8xf32>, vector<10x8xf32>, vector<8x10xf32> -> vector<8x10xf32>
    %333 = vector.broadcast %329 : vector<1x10xf32> to vector<8x10xf32>
    %334 = arith.addf %332, %333 : vector<8x10xf32>
    %cst_127 = arith.constant dense<0xFF800000> : vector<8xf32>
    %335 = vector.multi_reduction <maximumf>, %334, %cst_127 [1] : vector<8x10xf32> to vector<8xf32>
    %336 = vector.shape_cast %335 : vector<8xf32> to vector<8x1xf32>
    %337 = vector.broadcast %336 : vector<8x1xf32> to vector<8x10xf32>
    %338 = arith.subf %334, %337 : vector<8x10xf32>
    %339 = math.exp %338 : vector<8x10xf32>
    %cst_128 = arith.constant dense<0.000000e+00> : vector<8xf32>
    %340 = vector.multi_reduction <add>, %339, %cst_128 [1] : vector<8x10xf32> to vector<8xf32>
    %341 = vector.shape_cast %340 : vector<8xf32> to vector<8x1xf32>
    %342 = tpu.reciprocal %341 : vector<8x1xf32> -> vector<8x1xf32>
    %343 = vector.broadcast %342 : vector<8x1xf32> to vector<8x10xf32>
    %344 = arith.mulf %339, %343 : vector<8x10xf32>
    %345 = vector.extract_strided_slice %327 {offsets = [0, 0], sizes = [10, 8], strides = [1, 1]} : vector<10x32xf32> to vector<10x8xf32>
    %cst_129 = arith.constant dense<0.000000e+00> : vector<8x8xf32>
    %346 = tpu.matmul %344, %345, %cst_129 {dimension_numbers = #tpu.dot_dimension_numbers<[1], [0], [0], [1], [0, 0, 1, 1], [], []>} : vector<8x10xf32>, vector<10x8xf32>, vector<8x8xf32> -> vector<8x8xf32>
    %c8_130 = arith.constant 8 : index
    %c0_131 = arith.constant 0 : index
    %347 = vector.load %arg26[%c8_130, %c0_131] : memref<16x32xf32, #tpu.memory_space<vmem>>, vector<8x8xf32>
    tpu.vector_store %arg26[%c8_130, %c0_131], %346 {strides = array<i32>} : memref<16x32xf32, #tpu.memory_space<vmem>>, vector<8x8xf32>,
    %348 = vector.extract_strided_slice %325 {offsets = [0, 8], sizes = [8, 8], strides = [1, 1]} : vector<8x32xf32> to vector<8x8xf32>
    %349 = vector.extract_strided_slice %326 {offsets = [0, 8], sizes = [10, 8], strides = [1, 1]} : vector<10x32xf32> to vector<10x8xf32>
    %cst_132 = arith.constant dense<0.000000e+00> : vector<8x10xf32>
    %350 = tpu.matmul %348, %349, %cst_132 {dimension_numbers = #tpu.dot_dimension_numbers<[1], [1], [0], [0], [0, 0, 1, 0], [], []>} : vector<8x8xf32>, vector<10x8xf32>, vector<8x10xf32> -> vector<8x10xf32>
    %351 = vector.broadcast %329 : vector<1x10xf32> to vector<8x10xf32>
    %352 = arith.addf %350, %351 : vector<8x10xf32>
    %cst_133 = arith.constant dense<0xFF800000> : vector<8xf32>
    %353 = vector.multi_reduction <maximumf>, %352, %cst_133 [1] : vector<8x10xf32> to vector<8xf32>
    %354 = vector.shape_cast %353 : vector<8xf32> to vector<8x1xf32>
    %355 = vector.broadcast %354 : vector<8x1xf32> to vector<8x10xf32>
    %356 = arith.subf %352, %355 : vector<8x10xf32>
    %357 = math.exp %356 : vector<8x10xf32>
    %cst_134 = arith.constant dense<0.000000e+00> : vector<8xf32>
    %358 = vector.multi_reduction <add>, %357, %cst_134 [1] : vector<8x10xf32> to vector<8xf32>
    %359 = vector.shape_cast %358 : vector<8xf32> to vector<8x1xf32>
    %360 = tpu.reciprocal %359 : vector<8x1xf32> -> vector<8x1xf32>
    %361 = vector.broadcast %360 : vector<8x1xf32> to vector<8x10xf32>
    %362 = arith.mulf %357, %361 : vector<8x10xf32>
    %363 = vector.extract_strided_slice %327 {offsets = [0, 8], sizes = [10, 8], strides = [1, 1]} : vector<10x32xf32> to vector<10x8xf32>
    %cst_135 = arith.constant dense<0.000000e+00> : vector<8x8xf32>
    %364 = tpu.matmul %362, %363, %cst_135 {dimension_numbers = #tpu.dot_dimension_numbers<[1], [0], [0], [1], [0, 0, 1, 1], [], []>} : vector<8x10xf32>, vector<10x8xf32>, vector<8x8xf32> -> vector<8x8xf32>
    %c8_136 = arith.constant 8 : index
    %c8_137 = arith.constant 8 : index
    %365 = vector.load %arg26[%c8_136, %c8_137] : memref<16x32xf32, #tpu.memory_space<vmem>>, vector<8x8xf32>
    tpu.vector_store %arg26[%c8_136, %c8_137], %364 {strides = array<i32>} : memref<16x32xf32, #tpu.memory_space<vmem>>, vector<8x8xf32>,
    %366 = vector.extract_strided_slice %325 {offsets = [0, 16], sizes = [8, 8], strides = [1, 1]} : vector<8x32xf32> to vector<8x8xf32>
    %367 = vector.extract_strided_slice %326 {offsets = [0, 16], sizes = [10, 8], strides = [1, 1]} : vector<10x32xf32> to vector<10x8xf32>
    %cst_138 = arith.constant dense<0.000000e+00> : vector<8x10xf32>
    %368 = tpu.matmul %366, %367, %cst_138 {dimension_numbers = #tpu.dot_dimension_numbers<[1], [1], [0], [0], [0, 0, 1, 0], [], []>} : vector<8x8xf32>, vector<10x8xf32>, vector<8x10xf32> -> vector<8x10xf32>
    %369 = vector.broadcast %329 : vector<1x10xf32> to vector<8x10xf32>
    %370 = arith.addf %368, %369 : vector<8x10xf32>
    %cst_139 = arith.constant dense<0xFF800000> : vector<8xf32>
    %371 = vector.multi_reduction <maximumf>, %370, %cst_139 [1] : vector<8x10xf32> to vector<8xf32>
    %372 = vector.shape_cast %371 : vector<8xf32> to vector<8x1xf32>
    %373 = vector.broadcast %372 : vector<8x1xf32> to vector<8x10xf32>
    %374 = arith.subf %370, %373 : vector<8x10xf32>
    %375 = math.exp %374 : vector<8x10xf32>
    %cst_140 = arith.constant dense<0.000000e+00> : vector<8xf32>
    %376 = vector.multi_reduction <add>, %375, %cst_140 [1] : vector<8x10xf32> to vector<8xf32>
    %377 = vector.shape_cast %376 : vector<8xf32> to vector<8x1xf32>
    %378 = tpu.reciprocal %377 : vector<8x1xf32> -> vector<8x1xf32>
    %379 = vector.broadcast %378 : vector<8x1xf32> to vector<8x10xf32>
    %380 = arith.mulf %375, %379 : vector<8x10xf32>
    %381 = vector.extract_strided_slice %327 {offsets = [0, 16], sizes = [10, 8], strides = [1, 1]} : vector<10x32xf32> to vector<10x8xf32>
    %cst_141 = arith.constant dense<0.000000e+00> : vector<8x8xf32>
    %382 = tpu.matmul %380, %381, %cst_141 {dimension_numbers = #tpu.dot_dimension_numbers<[1], [0], [0], [1], [0, 0, 1, 1], [], []>} : vector<8x10xf32>, vector<10x8xf32>, vector<8x8xf32> -> vector<8x8xf32>
    %c8_142 = arith.constant 8 : index
    %c16_143 = arith.constant 16 : index
    %383 = vector.load %arg26[%c8_142, %c16_143] : memref<16x32xf32, #tpu.memory_space<vmem>>, vector<8x8xf32>
    tpu.vector_store %arg26[%c8_142, %c16_143], %382 {strides = array<i32>} : memref<16x32xf32, #tpu.memory_space<vmem>>, vector<8x8xf32>,
    %384 = vector.extract_strided_slice %325 {offsets = [0, 24], sizes = [8, 8], strides = [1, 1]} : vector<8x32xf32> to vector<8x8xf32>
    %385 = vector.extract_strided_slice %326 {offsets = [0, 24], sizes = [10, 8], strides = [1, 1]} : vector<10x32xf32> to vector<10x8xf32>
    %cst_144 = arith.constant dense<0.000000e+00> : vector<8x10xf32>
    %386 = tpu.matmul %384, %385, %cst_144 {dimension_numbers = #tpu.dot_dimension_numbers<[1], [1], [0], [0], [0, 0, 1, 0], [], []>} : vector<8x8xf32>, vector<10x8xf32>, vector<8x10xf32> -> vector<8x10xf32>
    %387 = vector.broadcast %329 : vector<1x10xf32> to vector<8x10xf32>
    %388 = arith.addf %386, %387 : vector<8x10xf32>
    %cst_145 = arith.constant dense<0xFF800000> : vector<8xf32>
    %389 = vector.multi_reduction <maximumf>, %388, %cst_145 [1] : vector<8x10xf32> to vector<8xf32>
    %390 = vector.shape_cast %389 : vector<8xf32> to vector<8x1xf32>
    %391 = vector.broadcast %390 : vector<8x1xf32> to vector<8x10xf32>
    %392 = arith.subf %388, %391 : vector<8x10xf32>
    %393 = math.exp %392 : vector<8x10xf32>
    %cst_146 = arith.constant dense<0.000000e+00> : vector<8xf32>
    %394 = vector.multi_reduction <add>, %393, %cst_146 [1] : vector<8x10xf32> to vector<8xf32>
    %395 = vector.shape_cast %394 : vector<8xf32> to vector<8x1xf32>
    %396 = tpu.reciprocal %395 : vector<8x1xf32> -> vector<8x1xf32>
    %397 = vector.broadcast %396 : vector<8x1xf32> to vector<8x10xf32>
    %398 = arith.mulf %393, %397 : vector<8x10xf32>
    %399 = vector.extract_strided_slice %327 {offsets = [0, 24], sizes = [10, 8], strides = [1, 1]} : vector<10x32xf32> to vector<10x8xf32>
    %cst_147 = arith.constant dense<0.000000e+00> : vector<8x8xf32>
    %400 = tpu.matmul %398, %399, %cst_147 {dimension_numbers = #tpu.dot_dimension_numbers<[1], [0], [0], [1], [0, 0, 1, 1], [], []>} : vector<8x10xf32>, vector<10x8xf32>, vector<8x8xf32> -> vector<8x8xf32>
    %c8_148 = arith.constant 8 : index
    %c24_149 = arith.constant 24 : index
    %401 = vector.load %arg26[%c8_148, %c24_149] : memref<16x32xf32, #tpu.memory_space<vmem>>, vector<8x8xf32>
    tpu.vector_store %arg26[%c8_148, %c24_149], %400 {strides = array<i32>} : memref<16x32xf32, #tpu.memory_space<vmem>>, vector<8x8xf32>,
    %c0_150 = arith.constant 0 : index
    %c0_151 = arith.constant 0 : index
    %402 = vector.load %arg26[%c0_150, %c0_151] : memref<16x32xf32, #tpu.memory_space<vmem>>, vector<16x32xf32>
    %c0_152 = arith.constant 0 : index
    %c0_153 = arith.constant 0 : index
    %c0_154 = arith.constant 0 : index
    %403 = vector.load %arg14[%c0_152, %c0_153, %c0_154] : memref<1x32x32xf32, #tpu.memory_space<vmem>>, vector<1x32x32xf32>
    %404 = vector.shape_cast %403 : vector<1x32x32xf32> to vector<32x32xf32>
    %cst_155 = arith.constant dense<0.000000e+00> : vector<16x32xf32>
    %405 = tpu.matmul %402, %404, %cst_155 {dimension_numbers = #tpu.dot_dimension_numbers<[1], [0], [0], [1], [0, 0, 1, 1], [], []>} : vector<16x32xf32>, vector<32x32xf32>, vector<16x32xf32> -> vector<16x32xf32>
    %406 = arith.addf %201, %405 : vector<16x32xf32>
    %c0_156 = arith.constant 0 : index
    %c0_157 = arith.constant 0 : index
    %c0_158 = arith.constant 0 : index
    %407 = vector.load %arg15[%c0_156, %c0_157, %c0_158] : memref<1x1x32xf32, #tpu.memory_space<vmem>>, vector<1x1x32xf32>
    %408 = vector.shape_cast %407 : vector<1x1x32xf32> to vector<1x32xf32>
    %409 = vector.broadcast %408 : vector<1x32xf32> to vector<16x32xf32>
    %410 = arith.addf %406, %409 : vector<16x32xf32>
    %411 = vector.extract_strided_slice %4 {offsets = [2, 0], sizes = [1, 32], strides = [1, 1]} : vector<3x32xf32> to vector<1x32xf32>
    %412 = vector.extract_strided_slice %6 {offsets = [2, 0], sizes = [1, 32], strides = [1, 1]} : vector<3x32xf32> to vector<1x32xf32>
    %cst_159 = arith.constant dense<0.000000e+00> : vector<16xf32>
    %413 = vector.multi_reduction <add>, %410, %cst_159 [1] : vector<16x32xf32> to vector<16xf32>
    %414 = vector.shape_cast %413 : vector<16xf32> to vector<16x1xf32>
    %cst_160 = arith.constant 3.200000e+01 : f32
    %415 = vector.broadcast %cst_160 : f32 to vector<16x1xf32>
    %416 = arith.divf %414, %415 : vector<16x1xf32>
    %417 = vector.broadcast %416 : vector<16x1xf32> to vector<16x32xf32>
    %418 = arith.subf %410, %417 : vector<16x32xf32>
    %419 = arith.mulf %418, %418 : vector<16x32xf32>
    %cst_161 = arith.constant dense<0.000000e+00> : vector<16xf32>
    %420 = vector.multi_reduction <add>, %419, %cst_161 [1] : vector<16x32xf32> to vector<16xf32>
    %421 = vector.shape_cast %420 : vector<16xf32> to vector<16x1xf32>
    %cst_162 = arith.constant 0.0322580636 : f32
    %422 = vector.broadcast %cst_162 : f32 to vector<16x1xf32>
    %423 = arith.mulf %421, %422 : vector<16x1xf32>
    %424 = math.sqrt %423 : vector<16x1xf32>
    %cst_163 = arith.constant 9.99999997E-7 : f32
    %425 = vector.broadcast %cst_163 : f32 to vector<16x1xf32>
    %426 = arith.addf %424, %425 : vector<16x1xf32>
    %427 = tpu.reciprocal %426 : vector<16x1xf32> -> vector<16x1xf32>
    %428 = vector.broadcast %416 : vector<16x1xf32> to vector<16x32xf32>
    %429 = arith.subf %410, %428 : vector<16x32xf32>
    %430 = vector.broadcast %427 : vector<16x1xf32> to vector<16x32xf32>
    %431 = arith.mulf %429, %430 : vector<16x32xf32>
    %432 = vector.broadcast %411 : vector<1x32xf32> to vector<16x32xf32>
    %433 = arith.mulf %432, %431 : vector<16x32xf32>
    %434 = vector.broadcast %412 : vector<1x32xf32> to vector<16x32xf32>
    %435 = arith.addf %433, %434 : vector<16x32xf32>
    %c0_164 = arith.constant 0 : index
    %c0_165 = arith.constant 0 : index
    %c0_166 = arith.constant 0 : index
    %436 = vector.load %arg16[%c0_164, %c0_165, %c0_166] : memref<1x32x64xf32, #tpu.memory_space<vmem>>, vector<1x32x64xf32>
    %437 = vector.shape_cast %436 : vector<1x32x64xf32> to vector<32x64xf32>
    %cst_167 = arith.constant dense<0.000000e+00> : vector<16x64xf32>
    %438 = tpu.matmul %435, %437, %cst_167 {dimension_numbers = #tpu.dot_dimension_numbers<[1], [0], [0], [1], [0, 0, 1, 1], [], []>} : vector<16x32xf32>, vector<32x64xf32>, vector<16x64xf32> -> vector<16x64xf32>
    %c0_168 = arith.constant 0 : index
    %c0_169 = arith.constant 0 : index
    %c0_170 = arith.constant 0 : index
    %439 = vector.load %arg17[%c0_168, %c0_169, %c0_170] : memref<1x1x64xf32, #tpu.memory_space<vmem>>, vector<1x1x64xf32>
    %440 = vector.shape_cast %439 : vector<1x1x64xf32> to vector<1x64xf32>
    %441 = vector.broadcast %440 : vector<1x64xf32> to vector<16x64xf32>
    %442 = arith.addf %438, %441 : vector<16x64xf32>
    %cst_171 = arith.constant 0.000000e+00 : f32
    %443 = vector.broadcast %cst_171 : f32 to vector<16x64xf32>
    %444 = arith.maximumf %442, %443 : vector<16x64xf32>
    %c0_172 = arith.constant 0 : index
    %c0_173 = arith.constant 0 : index
    %c0_174 = arith.constant 0 : index
    %445 = vector.load %arg18[%c0_172, %c0_173, %c0_174] : memref<1x64x32xf32, #tpu.memory_space<vmem>>, vector<1x64x32xf32>
    %446 = vector.shape_cast %445 : vector<1x64x32xf32> to vector<64x32xf32>
    %cst_175 = arith.constant dense<0.000000e+00> : vector<16x32xf32>
    %447 = tpu.matmul %444, %446, %cst_175 {dimension_numbers = #tpu.dot_dimension_numbers<[1], [0], [0], [1], [0, 0, 1, 1], [], []>} : vector<16x64xf32>, vector<64x32xf32>, vector<16x32xf32> -> vector<16x32xf32>
    %448 = arith.addf %410, %447 : vector<16x32xf32>
    %c0_176 = arith.constant 0 : index
    %c0_177 = arith.constant 0 : index
    %c0_178 = arith.constant 0 : index
    %449 = vector.load %arg19[%c0_176, %c0_177, %c0_178] : memref<1x1x32xf32, #tpu.memory_space<vmem>>, vector<1x1x32xf32>
    %450 = vector.shape_cast %449 : vector<1x1x32xf32> to vector<1x32xf32>
    %451 = vector.broadcast %450 : vector<1x32xf32> to vector<16x32xf32>
    %452 = arith.addf %448, %451 : vector<16x32xf32>
    %c0_179 = arith.constant 0 : index
    %c0_180 = arith.constant 0 : index
    %453 = vector.load %arg25[%c0_179, %c0_180] : memref<16x32xf32, #tpu.memory_space<vmem>>, vector<16x32xf32>
    tpu.vector_store %arg25[%c0_179, %c0_180], %452 {strides = array<i32>} : memref<16x32xf32, #tpu.memory_space<vmem>>, vector<16x32xf32>,
    %c1_i32 = arith.constant 1 : i32
    %454 = arith.cmpi eq, %arg1, %c1_i32 : i32
    %455 = arith.extui %454 : i1 to i32
    %c0_i32_181 = arith.constant 0 : i32
    %456 = arith.cmpi ne, %455, %c0_i32_181 : i32
    scf.if %456 {
      %c0_182 = arith.constant 0 : index
      %c0_183 = arith.constant 0 : index
      %457 = vector.load %arg22[%c0_182, %c0_183] : memref<1x32xf32, #tpu.memory_space<vmem>>, vector<1x32xf32>
      %c0_184 = arith.constant 0 : index
      %c0_185 = arith.constant 0 : index
      %458 = vector.load %arg23[%c0_184, %c0_185] : memref<1x32xf32, #tpu.memory_space<vmem>>, vector<1x32xf32>
      %cst_186 = arith.constant dense<0.000000e+00> : vector<16xf32>
      %459 = vector.multi_reduction <add>, %452, %cst_186 [1] : vector<16x32xf32> to vector<16xf32>
      %460 = vector.shape_cast %459 : vector<16xf32> to vector<16x1xf32>
      %cst_187 = arith.constant 3.200000e+01 : f32
      %461 = vector.broadcast %cst_187 : f32 to vector<16x1xf32>
      %462 = arith.divf %460, %461 : vector<16x1xf32>
      %463 = vector.broadcast %462 : vector<16x1xf32> to vector<16x32xf32>
      %464 = arith.subf %452, %463 : vector<16x32xf32>
      %465 = arith.mulf %464, %464 : vector<16x32xf32>
      %cst_188 = arith.constant dense<0.000000e+00> : vector<16xf32>
      %466 = vector.multi_reduction <add>, %465, %cst_188 [1] : vector<16x32xf32> to vector<16xf32>
      %467 = vector.shape_cast %466 : vector<16xf32> to vector<16x1xf32>
      %cst_189 = arith.constant 0.0322580636 : f32
      %468 = vector.broadcast %cst_189 : f32 to vector<16x1xf32>
      %469 = arith.mulf %467, %468 : vector<16x1xf32>
      %470 = math.sqrt %469 : vector<16x1xf32>
      %cst_190 = arith.constant 9.99999997E-7 : f32
      %471 = vector.broadcast %cst_190 : f32 to vector<16x1xf32>
      %472 = arith.addf %470, %471 : vector<16x1xf32>
      %473 = tpu.reciprocal %472 : vector<16x1xf32> -> vector<16x1xf32>
      %474 = vector.broadcast %462 : vector<16x1xf32> to vector<16x32xf32>
      %475 = arith.subf %452, %474 : vector<16x32xf32>
      %476 = vector.broadcast %473 : vector<16x1xf32> to vector<16x32xf32>
      %477 = arith.mulf %475, %476 : vector<16x32xf32>
      %478 = vector.broadcast %457 : vector<1x32xf32> to vector<16x32xf32>
      %479 = arith.mulf %478, %477 : vector<16x32xf32>
      %480 = vector.broadcast %458 : vector<1x32xf32> to vector<16x32xf32>
      %481 = arith.addf %479, %480 : vector<16x32xf32>
      %482 = vector.extract_strided_slice %481 {offsets = [0, 0], sizes = [8, 32], strides = [1, 1]} : vector<16x32xf32> to vector<8x32xf32>
      %c0_191 = arith.constant 0 : index
      %c0_192 = arith.constant 0 : index
      %c0_193 = arith.constant 0 : index
      %483 = vector.load %arg24[%c0_191, %c0_192, %c0_193] : memref<2x8x32xf32, #tpu.memory_space<vmem>>, vector<1x8x32xf32>
      %484 = vector.shape_cast %483 : vector<1x8x32xf32> to vector<8x32xf32>
      %485 = vector.shape_cast %482 : vector<8x32xf32> to vector<1x8x32xf32>
      tpu.vector_store %arg24[%c0_191, %c0_192, %c0_193], %485 {strides = array<i32>} : memref<2x8x32xf32, #tpu.memory_space<vmem>>, vector<1x8x32xf32>,
      %486 = vector.extract_strided_slice %481 {offsets = [8, 0], sizes = [8, 32], strides = [1, 1]} : vector<16x32xf32> to vector<8x32xf32>
      %c1 = arith.constant 1 : index
      %c0_194 = arith.constant 0 : index
      %c0_195 = arith.constant 0 : index
      %487 = vector.load %arg24[%c1, %c0_194, %c0_195] : memref<2x8x32xf32, #tpu.memory_space<vmem>>, vector<1x8x32xf32>
      %488 = vector.shape_cast %487 : vector<1x8x32xf32> to vector<8x32xf32>
      %489 = vector.shape_cast %486 : vector<8x32xf32> to vector<1x8x32xf32>
      tpu.vector_store %arg24[%c1, %c0_194, %c0_195], %489 {strides = array<i32>} : memref<2x8x32xf32, #tpu.memory_space<vmem>>, vector<1x8x32xf32>,
    } else {
    }
    return
  }
  func.func @transform_0(%arg0: i32, %arg1: i32) -> (i32, i32, i32) {
    %c0_i32 = arith.constant 0 : i32
    %c0_i32_0 = arith.constant 0 : i32
    %c0_i32_1 = arith.constant 0 : i32
    return %arg0, %c0_i32, %c0_i32_0 : i32, i32, i32
  }
  func.func @transform_1(%arg0: i32, %arg1: i32) -> (i32, i32, i32) {
    %c0_i32 = arith.constant 0 : i32
    %c0_i32_0 = arith.constant 0 : i32
    %c0_i32_1 = arith.constant 0 : i32
    return %arg0, %c0_i32, %c0_i32_0 : i32, i32, i32
  }
  func.func @transform_2(%arg0: i32, %arg1: i32) -> (i32, i32, i32) {
    %c0_i32 = arith.constant 0 : i32
    %c0_i32_0 = arith.constant 0 : i32
    %c0_i32_1 = arith.constant 0 : i32
    return %arg0, %c0_i32, %c0_i32_0 : i32, i32, i32
  }
  func.func @transform_3(%arg0: i32, %arg1: i32) -> (i32, i32, i32) {
    %c0_i32 = arith.constant 0 : i32
    %c0_i32_0 = arith.constant 0 : i32
    %c0_i32_1 = arith.constant 0 : i32
    return %arg0, %c0_i32, %c0_i32_0 : i32, i32, i32
  }
  func.func @transform_4(%arg0: i32, %arg1: i32) -> (i32, i32, i32) {
    %c0_i32 = arith.constant 0 : i32
    %c0_i32_0 = arith.constant 0 : i32
    %c0_i32_1 = arith.constant 0 : i32
    return %arg1, %c0_i32, %c0_i32_0 : i32, i32, i32
  }
  func.func @transform_5(%arg0: i32, %arg1: i32) -> (i32, i32, i32) {
    %c0_i32 = arith.constant 0 : i32
    %c0_i32_0 = arith.constant 0 : i32
    %c0_i32_1 = arith.constant 0 : i32
    return %arg1, %c0_i32, %c0_i32_0 : i32, i32, i32
  }
  func.func @transform_6(%arg0: i32, %arg1: i32) -> (i32, i32, i32) {
    %c0_i32 = arith.constant 0 : i32
    %c0_i32_0 = arith.constant 0 : i32
    %c0_i32_1 = arith.constant 0 : i32
    return %arg1, %c0_i32, %c0_i32_0 : i32, i32, i32
  }
  func.func @transform_7(%arg0: i32, %arg1: i32) -> (i32, i32, i32) {
    %c0_i32 = arith.constant 0 : i32
    %c0_i32_0 = arith.constant 0 : i32
    %c0_i32_1 = arith.constant 0 : i32
    return %arg1, %c0_i32, %c0_i32_0 : i32, i32, i32
  }
  func.func @transform_8(%arg0: i32, %arg1: i32) -> (i32, i32, i32) {
    %c0_i32 = arith.constant 0 : i32
    %c0_i32_0 = arith.constant 0 : i32
    %c0_i32_1 = arith.constant 0 : i32
    return %arg1, %c0_i32, %c0_i32_0 : i32, i32, i32
  }
  func.func @transform_9(%arg0: i32, %arg1: i32) -> (i32, i32, i32) {
    %c0_i32 = arith.constant 0 : i32
    %c0_i32_0 = arith.constant 0 : i32
    %c0_i32_1 = arith.constant 0 : i32
    return %arg1, %c0_i32, %c0_i32_0 : i32, i32, i32
  }
  func.func @transform_10(%arg0: i32, %arg1: i32) -> (i32, i32, i32) {
    %c0_i32 = arith.constant 0 : i32
    %c0_i32_0 = arith.constant 0 : i32
    %c0_i32_1 = arith.constant 0 : i32
    return %arg1, %c0_i32, %c0_i32_0 : i32, i32, i32
  }
  func.func @transform_11(%arg0: i32, %arg1: i32) -> (i32, i32, i32) {
    %c0_i32 = arith.constant 0 : i32
    %c0_i32_0 = arith.constant 0 : i32
    %c0_i32_1 = arith.constant 0 : i32
    return %arg1, %c0_i32, %c0_i32_0 : i32, i32, i32
  }
  func.func @transform_12(%arg0: i32, %arg1: i32) -> (i32, i32, i32) {
    %c0_i32 = arith.constant 0 : i32
    %c0_i32_0 = arith.constant 0 : i32
    %c0_i32_1 = arith.constant 0 : i32
    return %arg1, %c0_i32, %c0_i32_0 : i32, i32, i32
  }
  func.func @transform_13(%arg0: i32, %arg1: i32) -> (i32, i32, i32) {
    %c0_i32 = arith.constant 0 : i32
    %c0_i32_0 = arith.constant 0 : i32
    %c0_i32_1 = arith.constant 0 : i32
    return %arg1, %c0_i32, %c0_i32_0 : i32, i32, i32
  }
  func.func @transform_14(%arg0: i32, %arg1: i32) -> (i32, i32, i32) {
    %c0_i32 = arith.constant 0 : i32
    %c0_i32_0 = arith.constant 0 : i32
    %c0_i32_1 = arith.constant 0 : i32
    return %arg1, %c0_i32, %c0_i32_0 : i32, i32, i32
  }
  func.func @transform_15(%arg0: i32, %arg1: i32) -> (i32, i32, i32) {
    %c0_i32 = arith.constant 0 : i32
    %c0_i32_0 = arith.constant 0 : i32
    %c0_i32_1 = arith.constant 0 : i32
    return %arg1, %c0_i32, %c0_i32_0 : i32, i32, i32
  }
  func.func @transform_16(%arg0: i32, %arg1: i32) -> (i32, i32, i32) {
    %c0_i32 = arith.constant 0 : i32
    %c0_i32_0 = arith.constant 0 : i32
    %c0_i32_1 = arith.constant 0 : i32
    return %arg1, %c0_i32, %c0_i32_0 : i32, i32, i32
  }
  func.func @transform_17(%arg0: i32, %arg1: i32) -> (i32, i32, i32) {
    %c0_i32 = arith.constant 0 : i32
    %c0_i32_0 = arith.constant 0 : i32
    %c0_i32_1 = arith.constant 0 : i32
    return %arg1, %c0_i32, %c0_i32_0 : i32, i32, i32
  }
  func.func @transform_18(%arg0: i32, %arg1: i32) -> (i32, i32, i32) {
    %c0_i32 = arith.constant 0 : i32
    %c0_i32_0 = arith.constant 0 : i32
    %c0_i32_1 = arith.constant 0 : i32
    return %arg1, %c0_i32, %c0_i32_0 : i32, i32, i32
  }
  func.func @transform_19(%arg0: i32, %arg1: i32) -> (i32, i32, i32) {
    %c0_i32 = arith.constant 0 : i32
    %c0_i32_0 = arith.constant 0 : i32
    %c0_i32_1 = arith.constant 0 : i32
    return %arg1, %c0_i32, %c0_i32_0 : i32, i32, i32
  }
  func.func @transform_20(%arg0: i32, %arg1: i32) -> (i32, i32) {
    %c0_i32 = arith.constant 0 : i32
    %c0_i32_0 = arith.constant 0 : i32
    %c0_i32_1 = arith.constant 0 : i32
    return %c0_i32, %c0_i32_0 : i32, i32
  }
  func.func @transform_21(%arg0: i32, %arg1: i32) -> (i32, i32) {
    %c0_i32 = arith.constant 0 : i32
    %c0_i32_0 = arith.constant 0 : i32
    %c0_i32_1 = arith.constant 0 : i32
    return %c0_i32, %c0_i32_0 : i32, i32
  }
  func.func @transform_22(%arg0: i32, %arg1: i32) -> (i32, i32, i32) {
    %c0_i32 = arith.constant 0 : i32
    %c0_i32_0 = arith.constant 0 : i32
    %c0_i32_1 = arith.constant 0 : i32
    return %arg0, %c0_i32, %c0_i32_0 : i32, i32, i32
  }
}

</mosaic_0001>

<llo_original>
// kernel: tpu_custom_call.1
$region0: #{tpu_custom_call.1}
  #allocation0 [shape = 'u32[]', space=smem, size = 0x4, offset = 0x4, fixed_abs, tag = 'smem constant byte address 0x4 - core index']
  #allocation1 [shape = 'u32[144,128]{1,0:T(1,128)}', space=vmem, size = 0x12000, scoped, tag = 'internal scratch']
  #allocation2 [shape = 'f32[16,32]{1,0:T(8,128)}', space=vmem, size = 0x2000, scoped, tag = 'scratch operand']
  #allocation3 [shape = 'f32[16,32]{1,0:T(8,128)}', space=vmem, size = 0x2000, scoped, tag = 'scratch operand']
  #allocation4 [shape = 'f32[32,32]{1,0:T(8,128)}', space=vmem, size = 0x4000, scoped, tag = 'scratch operand']
  %s0 = inlined_call_operand.vmem [shape: f32[2,8,32], index: 0, kind: input, shape index: {}]
  %s1 = inlined_call_operand.vmem [shape: f32[2,10,32], index: 1, kind: input, shape index: {}]
  %s2 = inlined_call_operand.vmem [shape: bf16[2,8,8], index: 2, kind: input, shape index: {}]
  %s3 = inlined_call_operand.vmem [shape: bf16[2,1,10], index: 3, kind: input, shape index: {}]
  %s4 = inlined_call_operand.vmem [shape: f32[2,32,96], index: 4, kind: input, shape index: {}]
  %s5 = inlined_call_operand.vmem [shape: f32[2,1,96], index: 5, kind: input, shape index: {}]
  %s6 = inlined_call_operand.vmem [shape: f32[2,32,32], index: 6, kind: input, shape index: {}]
  %s7 = inlined_call_operand.vmem [shape: f32[2,1,32], index: 7, kind: input, shape index: {}]
  %s8 = inlined_call_operand.vmem [shape: f32[2,32,32], index: 8, kind: input, shape index: {}]
  %s9 = inlined_call_operand.vmem [shape: f32[2,1,32], index: 9, kind: input, shape index: {}]
  %s10 = inlined_call_operand.hbm [shape: f32[2,32,64], index: 10, kind: input, shape index: {}]
  %s11 = inlined_call_operand.vmem [shape: f32[2,1,64], index: 11, kind: input, shape index: {}]
  %s12 = inlined_call_operand.hbm [shape: f32[2,32,32], index: 12, kind: input, shape index: {}]
  %s13 = inlined_call_operand.vmem [shape: f32[2,1,32], index: 13, kind: input, shape index: {}]
  %s14 = inlined_call_operand.hbm [shape: f32[2,32,64], index: 14, kind: input, shape index: {}]
  %s15 = inlined_call_operand.vmem [shape: f32[2,1,64], index: 15, kind: input, shape index: {}]
  %s16 = inlined_call_operand.vmem [shape: f32[2,64,32], index: 16, kind: input, shape index: {}]
  %s17 = inlined_call_operand.vmem [shape: f32[2,1,32], index: 17, kind: input, shape index: {}]
  %s18 = inlined_call_operand.vmem [shape: f32[2,3,32], index: 18, kind: input, shape index: {}]
  %s19 = inlined_call_operand.vmem [shape: f32[2,3,32], index: 19, kind: input, shape index: {}]
  %s20 = inlined_call_operand.vmem [shape: f32[1,32], index: 20, kind: input, shape index: {}]
  %s21 = inlined_call_operand.vmem [shape: f32[1,32], index: 21, kind: input, shape index: {}]
  %s22 = inlined_call_operand.hbm [shape: f32[2,8,32], index: 22, kind: output, shape index: {}]
  %s23 = sld [smem:[#allocation0]]
  $region141: #{tpu_custom_call.1} parent=0
    _
  %s25 = ssub.s32 1, %s23
  %s26 = scalar_select 0, %s25, %s23
  $region1: #{tpu_custom_call.1} parent=0
    #allocation5 [shape = 'u8[32768]{0}', space=vmem, size = 0x8000, scoped, tag = 'input window, operand 10']
    #allocation6 [shape = 's32[2]{0}', space=sflag, size = 0x8, scoped, tag = 'scoped memory for tpu_custom_call.1']
    #allocation7 [shape = 's32[2]{0}', space=sflag, size = 0x8, scoped, tag = 'scoped memory for tpu_custom_call.1']
    #allocation8 [shape = 'u8[32768]{0}', space=vmem, size = 0x8000, scoped, tag = 'input window, operand 12']
    #allocation9 [shape = 's32[2]{0}', space=sflag, size = 0x8, scoped, tag = 'scoped memory for tpu_custom_call.1']
    #allocation10 [shape = 'u8[32768]{0}', space=vmem, size = 0x8000, scoped, tag = 'input window, operand 14']
    #allocation11 [shape = 'u8[8192]{0}', space=vmem, size = 0x2000, scoped, tag = 'output window, operand 0, single buffered']
    %27 = vsyncpa [#allocation6], 0
    %s28 = scalar_lea.sflag [#allocation6], 1
    %29 = vsyncpa %s28, 0
    %30 = vsyncpa [#allocation9], 0
    %s31 = scalar_lea.sflag [#allocation9], 1
    %32 = vsyncpa %s31, 0
    %33 = vsyncpa [#allocation7], 0
    loop: start=0, step=1, limit=4
    $region2: #{tpu_custom_call.1} parent=1 // loop_pre_header
      _
    $region3: #{tpu_custom_call.1} parent=1 // loop_header
      %s35 = sphi 0, %s39
      %p36 = scmp.ge.s32.totalorder %s35, 4
      %s42 = sphi 0, %s54
      %s43 = sphi 0, %s50
      %s44 = sphi 0, %s42
      %s45 = sphi 0, %s43
      %s46 = sphi 0, %s44
      %s47 = sphi 0, %s45
      %s57 = sphi 0, %s59
      %s60 = sphi 0, %s57
      %s61 = sphi 0, %s60
      %s77 = sphi 0, %s61
      %s83 = sphi 0, %s85
      %s86 = sphi 0, %s83
      %s87 = sphi 0, %s86
      %s103 = sphi 0, %s87
      %s109 = sphi 0, %s111
      %s112 = sphi 0, %s109
      %s113 = sphi 0, %s112
      %s129 = sphi 0, %s113
      %s135 = sphi 0, %s137
      %s138 = sphi 0, %s135
      %s139 = sphi 0, %s138
      %s155 = sphi 0, %s139
      %s161 = sphi 0, %s163
      %s164 = sphi 0, %s161
      %s165 = sphi 0, %s164
      %s181 = sphi 0, %s165
      %s187 = sphi 0, %s189
      %s190 = sphi 0, %s187
      %s191 = sphi 0, %s190
      %s207 = sphi 0, %s191
      %s213 = sphi 0, %s215
      %s216 = sphi 0, %s213
      %s217 = sphi 0, %s216
      %s233 = sphi 0, %s217
      %s239 = sphi 0, %s241
      %s242 = sphi 0, %s239
      %s243 = sphi 0, %s242
      %s259 = sphi 0, %s243
      %s265 = sphi 0, %s267
      %s268 = sphi 0, %s265
      %s269 = sphi 0, %s268
      %s285 = sphi 0, %s269
      %s291 = sphi 0, %s293
      %s294 = sphi 0, %s291
      %s295 = sphi 0, %s294
      %s311 = sphi 0, %s295
      %s317 = sphi 0, %s319
      %s320 = sphi 0, %s317
      %s321 = sphi 0, %s320
      %s337 = sphi 0, %s321
      %s343 = sphi 0, %s345
      %s346 = sphi 0, %s343
      %s347 = sphi 0, %s346
      %s363 = sphi 0, %s347
      %s369 = sphi 0, %s371
      %s372 = sphi 0, %s369
      %s373 = sphi 0, %s372
      %s389 = sphi 0, %s373
      %s395 = sphi 0, %s397
      %s398 = sphi 0, %s395
      %s399 = sphi 0, %s398
      %s415 = sphi 0, %s399
      %s421 = sphi 0, %s423
      %s424 = sphi 0, %s421
      %s425 = sphi 0, %s424
      %s441 = sphi 0, %s425
      %s447 = sphi 0, %s449
      %s450 = sphi 0, %s447
      %s451 = sphi 0, %s450
      %s467 = sphi 0, %s451
      %s473 = sphi 0, %s475
      %s476 = sphi 0, %s473
      %s477 = sphi 0, %s476
      %s493 = sphi 0, %s477
      %s499 = sphi 0, %s501
      %s502 = sphi 0, %s499
      %s503 = sphi 0, %s502
      %s519 = sphi 0, %s503
      %s525 = sphi 0, %s527
      %s528 = sphi 0, %s525
      %s529 = sphi 0, %s528
      %s545 = sphi 0, %s529
      %s551 = sphi 0, %s553
      %s554 = sphi 0, %s551
      %s555 = sphi 0, %s554
      %s571 = sphi 0, %s555
      %s575 = sphi 0, %s575
      %s577 = sphi 0, %s575
      %s578 = sphi 0, %s577
      %s592 = sphi 0, %s578
      %s596 = sphi 0, %s596
      %s598 = sphi 0, %s596
      %s599 = sphi 0, %s598
      %s613 = sphi 0, %s599
      %s619 = sphi 0, %s621
      %s622 = sphi 0, %s619
      %s623 = sphi 0, %s622
      %s639 = sphi 0, %s623
    $region4: #{tpu_custom_call.1} parent=1 // loop_header_branch
      %38 = sbr.rel (%p36) target = $region8
    $region5: #{tpu_custom_call.1} parent=1 // loop_body
      %s40 = ssub.s32 %s35, 1
      %s41 = ssub.s32 %s35, 2
      %s48 = sadd.s32 1, %s43
      %p49 = scmp.ge.s32.totalorder %s48, 2
      %s50 = scalar_select %p49, 0, %s48
      %s51 = sadd.s32 1, %s42
      %s52 = scalar_select %p49, %s51, %s42
      %p53 = scmp.ge.s32.totalorder %s52, 1
      %s54 = scalar_select %p53, 0, %s52
      %s55 = ssub.s32 %s42, %s54
      %p56 = scmp.eq.s32.totalorder %s55, 0
      %s58 = sadd.s32 %s57, 1
      %s59 = scalar_select %p56, %s57, %s58
      %p62 = pneg %p56
      %p63 = scmp.eq.s32.totalorder %s35, 1
      %p64 = por %p62, %p63
      %p65 = scmp.ne.s32.totalorder %s57, %s60
      %p66 = scmp.eq.s32.totalorder %s35, 0
      %p67 = por %p65, %p66
      %p68 = scmp.ne.s32.totalorder %s57, %s60
      %p69 = scmp.eq.s32.totalorder %s40, 1
      %p70 = por %p68, %p69
      %p71 = scmp.ne.s32.totalorder %s60, %s61
      %p72 = scmp.eq.s32.totalorder %s40, 0
      %p73 = por %p71, %p72
      %p74 = scmp.ne.s32.totalorder %s60, %s61
      %p75 = scmp.eq.s32.totalorder %s41, 1
      %p76 = por %p74, %p75
      %p78 = scmp.ne.s32.totalorder %s61, %s77
      %p79 = scmp.eq.s32.totalorder %s41, 0
      %p80 = por %p78, %p79
      %s81 = ssub.s32 %s42, %s54
      %p82 = scmp.eq.s32.totalorder %s81, 0
      %s84 = sadd.s32 %s83, 1
      %s85 = scalar_select %p82, %s83, %s84
      %p88 = pneg %p82
      %p89 = scmp.eq.s32.totalorder %s35, 1
      %p90 = por %p88, %p89
      %p91 = scmp.ne.s32.totalorder %s83, %s86
      %p92 = scmp.eq.s32.totalorder %s35, 0
      %p93 = por %p91, %p92
      %p94 = scmp.ne.s32.totalorder %s83, %s86
      %p95 = scmp.eq.s32.totalorder %s40, 1
      %p96 = por %p94, %p95
      %p97 = scmp.ne.s32.totalorder %s86, %s87
      %p98 = scmp.eq.s32.totalorder %s40, 0
      %p99 = por %p97, %p98
      %p100 = scmp.ne.s32.totalorder %s86, %s87
      %p101 = scmp.eq.s32.totalorder %s41, 1
      %p102 = por %p100, %p101
      %p104 = scmp.ne.s32.totalorder %s87, %s103
      %p105 = scmp.eq.s32.totalorder %s41, 0
      %p106 = por %p104, %p105
      %s107 = ssub.s32 %s42, %s54
      %p108 = scmp.eq.s32.totalorder %s107, 0
      %s110 = sadd.s32 %s109, 1
      %s111 = scalar_select %p108, %s109, %s110
      %p114 = pneg %p108
      %p115 = scmp.eq.s32.totalorder %s35, 1
      %p116 = por %p114, %p115
      %p117 = scmp.ne.s32.totalorder %s109, %s112
      %p118 = scmp.eq.s32.totalorder %s35, 0
      %p119 = por %p117, %p118
      %p120 = scmp.ne.s32.totalorder %s109, %s112
      %p121 = scmp.eq.s32.totalorder %s40, 1
      %p122 = por %p120, %p121
      %p123 = scmp.ne.s32.totalorder %s112, %s113
      %p124 = scmp.eq.s32.totalorder %s40, 0
      %p125 = por %p123, %p124
      %p126 = scmp.ne.s32.totalorder %s112, %s113
      %p127 = scmp.eq.s32.totalorder %s41, 1
      %p128 = por %p126, %p127
      %p130 = scmp.ne.s32.totalorder %s113, %s129
      %p131 = scmp.eq.s32.totalorder %s41, 0
      %p132 = por %p130, %p131
      %s133 = ssub.s32 %s42, %s54
      %p134 = scmp.eq.s32.totalorder %s133, 0
      %s136 = sadd.s32 %s135, 1
      %s137 = scalar_select %p134, %s135, %s136
      %p140 = pneg %p134
      %p141 = scmp.eq.s32.totalorder %s35, 1
      %p142 = por %p140, %p141
      %p143 = scmp.ne.s32.totalorder %s135, %s138
      %p144 = scmp.eq.s32.totalorder %s35, 0
      %p145 = por %p143, %p144
      %p146 = scmp.ne.s32.totalorder %s135, %s138
      %p147 = scmp.eq.s32.totalorder %s40, 1
      %p148 = por %p146, %p147
      %p149 = scmp.ne.s32.totalorder %s138, %s139
      %p150 = scmp.eq.s32.totalorder %s40, 0
      %p151 = por %p149, %p150
      %p152 = scmp.ne.s32.totalorder %s138, %s139
      %p153 = scmp.eq.s32.totalorder %s41, 1
      %p154 = por %p152, %p153
      %p156 = scmp.ne.s32.totalorder %s139, %s155
      %p157 = scmp.eq.s32.totalorder %s41, 0
      %p158 = por %p156, %p157
      %s159 = ssub.s32 %s43, %s50
      %p160 = scmp.eq.s32.totalorder %s159, 0
      %s162 = sadd.s32 %s161, 1
      %s163 = scalar_select %p160, %s161, %s162
      %p166 = pneg %p160
      %p167 = scmp.eq.s32.totalorder %s35, 1
      %p168 = por %p166, %p167
      %p169 = scmp.ne.s32.totalorder %s161, %s164
      %p170 = scmp.eq.s32.totalorder %s35, 0
      %p171 = por %p169, %p170
      %p172 = scmp.ne.s32.totalorder %s161, %s164
      %p173 = scmp.eq.s32.totalorder %s40, 1
      %p174 = por %p172, %p173
      %p175 = scmp.ne.s32.totalorder %s164, %s165
      %p176 = scmp.eq.s32.totalorder %s40, 0
      %p177 = por %p175, %p176
      %p178 = scmp.ne.s32.totalorder %s164, %s165
      %p179 = scmp.eq.s32.totalorder %s41, 1
      %p180 = por %p178, %p179
      %p182 = scmp.ne.s32.totalorder %s165, %s181
      %p183 = scmp.eq.s32.totalorder %s41, 0
      %p184 = por %p182, %p183
      %s185 = ssub.s32 %s43, %s50
      %p186 = scmp.eq.s32.totalorder %s185, 0
      %s188 = sadd.s32 %s187, 1
      %s189 = scalar_select %p186, %s187, %s188
      %p192 = pneg %p186
      %p193 = scmp.eq.s32.totalorder %s35, 1
      %p194 = por %p192, %p193
      %p195 = scmp.ne.s32.totalorder %s187, %s190
      %p196 = scmp.eq.s32.totalorder %s35, 0
      %p197 = por %p195, %p196
      %p198 = scmp.ne.s32.totalorder %s187, %s190
      %p199 = scmp.eq.s32.totalorder %s40, 1
      %p200 = por %p198, %p199
      %p201 = scmp.ne.s32.totalorder %s190, %s191
      %p202 = scmp.eq.s32.totalorder %s40, 0
      %p203 = por %p201, %p202
      %p204 = scmp.ne.s32.totalorder %s190, %s191
      %p205 = scmp.eq.s32.totalorder %s41, 1
      %p206 = por %p204, %p205
      %p208 = scmp.ne.s32.totalorder %s191, %s207
      %p209 = scmp.eq.s32.totalorder %s41, 0
      %p210 = por %p208, %p209
      %s211 = ssub.s32 %s43, %s50
      %p212 = scmp.eq.s32.totalorder %s211, 0
      %s214 = sadd.s32 %s213, 1
      %s215 = scalar_select %p212, %s213, %s214
      %p218 = pneg %p212
      %p219 = scmp.eq.s32.totalorder %s35, 1
      %p220 = por %p218, %p219
      %p221 = scmp.ne.s32.totalorder %s213, %s216
      %p222 = scmp.eq.s32.totalorder %s35, 0
      %p223 = por %p221, %p222
      %p224 = scmp.ne.s32.totalorder %s213, %s216
      %p225 = scmp.eq.s32.totalorder %s40, 1
      %p226 = por %p224, %p225
      %p227 = scmp.ne.s32.totalorder %s216, %s217
      %p228 = scmp.eq.s32.totalorder %s40, 0
      %p229 = por %p227, %p228
      %p230 = scmp.ne.s32.totalorder %s216, %s217
      %p231 = scmp.eq.s32.totalorder %s41, 1
      %p232 = por %p230, %p231
      %p234 = scmp.ne.s32.totalorder %s217, %s233
      %p235 = scmp.eq.s32.totalorder %s41, 0
      %p236 = por %p234, %p235
      %s237 = ssub.s32 %s43, %s50
      %p238 = scmp.eq.s32.totalorder %s237, 0
      %s240 = sadd.s32 %s239, 1
      %s241 = scalar_select %p238, %s239, %s240
      %p244 = pneg %p238
      %p245 = scmp.eq.s32.totalorder %s35, 1
      %p246 = por %p244, %p245
      %p247 = scmp.ne.s32.totalorder %s239, %s242
      %p248 = scmp.eq.s32.totalorder %s35, 0
      %p249 = por %p247, %p248
      %p250 = scmp.ne.s32.totalorder %s239, %s242
      %p251 = scmp.eq.s32.totalorder %s40, 1
      %p252 = por %p250, %p251
      %p253 = scmp.ne.s32.totalorder %s242, %s243
      %p254 = scmp.eq.s32.totalorder %s40, 0
      %p255 = por %p253, %p254
      %p256 = scmp.ne.s32.totalorder %s242, %s243
      %p257 = scmp.eq.s32.totalorder %s41, 1
      %p258 = por %p256, %p257
      %p260 = scmp.ne.s32.totalorder %s243, %s259
      %p261 = scmp.eq.s32.totalorder %s41, 0
      %p262 = por %p260, %p261
      %s263 = ssub.s32 %s43, %s50
      %p264 = scmp.eq.s32.totalorder %s263, 0
      %s266 = sadd.s32 %s265, 1
      %s267 = scalar_select %p264, %s265, %s266
      %p270 = pneg %p264
      %p271 = scmp.eq.s32.totalorder %s35, 1
      %p272 = por %p270, %p271
      %p273 = scmp.ne.s32.totalorder %s265, %s268
      %p274 = scmp.eq.s32.totalorder %s35, 0
      %p275 = por %p273, %p274
      %p276 = scmp.ne.s32.totalorder %s265, %s268
      %p277 = scmp.eq.s32.totalorder %s40, 1
      %p278 = por %p276, %p277
      %p279 = scmp.ne.s32.totalorder %s268, %s269
      %p280 = scmp.eq.s32.totalorder %s40, 0
      %p281 = por %p279, %p280
      %p282 = scmp.ne.s32.totalorder %s268, %s269
      %p283 = scmp.eq.s32.totalorder %s41, 1
      %p284 = por %p282, %p283
      %p286 = scmp.ne.s32.totalorder %s269, %s285
      %p287 = scmp.eq.s32.totalorder %s41, 0
      %p288 = por %p286, %p287
      %s289 = ssub.s32 %s43, %s50
      %p290 = scmp.eq.s32.totalorder %s289, 0
      %s292 = sadd.s32 %s291, 1
      %s293 = scalar_select %p290, %s291, %s292
      %p296 = pneg %p290
      %p297 = scmp.eq.s32.totalorder %s35, 1
      %p298 = por %p296, %p297
      %p299 = scmp.ne.s32.totalorder %s291, %s294
      %p300 = scmp.eq.s32.totalorder %s35, 0
      %p301 = por %p299, %p300
      %p302 = scmp.ne.s32.totalorder %s291, %s294
      %p303 = scmp.eq.s32.totalorder %s40, 1
      %p304 = por %p302, %p303
      %p305 = scmp.ne.s32.totalorder %s294, %s295
      %p306 = scmp.eq.s32.totalorder %s40, 0
      %p307 = por %p305, %p306
      %p308 = scmp.ne.s32.totalorder %s294, %s295
      %p309 = scmp.eq.s32.totalorder %s41, 1
      %p310 = por %p308, %p309
      %p312 = scmp.ne.s32.totalorder %s295, %s311
      %p313 = scmp.eq.s32.totalorder %s41, 0
      %p314 = por %p312, %p313
      %s315 = ssub.s32 %s43, %s50
      %p316 = scmp.eq.s32.totalorder %s315, 0
      %s318 = sadd.s32 %s317, 1
      %s319 = scalar_select %p316, %s317, %s318
      %p322 = pneg %p316
      %p323 = scmp.eq.s32.totalorder %s35, 1
      %p324 = por %p322, %p323
      %p325 = scmp.ne.s32.totalorder %s317, %s320
      %p326 = scmp.eq.s32.totalorder %s35, 0
      %p327 = por %p325, %p326
      %p328 = scmp.ne.s32.totalorder %s317, %s320
      %p329 = scmp.eq.s32.totalorder %s40, 1
      %p330 = por %p328, %p329
      %p331 = scmp.ne.s32.totalorder %s320, %s321
      %p332 = scmp.eq.s32.totalorder %s40, 0
      %p333 = por %p331, %p332
      %p334 = scmp.ne.s32.totalorder %s320, %s321
      %p335 = scmp.eq.s32.totalorder %s41, 1
      %p336 = por %p334, %p335
      %p338 = scmp.ne.s32.totalorder %s321, %s337
      %p339 = scmp.eq.s32.totalorder %s41, 0
      %p340 = por %p338, %p339
      %s341 = ssub.s32 %s43, %s50
      %p342 = scmp.eq.s32.totalorder %s341, 0
      %s344 = sadd.s32 %s343, 1
      %s345 = scalar_select %p342, %s343, %s344
      %p348 = pneg %p342
      %p349 = scmp.eq.s32.totalorder %s35, 1
      %p350 = por %p348, %p349
      %p351 = scmp.ne.s32.totalorder %s343, %s346
      %p352 = scmp.eq.s32.totalorder %s35, 0
      %p353 = por %p351, %p352
      %p354 = scmp.ne.s32.totalorder %s343, %s346
      %p355 = scmp.eq.s32.totalorder %s40, 1
      %p356 = por %p354, %p355
      %p357 = scmp.ne.s32.totalorder %s346, %s347
      %p358 = scmp.eq.s32.totalorder %s40, 0
      %p359 = por %p357, %p358
      %p360 = scmp.ne.s32.totalorder %s346, %s347
      %p361 = scmp.eq.s32.totalorder %s41, 1
      %p362 = por %p360, %p361
      %p364 = scmp.ne.s32.totalorder %s347, %s363
      %p365 = scmp.eq.s32.totalorder %s41, 0
      %p366 = por %p364, %p365
      %s367 = ssub.s32 %s43, %s50
      %p368 = scmp.eq.s32.totalorder %s367, 0
      %s370 = sadd.s32 %s369, 1
      %s371 = scalar_select %p368, %s369, %s370
      %p374 = pneg %p368
      %p375 = scmp.eq.s32.totalorder %s35, 1
      %p376 = por %p374, %p375
      %p377 = scmp.ne.s32.totalorder %s369, %s372
      %p378 = scmp.eq.s32.totalorder %s35, 0
      %p379 = por %p377, %p378
      %p380 = scmp.ne.s32.totalorder %s369, %s372
      %p381 = scmp.eq.s32.totalorder %s40, 1
      %p382 = por %p380, %p381
      %p383 = scmp.ne.s32.totalorder %s372, %s373
      %p384 = scmp.eq.s32.totalorder %s40, 0
      %p385 = por %p383, %p384
      %p386 = scmp.ne.s32.totalorder %s372, %s373
      %p387 = scmp.eq.s32.totalorder %s41, 1
      %p388 = por %p386, %p387
      %p390 = scmp.ne.s32.totalorder %s373, %s389
      %p391 = scmp.eq.s32.totalorder %s41, 0
      %p392 = por %p390, %p391
      %s393 = ssub.s32 %s43, %s50
      %p394 = scmp.eq.s32.totalorder %s393, 0
      %s396 = sadd.s32 %s395, 1
      %s397 = scalar_select %p394, %s395, %s396
      %p400 = pneg %p394
      %p401 = scmp.eq.s32.totalorder %s35, 1
      %p402 = por %p400, %p401
      %p403 = scmp.ne.s32.totalorder %s395, %s398
      %p404 = scmp.eq.s32.totalorder %s35, 0
      %p405 = por %p403, %p404
      %p406 = scmp.ne.s32.totalorder %s395, %s398
      %p407 = scmp.eq.s32.totalorder %s40, 1
      %p408 = por %p406, %p407
      %p409 = scmp.ne.s32.totalorder %s398, %s399
      %p410 = scmp.eq.s32.totalorder %s40, 0
      %p411 = por %p409, %p410
      %p412 = scmp.ne.s32.totalorder %s398, %s399
      %p413 = scmp.eq.s32.totalorder %s41, 1
      %p414 = por %p412, %p413
      %p416 = scmp.ne.s32.totalorder %s399, %s415
      %p417 = scmp.eq.s32.totalorder %s41, 0
      %p418 = por %p416, %p417
      %s419 = ssub.s32 %s43, %s50
      %p420 = scmp.eq.s32.totalorder %s419, 0
      %s422 = sadd.s32 %s421, 1
      %s423 = scalar_select %p420, %s421, %s422
      %p426 = pneg %p420
      %p427 = scmp.eq.s32.totalorder %s35, 1
      %p428 = por %p426, %p427
      %p429 = scmp.ne.s32.totalorder %s421, %s424
      %p430 = scmp.eq.s32.totalorder %s35, 0
      %p431 = por %p429, %p430
      %p432 = scmp.ne.s32.totalorder %s421, %s424
      %p433 = scmp.eq.s32.totalorder %s40, 1
      %p434 = por %p432, %p433
      %p435 = scmp.ne.s32.totalorder %s424, %s425
      %p436 = scmp.eq.s32.totalorder %s40, 0
      %p437 = por %p435, %p436
      %p438 = scmp.ne.s32.totalorder %s424, %s425
      %p439 = scmp.eq.s32.totalorder %s41, 1
      %p440 = por %p438, %p439
      %p442 = scmp.ne.s32.totalorder %s425, %s441
      %p443 = scmp.eq.s32.totalorder %s41, 0
      %p444 = por %p442, %p443
      %s445 = ssub.s32 %s43, %s50
      %p446 = scmp.eq.s32.totalorder %s445, 0
      %s448 = sadd.s32 %s447, 1
      %s449 = scalar_select %p446, %s447, %s448
      %p452 = pneg %p446
      %p453 = scmp.eq.s32.totalorder %s35, 1
      %p454 = por %p452, %p453
      %p455 = scmp.ne.s32.totalorder %s447, %s450
      %p456 = scmp.eq.s32.totalorder %s35, 0
      %p457 = por %p455, %p456
      %p458 = scmp.ne.s32.totalorder %s447, %s450
      %p459 = scmp.eq.s32.totalorder %s40, 1
      %p460 = por %p458, %p459
      %p461 = scmp.ne.s32.totalorder %s450, %s451
      %p462 = scmp.eq.s32.totalorder %s40, 0
      %p463 = por %p461, %p462
      %p464 = scmp.ne.s32.totalorder %s450, %s451
      %p465 = scmp.eq.s32.totalorder %s41, 1
      %p466 = por %p464, %p465
      %p468 = scmp.ne.s32.totalorder %s451, %s467
      %p469 = scmp.eq.s32.totalorder %s41, 0
      %p470 = por %p468, %p469
      %s471 = ssub.s32 %s43, %s50
      %p472 = scmp.eq.s32.totalorder %s471, 0
      %s474 = sadd.s32 %s473, 1
      %s475 = scalar_select %p472, %s473, %s474
      %p478 = pneg %p472
      %p479 = scmp.eq.s32.totalorder %s35, 1
      %p480 = por %p478, %p479
      %p481 = scmp.ne.s32.totalorder %s473, %s476
      %p482 = scmp.eq.s32.totalorder %s35, 0
      %p483 = por %p481, %p482
      %p484 = scmp.ne.s32.totalorder %s473, %s476
      %p485 = scmp.eq.s32.totalorder %s40, 1
      %p486 = por %p484, %p485
      %p487 = scmp.ne.s32.totalorder %s476, %s477
      %p488 = scmp.eq.s32.totalorder %s40, 0
      %p489 = por %p487, %p488
      %p490 = scmp.ne.s32.totalorder %s476, %s477
      %p491 = scmp.eq.s32.totalorder %s41, 1
      %p492 = por %p490, %p491
      %p494 = scmp.ne.s32.totalorder %s477, %s493
      %p495 = scmp.eq.s32.totalorder %s41, 0
      %p496 = por %p494, %p495
      %s497 = ssub.s32 %s43, %s50
      %p498 = scmp.eq.s32.totalorder %s497, 0
      %s500 = sadd.s32 %s499, 1
      %s501 = scalar_select %p498, %s499, %s500
      %p504 = pneg %p498
      %p505 = scmp.eq.s32.totalorder %s35, 1
      %p506 = por %p504, %p505
      %p507 = scmp.ne.s32.totalorder %s499, %s502
      %p508 = scmp.eq.s32.totalorder %s35, 0
      %p509 = por %p507, %p508
      %p510 = scmp.ne.s32.totalorder %s499, %s502
      %p511 = scmp.eq.s32.totalorder %s40, 1
      %p512 = por %p510, %p511
      %p513 = scmp.ne.s32.totalorder %s502, %s503
      %p514 = scmp.eq.s32.totalorder %s40, 0
      %p515 = por %p513, %p514
      %p516 = scmp.ne.s32.totalorder %s502, %s503
      %p517 = scmp.eq.s32.totalorder %s41, 1
      %p518 = por %p516, %p517
      %p520 = scmp.ne.s32.totalorder %s503, %s519
      %p521 = scmp.eq.s32.totalorder %s41, 0
      %p522 = por %p520, %p521
      %s523 = ssub.s32 %s43, %s50
      %p524 = scmp.eq.s32.totalorder %s523, 0
      %s526 = sadd.s32 %s525, 1
      %s527 = scalar_select %p524, %s525, %s526
      %p530 = pneg %p524
      %p531 = scmp.eq.s32.totalorder %s35, 1
      %p532 = por %p530, %p531
      %p533 = scmp.ne.s32.totalorder %s525, %s528
      %p534 = scmp.eq.s32.totalorder %s35, 0
      %p535 = por %p533, %p534
      %p536 = scmp.ne.s32.totalorder %s525, %s528
      %p537 = scmp.eq.s32.totalorder %s40, 1
      %p538 = por %p536, %p537
      %p539 = scmp.ne.s32.totalorder %s528, %s529
      %p540 = scmp.eq.s32.totalorder %s40, 0
      %p541 = por %p539, %p540
      %p542 = scmp.ne.s32.totalorder %s528, %s529
      %p543 = scmp.eq.s32.totalorder %s41, 1
      %p544 = por %p542, %p543
      %p546 = scmp.ne.s32.totalorder %s529, %s545
      %p547 = scmp.eq.s32.totalorder %s41, 0
      %p548 = por %p546, %p547
      %s549 = ssub.s32 %s43, %s50
      %p550 = scmp.eq.s32.totalorder %s549, 0
      %s552 = sadd.s32 %s551, 1
      %s553 = scalar_select %p550, %s551, %s552
      %p556 = pneg %p550
      %p557 = scmp.eq.s32.totalorder %s35, 1
      %p558 = por %p556, %p557
      %p559 = scmp.ne.s32.totalorder %s551, %s554
      %p560 = scmp.eq.s32.totalorder %s35, 0
      %p561 = por %p559, %p560
      %p562 = scmp.ne.s32.totalorder %s551, %s554
      %p563 = scmp.eq.s32.totalorder %s40, 1
      %p564 = por %p562, %p563
      %p565 = scmp.ne.s32.totalorder %s554, %s555
      %p566 = scmp.eq.s32.totalorder %s40, 0
      %p567 = por %p565, %p566
      %p568 = scmp.ne.s32.totalorder %s554, %s555
      %p569 = scmp.eq.s32.totalorder %s41, 1
      %p570 = por %p568, %p569
      %p572 = scmp.ne.s32.totalorder %s555, %s571
      %p573 = scmp.eq.s32.totalorder %s41, 0
      %p574 = por %p572, %p573
      %s576 = sadd.s32 %s575, 1
      %p579 = scmp.eq.s32.totalorder %s35, 1
      %p580 = scmp.ne.s32.totalorder %s575, %s577
      %p581 = scmp.eq.s32.totalorder %s35, 0
      %p582 = por %p580, %p581
      %p583 = scmp.ne.s32.totalorder %s575, %s577
      %p584 = scmp.eq.s32.totalorder %s40, 1
      %p585 = por %p583, %p584
      %p586 = scmp.ne.s32.totalorder %s577, %s578
      %p587 = scmp.eq.s32.totalorder %s40, 0
      %p588 = por %p586, %p587
      %p589 = scmp.ne.s32.totalorder %s577, %s578
      %p590 = scmp.eq.s32.totalorder %s41, 1
      %p591 = por %p589, %p590
      %p593 = scmp.ne.s32.totalorder %s578, %s592
      %p594 = scmp.eq.s32.totalorder %s41, 0
      %p595 = por %p593, %p594
      %s597 = sadd.s32 %s596, 1
      %p600 = scmp.eq.s32.totalorder %s35, 1
      %p601 = scmp.ne.s32.totalorder %s596, %s598
      %p602 = scmp.eq.s32.totalorder %s35, 0
      %p603 = por %p601, %p602
      %p604 = scmp.ne.s32.totalorder %s596, %s598
      %p605 = scmp.eq.s32.totalorder %s40, 1
      %p606 = por %p604, %p605
      %p607 = scmp.ne.s32.totalorder %s598, %s599
      %p608 = scmp.eq.s32.totalorder %s40, 0
      %p609 = por %p607, %p608
      %p610 = scmp.ne.s32.totalorder %s598, %s599
      %p611 = scmp.eq.s32.totalorder %s41, 1
      %p612 = por %p610, %p611
      %p614 = scmp.ne.s32.totalorder %s599, %s613
      %p615 = scmp.eq.s32.totalorder %s41, 0
      %p616 = por %p614, %p615
      %s617 = ssub.s32 %s42, %s54
      %p618 = scmp.eq.s32.totalorder %s617, 0
      %s620 = sadd.s32 %s619, 1
      %s621 = scalar_select %p618, %s619, %s620
      %p624 = pneg %p618
      %p625 = scmp.eq.s32.totalorder %s35, 1
      %p626 = por %p624, %p625
      %p627 = scmp.ne.s32.totalorder %s619, %s622
      %p628 = scmp.eq.s32.totalorder %s35, 0
      %p629 = por %p627, %p628
      %p630 = scmp.ne.s32.totalorder %s619, %s622
      %p631 = scmp.eq.s32.totalorder %s40, 1
      %p632 = por %p630, %p631
      %p633 = scmp.ne.s32.totalorder %s622, %s623
      %p634 = scmp.eq.s32.totalorder %s40, 0
      %p635 = por %p633, %p634
      %p636 = scmp.ne.s32.totalorder %s622, %s623
      %p637 = scmp.eq.s32.totalorder %s41, 1
      %p638 = por %p636, %p637
      %p640 = scmp.ne.s32.totalorder %s623, %s639
      %p641 = scmp.eq.s32.totalorder %s41, 0
      %p642 = por %p640, %p641
      %p643 = scmp.le.s32.totalorder 1, %s35
      %p644 = scmp.lt.s32.totalorder %s35, 3
      %p645 = pnand %p643, %p644
      %p646 = pneg %p645
      // Predicated region
      $region9: #{tpu_custom_call.1} parent=5 // pred_check
        _
      $region10: #{tpu_custom_call.1} parent=5 // pred_check_branch
        %648 = sbr.rel (%p645) target = $region12
      $region11: #{tpu_custom_call.1} parent=5 // pred_region
        %s649 = ssub.s32 %s35, 1
        // Predicated region
        $region13: #{tpu_custom_call.1} parent=11 // pred_check
          %p650 = pneg %p73
        $region14: #{tpu_custom_call.1} parent=11 // pred_check_branch
          %652 = sbr.rel (%p650) target = $region16
        $region15: #{tpu_custom_call.1} parent=11 // pred_region
          %s653 = smul.u32 2, %s44
          %p654 = scmp.lt.s32.totalorder %s653, 1
          %s655 = scalar_select %p654, %s653, 1
          %s656 = smul.addr %s655, 8
          %s657 = scalar_lea.vmem %s0, %s656
          %s658 = smul.u32 2, %s44
        $region16: #{tpu_custom_call.1} parent=11 // pred_fallthru
          _
        // Predicated region
        $region17: #{tpu_custom_call.1} parent=11 // pred_check
          %p659 = pneg %p99
        $region18: #{tpu_custom_call.1} parent=11 // pred_check_branch
          %661 = sbr.rel (%p659) target = $region20
        $region19: #{tpu_custom_call.1} parent=11 // pred_region
          %s662 = smul.u32 2, %s44
          %p663 = scmp.lt.s32.totalorder %s662, 1
          %s664 = scalar_select %p663, %s662, 1
          %s665 = smul.addr %s664, 2
          %s666 = smul.addr %s665, 8
          %s667 = scalar_lea.vmem %s1, %s666
          %s668 = smul.u32 2, %s44
        $region20: #{tpu_custom_call.1} parent=11 // pred_fallthru
          _
        // Predicated region
        $region21: #{tpu_custom_call.1} parent=11 // pred_check
          %p669 = pneg %p125
        $region22: #{tpu_custom_call.1} parent=11 // pred_check_branch
          %671 = sbr.rel (%p669) target = $region24
        $region23: #{tpu_custom_call.1} parent=11 // pred_region
          %s672 = smul.u32 2, %s44
          %p673 = scmp.lt.s32.totalorder %s672, 1
          %s674 = scalar_select %p673, %s672, 1
          %s675 = smul.addr %s674, 4
          %s676 = scalar_lea.vmem %s2, %s675
          %s677 = smul.u32 2, %s44
        $region24: #{tpu_custom_call.1} parent=11 // pred_fallthru
          _
        // Predicated region
        $region25: #{tpu_custom_call.1} parent=11 // pred_check
          %p678 = pneg %p151
        $region26: #{tpu_custom_call.1} parent=11 // pred_check_branch
          %680 = sbr.rel (%p678) target = $region28
        $region27: #{tpu_custom_call.1} parent=11 // pred_region
          %s681 = smul.u32 2, %s44
          %p682 = scmp.lt.s32.totalorder %s681, 1
          %s683 = scalar_select %p682, %s681, 1
          %s684 = scalar_lea.vmem %s3, %s683
          %s685 = smul.u32 2, %s44
        $region28: #{tpu_custom_call.1} parent=11 // pred_fallthru
          _
        // Predicated region
        $region29: #{tpu_custom_call.1} parent=11 // pred_check
          %p686 = pneg %p588
        $region30: #{tpu_custom_call.1} parent=11 // pred_check_branch
          %688 = sbr.rel (%p686) target = $region32
        $region31: #{tpu_custom_call.1} parent=11 // pred_region
          _
        $region32: #{tpu_custom_call.1} parent=11 // pred_fallthru
          _
        // Predicated region
        $region33: #{tpu_custom_call.1} parent=11 // pred_check
          %p689 = pneg %p609
        $region34: #{tpu_custom_call.1} parent=11 // pred_check_branch
          %691 = sbr.rel (%p689) target = $region36
        $region35: #{tpu_custom_call.1} parent=11 // pred_region
          _
        $region36: #{tpu_custom_call.1} parent=11 // pred_fallthru
          _
      $region12: #{tpu_custom_call.1} parent=5 // pred_fallthru
        _
      %p692 = scmp.lt.s32.totalorder %s35, 2
      // Predicated region
      $region37: #{tpu_custom_call.1} parent=5 // pred_check
        %p693 = pneg %p692
      $region38: #{tpu_custom_call.1} parent=5 // pred_check_branch
        %695 = sbr.rel (%p693) target = $region40
      $region39: #{tpu_custom_call.1} parent=5 // pred_region
        // Predicated region
        $region41: #{tpu_custom_call.1} parent=39 // pred_check
          %p696 = pneg %p171
        $region42: #{tpu_custom_call.1} parent=39 // pred_check_branch
          %698 = sbr.rel (%p696) target = $region44
        $region43: #{tpu_custom_call.1} parent=39 // pred_region
          %p699 = scmp.lt.s32.totalorder %s43, 1
          %s700 = scalar_select %p699, %s43, 1
          %s701 = smul.addr %s700, 4
          %s702 = smul.addr %s701, 8
          %s703 = scalar_lea.vmem %s4, %s702
        $region44: #{tpu_custom_call.1} parent=39 // pred_fallthru
          _
        // Predicated region
        $region45: #{tpu_custom_call.1} parent=39 // pred_check
          %p704 = pneg %p197
        $region46: #{tpu_custom_call.1} parent=39 // pred_check_branch
          %706 = sbr.rel (%p704) target = $region48
        $region47: #{tpu_custom_call.1} parent=39 // pred_region
          %p707 = scmp.lt.s32.totalorder %s43, 1
          %s708 = scalar_select %p707, %s43, 1
          %s709 = scalar_lea.vmem %s5, %s708
        $region48: #{tpu_custom_call.1} parent=39 // pred_fallthru
          _
        // Predicated region
        $region49: #{tpu_custom_call.1} parent=39 // pred_check
          %p710 = pneg %p223
        $region50: #{tpu_custom_call.1} parent=39 // pred_check_branch
          %712 = sbr.rel (%p710) target = $region52
        $region51: #{tpu_custom_call.1} parent=39 // pred_region
          %p713 = scmp.lt.s32.totalorder %s43, 1
          %s714 = scalar_select %p713, %s43, 1
          %s715 = smul.addr %s714, 4
          %s716 = smul.addr %s715, 8
          %s717 = scalar_lea.vmem %s6, %s716
        $region52: #{tpu_custom_call.1} parent=39 // pred_fallthru
          _
        // Predicated region
        $region53: #{tpu_custom_call.1} parent=39 // pred_check
          %p718 = pneg %p249
        $region54: #{tpu_custom_call.1} parent=39 // pred_check_branch
          %720 = sbr.rel (%p718) target = $region56
        $region55: #{tpu_custom_call.1} parent=39 // pred_region
          %p721 = scmp.lt.s32.totalorder %s43, 1
          %s722 = scalar_select %p721, %s43, 1
          %s723 = scalar_lea.vmem %s7, %s722
        $region56: #{tpu_custom_call.1} parent=39 // pred_fallthru
          _
        // Predicated region
        $region57: #{tpu_custom_call.1} parent=39 // pred_check
          %p724 = pneg %p275
        $region58: #{tpu_custom_call.1} parent=39 // pred_check_branch
          %726 = sbr.rel (%p724) target = $region60
        $region59: #{tpu_custom_call.1} parent=39 // pred_region
          %p727 = scmp.lt.s32.totalorder %s43, 1
          %s728 = scalar_select %p727, %s43, 1
          %s729 = smul.addr %s728, 4
          %s730 = smul.addr %s729, 8
          %s731 = scalar_lea.vmem %s8, %s730
        $region60: #{tpu_custom_call.1} parent=39 // pred_fallthru
          _
        // Predicated region
        $region61: #{tpu_custom_call.1} parent=39 // pred_check
          %p732 = pneg %p301
        $region62: #{tpu_custom_call.1} parent=39 // pred_check_branch
          %734 = sbr.rel (%p732) target = $region64
        $region63: #{tpu_custom_call.1} parent=39 // pred_region
          %p735 = scmp.lt.s32.totalorder %s43, 1
          %s736 = scalar_select %p735, %s43, 1
          %s737 = scalar_lea.vmem %s9, %s736
        $region64: #{tpu_custom_call.1} parent=39 // pred_fallthru
          _
        // Predicated region
        $region65: #{tpu_custom_call.1} parent=39 // pred_check
          %p738 = pneg %p327
        $region66: #{tpu_custom_call.1} parent=39 // pred_check_branch
          %740 = sbr.rel (%p738) target = $region68
        $region67: #{tpu_custom_call.1} parent=39 // pred_region
          %s741 = sand.u32 %s317, 1
          %s742 = scalar_lea.sflag [#allocation6], %s741
          %s743 = sand.u32 %s317, 1
          %s744 = smul.addr %s743, 32
          %s745 = scalar_lea.vmem [#allocation5], %s744
          %s747 = ssub.s32 512, 512
          %748 = vsyncadd %s742, %s747
          %s749 = smul.addr %s43, 4
          %s750 = smul.addr %s749, 128
          %s751 = scalar_lea.hbm %s10, %s750
          %s752 = sshll.u32 %s745, 4
          %s753 = int_to_ptr.vmem [resolvable:$true] %s752
          %758 = dma.hbm_to_vmem [thread:$0]  %s751, 512, %s753, %s742, 128, 128, 8
        $region68: #{tpu_custom_call.1} parent=39 // pred_fallthru
          _
        // Predicated region
        $region69: #{tpu_custom_call.1} parent=39 // pred_check
          %p759 = pneg %p353
        $region70: #{tpu_custom_call.1} parent=39 // pred_check_branch
          %761 = sbr.rel (%p759) target = $region72
        $region71: #{tpu_custom_call.1} parent=39 // pred_region
          %p762 = scmp.lt.s32.totalorder %s43, 1
          %s763 = scalar_select %p762, %s43, 1
          %s764 = scalar_lea.vmem %s11, %s763
        $region72: #{tpu_custom_call.1} parent=39 // pred_fallthru
          _
        // Predicated region
        $region73: #{tpu_custom_call.1} parent=39 // pred_check
          %p765 = pneg %p379
        $region74: #{tpu_custom_call.1} parent=39 // pred_check_branch
          %767 = sbr.rel (%p765) target = $region76
        $region75: #{tpu_custom_call.1} parent=39 // pred_region
          %s768 = sand.u32 %s35, 1
          %s769 = scalar_lea.sflag [#allocation9], %s768
          %s770 = sand.u32 %s369, 1
          %s771 = smul.addr %s770, 32
          %s772 = scalar_lea.vmem [#allocation8], %s771
          %s774 = ssub.s32 512, 512
          %775 = vsyncadd %s769, %s774
          %s776 = smul.addr %s43, 4
          %s777 = smul.addr %s776, 128
          %s778 = scalar_lea.hbm %s12, %s777
          %s779 = sshll.u32 %s772, 4
          %s780 = int_to_ptr.vmem [resolvable:$true] %s779
          %785 = dma.hbm_to_vmem [thread:$0]  %s778, 512, %s780, %s769, 128, 128, 8
        $region76: #{tpu_custom_call.1} parent=39 // pred_fallthru
          _
        // Predicated region
        $region77: #{tpu_custom_call.1} parent=39 // pred_check
          %p786 = pneg %p405
        $region78: #{tpu_custom_call.1} parent=39 // pred_check_branch
          %788 = sbr.rel (%p786) target = $region80
        $region79: #{tpu_custom_call.1} parent=39 // pred_region
          %p789 = scmp.lt.s32.totalorder %s43, 1
          %s790 = scalar_select %p789, %s43, 1
          %s791 = scalar_lea.vmem %s13, %s790
        $region80: #{tpu_custom_call.1} parent=39 // pred_fallthru
          _
        // Predicated region
        $region81: #{tpu_custom_call.1} parent=39 // pred_check
          %p792 = pneg %p431
        $region82: #{tpu_custom_call.1} parent=39 // pred_check_branch
          %794 = sbr.rel (%p792) target = $region84
        $region83: #{tpu_custom_call.1} parent=39 // pred_region
          %s795 = sand.u32 %s35, 1
          %s796 = scalar_lea.sflag [#allocation9], %s795
          %s797 = sand.u32 %s421, 1
          %s798 = smul.addr %s797, 32
          %s799 = scalar_lea.vmem [#allocation10], %s798
          %s801 = ssub.s32 512, 512
          %802 = vsyncadd %s796, %s801
          %s803 = smul.addr %s43, 4
          %s804 = smul.addr %s803, 128
          %s805 = scalar_lea.hbm %s14, %s804
          %s806 = sshll.u32 %s799, 4
          %s807 = int_to_ptr.vmem [resolvable:$true] %s806
          %812 = dma.hbm_to_vmem [thread:$0]  %s805, 512, %s807, %s796, 128, 128, 8
        $region84: #{tpu_custom_call.1} parent=39 // pred_fallthru
          _
        // Predicated region
        $region85: #{tpu_custom_call.1} parent=39 // pred_check
          %p813 = pneg %p457
        $region86: #{tpu_custom_call.1} parent=39 // pred_check_branch
          %815 = sbr.rel (%p813) target = $region88
        $region87: #{tpu_custom_call.1} parent=39 // pred_region
          %p816 = scmp.lt.s32.totalorder %s43, 1
          %s817 = scalar_select %p816, %s43, 1
          %s818 = scalar_lea.vmem %s15, %s817
        $region88: #{tpu_custom_call.1} parent=39 // pred_fallthru
          _
        // Predicated region
        $region89: #{tpu_custom_call.1} parent=39 // pred_check
          %p819 = pneg %p483
        $region90: #{tpu_custom_call.1} parent=39 // pred_check_branch
          %821 = sbr.rel (%p819) target = $region92
        $region91: #{tpu_custom_call.1} parent=39 // pred_region
          %p822 = scmp.lt.s32.totalorder %s43, 1
          %s823 = scalar_select %p822, %s43, 1
          %s824 = smul.addr %s823, 8
          %s825 = smul.addr %s824, 8
          %s826 = scalar_lea.vmem %s16, %s825
        $region92: #{tpu_custom_call.1} parent=39 // pred_fallthru
          _
        // Predicated region
        $region93: #{tpu_custom_call.1} parent=39 // pred_check
          %p827 = pneg %p509
        $region94: #{tpu_custom_call.1} parent=39 // pred_check_branch
          %829 = sbr.rel (%p827) target = $region96
        $region95: #{tpu_custom_call.1} parent=39 // pred_region
          %p830 = scmp.lt.s32.totalorder %s43, 1
          %s831 = scalar_select %p830, %s43, 1
          %s832 = scalar_lea.vmem %s17, %s831
        $region96: #{tpu_custom_call.1} parent=39 // pred_fallthru
          _
        // Predicated region
        $region97: #{tpu_custom_call.1} parent=39 // pred_check
          %p833 = pneg %p535
        $region98: #{tpu_custom_call.1} parent=39 // pred_check_branch
          %835 = sbr.rel (%p833) target = $region100
        $region99: #{tpu_custom_call.1} parent=39 // pred_region
          %p836 = scmp.lt.s32.totalorder %s43, 1
          %s837 = scalar_select %p836, %s43, 1
          %s838 = smul.addr %s837, 4
          %s839 = scalar_lea.vmem %s18, %s838
        $region100: #{tpu_custom_call.1} parent=39 // pred_fallthru
          _
        // Predicated region
        $region101: #{tpu_custom_call.1} parent=39 // pred_check
          %p840 = pneg %p561
        $region102: #{tpu_custom_call.1} parent=39 // pred_check_branch
          %842 = sbr.rel (%p840) target = $region104
        $region103: #{tpu_custom_call.1} parent=39 // pred_region
          %p843 = scmp.lt.s32.totalorder %s43, 1
          %s844 = scalar_select %p843, %s43, 1
          %s845 = smul.addr %s844, 4
          %s846 = scalar_lea.vmem %s19, %s845
        $region104: #{tpu_custom_call.1} parent=39 // pred_fallthru
          _
      $region40: #{tpu_custom_call.1} parent=5 // pred_fallthru
        _
      %p847 = scmp.le.s32.totalorder 1, %s35
      %p848 = scmp.lt.s32.totalorder %s35, 3
      %p849 = pnand %p847, %p848
      %p850 = pneg %p849
      // Predicated region
      $region105: #{tpu_custom_call.1} parent=5 // pred_check
        _
      $region106: #{tpu_custom_call.1} parent=5 // pred_check_branch
        %852 = sbr.rel (%p849) target = $region108
      $region107: #{tpu_custom_call.1} parent=5 // pred_region
        %s853 = ssub.s32 %s35, 1
        %s854 = sand.u32 %s320, 1
        %s855 = scalar_lea.sflag [#allocation6], %s854
        %s856 = sand.u32 %s320, 1
        %s857 = smul.addr %s856, 32
        %s858 = scalar_lea.vmem [#allocation5], %s857
        // Predicated region
        $region109: #{tpu_custom_call.1} parent=107 // pred_check
          %p859 = pneg %p333
        $region110: #{tpu_custom_call.1} parent=107 // pred_check_branch
          %861 = sbr.rel (%p859) target = $region112
        $region111: #{tpu_custom_call.1} parent=107 // pred_region
          %862 = dma.done %s855, 512
        $region112: #{tpu_custom_call.1} parent=107 // pred_fallthru
          _
        %s863 = sand.u32 %s40, 1
        %s864 = scalar_lea.sflag [#allocation9], %s863
        %s865 = sand.u32 %s372, 1
        %s866 = smul.addr %s865, 32
        %s867 = scalar_lea.vmem [#allocation8], %s866
        // Predicated region
        $region113: #{tpu_custom_call.1} parent=107 // pred_check
          %p868 = pneg %p385
        $region114: #{tpu_custom_call.1} parent=107 // pred_check_branch
          %870 = sbr.rel (%p868) target = $region116
        $region115: #{tpu_custom_call.1} parent=107 // pred_region
          %871 = dma.done %s864, 512
        $region116: #{tpu_custom_call.1} parent=107 // pred_fallthru
          _
        %s872 = sand.u32 %s40, 1
        %s873 = scalar_lea.sflag [#allocation9], %s872
        %s874 = sand.u32 %s424, 1
        %s875 = smul.addr %s874, 32
        %s876 = scalar_lea.vmem [#allocation10], %s875
        // Predicated region
        $region117: #{tpu_custom_call.1} parent=107 // pred_check
          %p877 = pneg %p437
        $region118: #{tpu_custom_call.1} parent=107 // pred_check_branch
          %879 = sbr.rel (%p877) target = $region120
        $region119: #{tpu_custom_call.1} parent=107 // pred_region
          %880 = dma.done %s873, 512
        $region120: #{tpu_custom_call.1} parent=107 // pred_fallthru
          _
        %s881 = smul.u32 2, %s44
        %p882 = scmp.lt.s32.totalorder %s881, 1
        %s883 = scalar_select %p882, %s881, 1
        %s884 = smul.addr %s883, 8
        %s885 = scalar_lea.vmem %s0, %s884
        %p886 = pneg %p73
        %p887 = pneg %p70
        %s888 = smul.u32 2, %s44
        %p889 = scmp.lt.s32.totalorder %s888, 1
        %s890 = scalar_select %p889, %s888, 1
        %s891 = smul.addr %s890, 2
        %s892 = smul.addr %s891, 8
        %s893 = scalar_lea.vmem %s1, %s892
        %p894 = pneg %p99
        %p895 = pneg %p96
        %s896 = smul.u32 2, %s44
        %p897 = scmp.lt.s32.totalorder %s896, 1
        %s898 = scalar_select %p897, %s896, 1
        %s899 = smul.addr %s898, 4
        %s900 = scalar_lea.vmem %s2, %s899
        %p901 = pneg %p125
        %p902 = pneg %p122
        %s903 = smul.u32 2, %s44
        %p904 = scmp.lt.s32.totalorder %s903, 1
        %s905 = scalar_select %p904, %s903, 1
        %s906 = scalar_lea.vmem %s3, %s905
        %p907 = pneg %p151
        %p908 = pneg %p148
        %p909 = scmp.lt.s32.totalorder %s45, 1
        %s910 = scalar_select %p909, %s45, 1
        %s911 = smul.addr %s910, 4
        %s912 = smul.addr %s911, 8
        %s913 = scalar_lea.vmem %s4, %s912
        %p914 = pneg %p177
        %p915 = pneg %p174
        %p916 = scmp.lt.s32.totalorder %s45, 1
        %s917 = scalar_select %p916, %s45, 1
        %s918 = scalar_lea.vmem %s5, %s917
        %p919 = pneg %p203
        %p920 = pneg %p200
        %p921 = scmp.lt.s32.totalorder %s45, 1
        %s922 = scalar_select %p921, %s45, 1
        %s923 = smul.addr %s922, 4
        %s924 = smul.addr %s923, 8
        %s925 = scalar_lea.vmem %s6, %s924
        %p926 = pneg %p229
        %p927 = pneg %p226
        %p928 = scmp.lt.s32.totalorder %s45, 1
        %s929 = scalar_select %p928, %s45, 1
        %s930 = scalar_lea.vmem %s7, %s929
        %p931 = pneg %p255
        %p932 = pneg %p252
        %p933 = scmp.lt.s32.totalorder %s45, 1
        %s934 = scalar_select %p933, %s45, 1
        %s935 = smul.addr %s934, 4
        %s936 = smul.addr %s935, 8
        %s937 = scalar_lea.vmem %s8, %s936
        %p938 = pneg %p281
        %p939 = pneg %p278
        %p940 = scmp.lt.s32.totalorder %s45, 1
        %s941 = scalar_select %p940, %s45, 1
        %s942 = scalar_lea.vmem %s9, %s941
        %p943 = pneg %p307
        %p944 = pneg %p304
        %s945 = sand.u32 %s320, 1
        %s946 = scalar_lea.sflag [#allocation6], %s945
        %s947 = sand.u32 %s320, 1
        %s948 = smul.addr %s947, 32
        %s949 = scalar_lea.vmem [#allocation5], %s948
        %p950 = pneg %p333
        %p951 = pneg %p330
        %p952 = scmp.lt.s32.totalorder %s45, 1
        %s953 = scalar_select %p952, %s45, 1
        %s954 = scalar_lea.vmem %s11, %s953
        %p955 = pneg %p359
        %p956 = pneg %p356
        %s957 = sand.u32 %s40, 1
        %s958 = scalar_lea.sflag [#allocation9], %s957
        %s959 = sand.u32 %s372, 1
        %s960 = smul.addr %s959, 32
        %s961 = scalar_lea.vmem [#allocation8], %s960
        %p962 = pneg %p385
        %p963 = pneg %p382
        %p964 = scmp.lt.s32.totalorder %s45, 1
        %s965 = scalar_select %p964, %s45, 1
        %s966 = scalar_lea.vmem %s13, %s965
        %p967 = pneg %p411
        %p968 = pneg %p408
        %s969 = sand.u32 %s40, 1
        %s970 = scalar_lea.sflag [#allocation9], %s969
        %s971 = sand.u32 %s424, 1
        %s972 = smul.addr %s971, 32
        %s973 = scalar_lea.vmem [#allocation10], %s972
        %p974 = pneg %p437
        %p975 = pneg %p434
        %p976 = scmp.lt.s32.totalorder %s45, 1
        %s977 = scalar_select %p976, %s45, 1
        %s978 = scalar_lea.vmem %s15, %s977
        %p979 = pneg %p463
        %p980 = pneg %p460
        %p981 = scmp.lt.s32.totalorder %s45, 1
        %s982 = scalar_select %p981, %s45, 1
        %s983 = smul.addr %s982, 8
        %s984 = smul.addr %s983, 8
        %s985 = scalar_lea.vmem %s16, %s984
        %p986 = pneg %p489
        %p987 = pneg %p486
        %p988 = scmp.lt.s32.totalorder %s45, 1
        %s989 = scalar_select %p988, %s45, 1
        %s990 = scalar_lea.vmem %s17, %s989
        %p991 = pneg %p515
        %p992 = pneg %p512
        %p993 = scmp.lt.s32.totalorder %s45, 1
        %s994 = scalar_select %p993, %s45, 1
        %s995 = smul.addr %s994, 4
        %s996 = scalar_lea.vmem %s18, %s995
        %p997 = pneg %p541
        %p998 = pneg %p538
        %p999 = scmp.lt.s32.totalorder %s45, 1
        %s1000 = scalar_select %p999, %s45, 1
        %s1001 = smul.addr %s1000, 4
        %s1002 = scalar_lea.vmem %s19, %s1001
        %p1003 = pneg %p567
        %p1004 = pneg %p564
        %p1005 = pneg %p588
        %p1006 = pneg %p585
        %p1007 = pneg %p609
        %p1008 = pneg %p606
        %p1009 = pneg %p635
        %p1010 = pneg %p632
        %s1011 = smul.u32 2, %s44
        %p1012 = scmp.lt.s32.totalorder %s1011, 1
        %s1013 = scalar_select %p1012, %s1011, 1
        %s1014 = smul.addr %s1013, 8
        %s1015 = scalar_lea.vmem %s0, %s1014
        %s1016 = smul.u32 2, %s44
        %s1017 = smul.u32 2, %s44
        %p1018 = scmp.lt.s32.totalorder %s1017, 1
        %s1019 = scalar_select %p1018, %s1017, 1
        %s1020 = smul.addr %s1019, 2
        %s1021 = smul.addr %s1020, 8
        %s1022 = scalar_lea.vmem %s1, %s1021
        %s1023 = smul.u32 2, %s44
        %s1024 = smul.u32 2, %s44
        %p1025 = scmp.lt.s32.totalorder %s1024, 1
        %s1026 = scalar_select %p1025, %s1024, 1
        %s1027 = smul.addr %s1026, 4
        %s1028 = scalar_lea.vmem %s2, %s1027
        %s1029 = smul.u32 2, %s44
        %s1030 = smul.u32 2, %s44
        %p1031 = scmp.lt.s32.totalorder %s1030, 1
        %s1032 = scalar_select %p1031, %s1030, 1
        %s1033 = scalar_lea.vmem %s3, %s1032
        %s1034 = smul.u32 2, %s44
        %p1035 = scmp.lt.s32.totalorder %s45, 1
        %s1036 = scalar_select %p1035, %s45, 1
        %s1037 = smul.addr %s1036, 4
        %s1038 = smul.addr %s1037, 8
        %s1039 = scalar_lea.vmem %s4, %s1038
        %p1040 = scmp.lt.s32.totalorder %s45, 1
        %s1041 = scalar_select %p1040, %s45, 1
        %s1042 = scalar_lea.vmem %s5, %s1041
        %p1043 = scmp.lt.s32.totalorder %s45, 1
        %s1044 = scalar_select %p1043, %s45, 1
        %s1045 = smul.addr %s1044, 4
        %s1046 = smul.addr %s1045, 8
        %s1047 = scalar_lea.vmem %s6, %s1046
        %p1048 = scmp.lt.s32.totalorder %s45, 1
        %s1049 = scalar_select %p1048, %s45, 1
        %s1050 = scalar_lea.vmem %s7, %s1049
        %p1051 = scmp.lt.s32.totalorder %s45, 1
        %s1052 = scalar_select %p1051, %s45, 1
        %s1053 = smul.addr %s1052, 4
        %s1054 = smul.addr %s1053, 8
        %s1055 = scalar_lea.vmem %s8, %s1054
        %p1056 = scmp.lt.s32.totalorder %s45, 1
        %s1057 = scalar_select %p1056, %s45, 1
        %s1058 = scalar_lea.vmem %s9, %s1057
        %p1059 = scmp.lt.s32.totalorder %s45, 1
        %s1060 = scalar_select %p1059, %s45, 1
        %s1061 = scalar_lea.vmem %s11, %s1060
        %p1062 = scmp.lt.s32.totalorder %s45, 1
        %s1063 = scalar_select %p1062, %s45, 1
        %s1064 = scalar_lea.vmem %s13, %s1063
        %p1065 = scmp.lt.s32.totalorder %s45, 1
        %s1066 = scalar_select %p1065, %s45, 1
        %s1067 = scalar_lea.vmem %s15, %s1066
        %p1068 = scmp.lt.s32.totalorder %s45, 1
        %s1069 = scalar_select %p1068, %s45, 1
        %s1070 = smul.addr %s1069, 8
        %s1071 = smul.addr %s1070, 8
        %s1072 = scalar_lea.vmem %s16, %s1071
        %p1073 = scmp.lt.s32.totalorder %s45, 1
        %s1074 = scalar_select %p1073, %s45, 1
        %s1075 = scalar_lea.vmem %s17, %s1074
        %p1076 = scmp.lt.s32.totalorder %s45, 1
        %s1077 = scalar_select %p1076, %s45, 1
        %s1078 = smul.addr %s1077, 4
        %s1079 = scalar_lea.vmem %s18, %s1078
        %p1080 = scmp.lt.s32.totalorder %s45, 1
        %s1081 = scalar_select %p1080, %s45, 1
        %s1082 = smul.addr %s1081, 4
        %s1083 = scalar_lea.vmem %s19, %s1082
        %s1084 = smul.u32 2, %s44
        %p1085 = scmp.eq.s32.totalorder %s45, 0
        // Predicated region
        $region121: #{tpu_custom_call.1} parent=107 // pred_check
          %p1086 = pneg %p1085
        $region122: #{tpu_custom_call.1} parent=107 // pred_check_branch
          %1088 = sbr.rel (%p1086) target = $region124
        $region123: #{tpu_custom_call.1} parent=107 // pred_region
          %vm1089 = vcmask 261120
          %1090 = vst.msk [vmem:[#allocation4] sm:$0xff] %vm1089, 0.0
          %1091 = vst.msk [vmem:[#allocation4 + $0x8] sm:$0xff] %vm1089, 0.0
          %1092 = vst.msk [vmem:[#allocation4 + $0x10] sm:$0xff] %vm1089, 0.0
          %1093 = vst.msk [vmem:[#allocation4 + $0x18] sm:$0xff] %vm1089, 0.0
          %v1094 = vld [vmem:[%s1015] sm:$0xff]
          %1095 = vst.msk [vmem:[#allocation2] sm:$0xff] %vm1089, %v1094
          %v1096 = vld [vmem:[%s1022] sm:$0xff]
          %v1097 = vld [vmem:[%s1022 + $0x8] sm:$0x3]
          %1098 = vst.msk [vmem:[#allocation4] sm:$0xff] %vm1089, %v1096
          %vm1099 = vcmask 254976
          %1100 = vst.msk [vmem:[#allocation4 + $0x8] sm:$0x3] %vm1099, %v1097
          %s1101 = scalar_lea.vmem %s1015, 8
          %v1102 = vld [vmem:[%s1101] sm:$0xff]
          %1103 = vst.msk [vmem:[#allocation2 + $0x8] sm:$0xff] %vm1089, %v1102
          %s1104 = scalar_lea.vmem %s1022, 16
          %v1105 = vld [vmem:[%s1104] sm:$0xff]
          %v1106 = vld [vmem:[%s1104 + $0x8] sm:$0x3]
          %1107 = vst.msk [vmem:[#allocation4 + $0x10] sm:$0xff] %vm1089, %v1105
          %1108 = vst.msk [vmem:[#allocation4 + $0x18] sm:$0x3] %vm1099, %v1106
        $region124: #{tpu_custom_call.1} parent=107 // pred_fallthru
          _
        %v1109 = vld [vmem:[%s1079] sm:$0x7]
        %v1110 = vld [vmem:[%s1083] sm:$0x7]
        %v1111 = vld [vmem:[#allocation2] sm:$0xff]
        %v1112 = vld [vmem:[#allocation2 + $0x8] sm:$0xff]
        %vm1113 = vcmask 261120
        %v1114 = vsel %vm1113, %v1111, 0.0
        %1115 = vadd.xlane.f32.xlu0 %v1114
        %v1116 = vpop.xlane.xlu0 %1115
        %v1117 = vsel %vm1113, %v1112, 0.0
        %1118 = vadd.xlane.f32.xlu0 %v1117
        %v1119 = vpop.xlane.xlu0 %1118
        %v1120 = vrcp.pop 32.0
        %v1121 = vmul.f32 %v1116, %v1120
        %v1122 = vmul.f32 %v1119, %v1120
        %v1123 = vsub.f32 %v1111, %v1121
        %v1124 = vsub.f32 %v1112, %v1122
        %v1125 = vmul.f32 %v1123, %v1123
        %v1126 = vmul.f32 %v1124, %v1124
        %v1127 = vsel %vm1113, %v1125, 0.0
        %1128 = vadd.xlane.f32.xlu0 %v1127
        %v1129 = vpop.xlane.xlu0 %1128
        %v1130 = vsel %vm1113, %v1126, 0.0
        %1131 = vadd.xlane.f32.xlu0 %v1130
        %v1132 = vpop.xlane.xlu0 %1131
        %v1133 = vmul.f32 %v1129, 0.032258064
        %v1134 = vmul.f32 %v1132, 0.032258064
        %v1135 = vrsqrt.pop %v1133
        %v1136 = vmul.f32 %v1133, %v1135
        %vm1137 = vcmp.eq.f32.partialorder %v1133, inf
        %v1138 = vsel %vm1137, %v1133, %v1136
        %vm1139 = vcmp.eq.f32.partialorder %v1133, 0.0
        %v1140 = vand.u32 %v1133, 2147483648
        %v1141 = vsel %vm1139, %v1140, %v1138
        %v1142 = vrsqrt.pop %v1134
        %v1143 = vmul.f32 %v1134, %v1142
        %vm1144 = vcmp.eq.f32.partialorder %v1134, inf
        %v1145 = vsel %vm1144, %v1134, %v1143
        %vm1146 = vcmp.eq.f32.partialorder %v1134, 0.0
        %v1147 = vand.u32 %v1134, 2147483648
        %v1148 = vsel %vm1146, %v1147, %v1145
        %v1149 = vadd.f32 %v1141, 1e-06
        %v1150 = vadd.f32 %v1148, 1e-06
        %v1151 = vrcp.pop %v1149
        %v1152 = vrcp.pop %v1150
        %v1153 = vmul.f32 %v1123, %v1151
        %v1154 = vmul.f32 %v1124, %v1152
        %v1155 = vlaneseq
        %v1156 = vshrl.u32 %v1155, 7
        %v1157 = vsub.s32 0, %v1156
        %v1158 = vrot.slane %v1109, %v1157
        %v1159 = vmul.f32 %v1158, %v1153
        %v1160 = vmul.f32 %v1158, %v1154
        %v1161 = vlaneseq
        %v1162 = vshrl.u32 %v1161, 7
        %v1163 = vsub.s32 0, %v1162
        %v1164 = vrot.slane %v1110, %v1163
        %v1165 = vadd.f32 %v1159, %v1164
        %v1166 = vadd.f32 %v1160, %v1164
        %v1167 = vld [vmem:[%s1039] sm:$0xff]
        %v1168 = vld [vmem:[%s1039 + $0x8] sm:$0xff]
        %v1169 = vld [vmem:[%s1039 + $0x10] sm:$0xff]
        %v1170 = vld [vmem:[%s1039 + $0x18] sm:$0xff]
        %v1171 = vld [vmem:[%s1042] sm:$0x1]
        %v1173 = vlaneseq
        %v1174 = vshrl.u32 %v1173, 7
        %v1175 = vsub.s32 0, %v1174
        %v1176 = vrot.slane %v1171, %v1175
        %v1179 = vsel %vm1113, %v1165, 0
        %v1182 = vsel %vm1113, %v1166, 0
        %1184 = vmatprep.subr.mxu0 0.0
        %1185 = vmatpush1.msra.mxu0 0.0
        %1186 = vmatprep.subr.mxu0 0.0
        %1187 = vmatpush1.msra.mxu0 0.0
        %1188 = vmatprep.subr.mxu0 0.0
        %1189 = vmatpush1.msra.mxu0 0.0
        %1190 = vmatprep.subr.mxu0 0.0
        %1191 = vmatpush1.msra.mxu0 0.0
        %1192 = vmatprep.subr.mxu0 0.0
        %1193 = vmatpush1.msra.mxu0 0.0
        %1194 = vmatprep.subr.mxu0 0.0
        %1195 = vmatpush1.msra.mxu0 0.0
        %1196 = vmatprep.subr.mxu0 0.0
        %1197 = vmatpush1.msra.mxu0 0.0
        %1198 = vmatprep.subr.mxu0 0.0
        %1199 = vmatpush1.msra.mxu0 0.0
        %1200 = vmatprep.subr.mxu0 0.0
        %1201 = vmatpush1.msra.mxu0 0.0
        %1202 = vmatprep.subr.mxu0 0.0
        %1203 = vmatpush1.msra.mxu0 0.0
        %1204 = vmatprep.subr.mxu0 0.0
        %1205 = vmatpush1.msra.mxu0 0.0
        %1206 = vmatprep.subr.mxu0 0.0
        %1207 = vmatpush1.msra.mxu0 0.0
        %1208 = vmatprep.subr.mxu0 0.0
        %1209 = vmatpush1.msra.mxu0 %v1170
        %1210 = vmatprep.subr.mxu0 0.0
        %1211 = vmatpush1.msra.mxu0 %v1169
        %1212 = vmatprep.subr.mxu0 0.0
        %1213 = vmatpush1.msra.mxu0 %v1168
        %1214 = vmatprep.subr.mxu0 0.0
        %1215 = vmatpush1.msra.mxu0 %v1167
        %1216 = vmatprep.subr.mxu0 0.0
        %1217 = vmatpush2.msra.mxu0 0.0
        %1218 = vmatprep.subr.mxu0 0.0
        %1219 = vmatpush2.msra.mxu0 0.0
        %1220 = vmatprep.subr.mxu0 0.0
        %1221 = vmatpush2.msra.mxu0 0.0
        %1222 = vmatprep.subr.mxu0 0.0
        %1223 = vmatpush2.msra.mxu0 0.0
        %1224 = vmatprep.subr.mxu0 0.0
        %1225 = vmatpush2.msra.mxu0 0.0
        %1226 = vmatprep.subr.mxu0 0.0
        %1227 = vmatpush2.msra.mxu0 0.0
        %1228 = vmatprep.subr.mxu0 0.0
        %1229 = vmatpush2.msra.mxu0 0.0
        %1230 = vmatprep.subr.mxu0 0.0
        %1231 = vmatpush2.msra.mxu0 0.0
        %1232 = vmatprep.subr.mxu0 0.0
        %1233 = vmatpush2.msra.mxu0 0.0
        %1234 = vmatprep.subr.mxu0 0.0
        %1235 = vmatpush2.msra.mxu0 0.0
        %1236 = vmatprep.subr.mxu0 0.0
        %1237 = vmatpush2.msra.mxu0 0.0
        %1238 = vmatprep.subr.mxu0 0.0
        %1239 = vmatpush2.msra.mxu0 0.0
        %1240 = vmatprep.subr.mxu0 0.0
        %1241 = vmatpush2.msra.mxu0 0.0
        %1242 = vmatprep.subr.mxu0 0.0
        %1243 = vmatpush2.msra.mxu0 0.0
        %1244 = vmatprep.subr.mxu0 0.0
        %1245 = vmatpush2.msra.mxu0 0.0
        %1246 = vmatprep.subr.mxu0 0.0
        %1247 = vmatpush2.msra.mxu0 0.0
        %1248 = vmatprep.mubr.f32.mxu0 0.0
        %1249 = vmatmul.mubr.f32.gmra.mxu0 %v1179
        %v1250 = vpop.f32.mrf.mxu0
        %v1251 = vadd.f32 %v1176, %v1250
        %v1252 = vpop.f32.mrf.mxu0
        %1253 = vmatprep.mubr.f32.mxu0 0.0
        %1254 = vmatmul.mubr.f32.gmra.mxu0 %v1182
        %v1255 = vpop.f32.mrf.mxu0
        %v1256 = vadd.f32 %v1176, %v1255
        %v1257 = vpop.f32.mrf.mxu0
        %1258 = vdwg.mxu0
        %v1259 = vmul.f32 %v1251, 0.35355338
        %v1260 = vmul.f32 %v1256, 0.35355338
        %v1261 = vld [vmem:[%s1028] sm:$0xf]
        %v1262 = vld [vmem:[%s1028 + $0x4] sm:$0xf]
        %v1263 = vunpack.c.l.bf16 %v1261
        %v1264 = vunpack.c.l.bf16 %v1262
        %1266 = vrot.lane.b32.xlu0 %v1251, 96
        %v1267 = vpop.permute.xlu0 %1266
        %vm1268 = vcmask 64512
        %v1270 = vsel %vm1268, %v1259, 0
        %v1272 = vsel %vm1268, %v1267, 0
        %1274 = vmatprep.subr.mxu0 0.0
        %1275 = vmatpush1.xpose.msra.mxu0 0.0
        %1276 = vmatprep.subr.mxu0 0.0
        %1277 = vmatpush1.xpose.msra.mxu0 0.0
        %1278 = vmatprep.subr.mxu0 0.0
        %1279 = vmatpush1.xpose.msra.mxu0 0.0
        %1280 = vmatprep.subr.mxu0 0.0
        %1281 = vmatpush1.xpose.msra.mxu0 0.0
        %1282 = vmatprep.subr.mxu0 0.0
        %1283 = vmatpush1.xpose.msra.mxu0 0.0
        %1284 = vmatprep.subr.mxu0 0.0
        %1285 = vmatpush1.xpose.msra.mxu0 0.0
        %1286 = vmatprep.subr.mxu0 0.0
        %1287 = vmatpush1.xpose.msra.mxu0 0.0
        %1288 = vmatprep.subr.mxu0 0.0
        %1289 = vmatpush1.xpose.msra.mxu0 0.0
        %1290 = vmatprep.subr.mxu0 0.0
        %1291 = vmatpush1.xpose.msra.mxu0 0.0
        %1292 = vmatprep.subr.mxu0 0.0
        %1293 = vmatpush1.xpose.msra.mxu0 0.0
        %1294 = vmatprep.subr.mxu0 0.0
        %1295 = vmatpush1.xpose.msra.mxu0 0.0
        %1296 = vmatprep.subr.mxu0 0.0
        %1297 = vmatpush1.xpose.msra.mxu0 0.0
        %1298 = vmatprep.subr.mxu0 0.0
        %1299 = vmatpush1.xpose.msra.mxu0 0.0
        %1300 = vmatprep.subr.mxu0 0.0
        %1301 = vmatpush1.xpose.msra.mxu0 0.0
        %1302 = vmatprep.subr.mxu0 0.0
        %1303 = vmatpush1.xpose.msra.mxu0 0.0
        %1304 = vmatprep.subr.mxu0 0.0
        %1305 = vmatpush1.xpose.msra.mxu0 %v1272
        %1306 = vmatprep.subr.mxu0 0.0
        %1307 = vmatpush2.xpose.msra.mxu0 0.0
        %1308 = vmatprep.subr.mxu0 0.0
        %1309 = vmatpush2.xpose.msra.mxu0 0.0
        %1310 = vmatprep.subr.mxu0 0.0
        %1311 = vmatpush2.xpose.msra.mxu0 0.0
        %1312 = vmatprep.subr.mxu0 0.0
        %1313 = vmatpush2.xpose.msra.mxu0 0.0
        %1314 = vmatprep.subr.mxu0 0.0
        %1315 = vmatpush2.xpose.msra.mxu0 0.0
        %1316 = vmatprep.subr.mxu0 0.0
        %1317 = vmatpush2.xpose.msra.mxu0 0.0
        %1318 = vmatprep.subr.mxu0 0.0
        %1319 = vmatpush2.xpose.msra.mxu0 0.0
        %1320 = vmatprep.subr.mxu0 0.0
        %1321 = vmatpush2.xpose.msra.mxu0 0.0
        %1322 = vmatprep.subr.mxu0 0.0
        %1323 = vmatpush2.xpose.msra.mxu0 0.0
        %1324 = vmatprep.subr.mxu0 0.0
        %1325 = vmatpush2.xpose.msra.mxu0 0.0
        %1326 = vmatprep.subr.mxu0 0.0
        %1327 = vmatpush2.xpose.msra.mxu0 0.0
        %1328 = vmatprep.subr.mxu0 0.0
        %1329 = vmatpush2.xpose.msra.mxu0 0.0
        %1330 = vmatprep.subr.mxu0 0.0
        %1331 = vmatpush2.xpose.msra.mxu0 0.0
        %1332 = vmatprep.subr.mxu0 0.0
        %1333 = vmatpush2.xpose.msra.mxu0 0.0
        %1334 = vmatprep.subr.mxu0 0.0
        %1335 = vmatpush2.xpose.msra.mxu0 0.0
        %1336 = vmatprep.subr.mxu0 0.0
        %1337 = vmatpush2.xpose.msra.mxu0 0.0
        %1338 = vmatprep.mubr.f32.mxu0 0.0
        %1339 = vmatmul.mubr.f32.gmra.mxu0 %v1270
        %v1340 = vpop.f32.mrf.mxu0
        %v1341 = vadd.f32 %v1263, %v1340
        %v1342 = vpop.f32.mrf.mxu0
        %1343 = vdwg.mxu0
        %v1344 = vsel %vm1268, %v1341, -inf
        %1345 = vmax.xlane.f32.xlu0 %v1344
        %v1346 = vpop.xlane.xlu0 %1345
        %v1347 = vsub.f32 %v1341, %v1346
        %v1348 = vmul.f32 %v1347, 1.442695
        %v1349 = vpow.pop %v1348
        %v1350 = vsel %vm1268, %v1349, 0.0
        %1351 = vadd.xlane.f32.xlu0 %v1350
        %v1352 = vpop.xlane.xlu0 %1351
        %v1353 = vrcp.pop %v1352
        %v1354 = vmul.f32 %v1349, %v1353
        %1355 = vrot.lane.b32.xlu0 %v1251, 64
        %v1356 = vpop.permute.xlu0 %1355
        %v1359 = vsel %vm1268, %v1354, 0
        %1361 = vmatprep.subr.mxu0 0.0
        %1362 = vmatpush1.msra.mxu0 0.0
        %1363 = vmatprep.subr.mxu0 0.0
        %1364 = vmatpush1.msra.mxu0 0.0
        %1365 = vmatprep.subr.mxu0 0.0
        %1366 = vmatpush1.msra.mxu0 0.0
        %1367 = vmatprep.subr.mxu0 0.0
        %1368 = vmatpush1.msra.mxu0 0.0
        %1369 = vmatprep.subr.mxu0 0.0
        %1370 = vmatpush1.msra.mxu0 0.0
        %1371 = vmatprep.subr.mxu0 0.0
        %1372 = vmatpush1.msra.mxu0 0.0
        %1373 = vmatprep.subr.mxu0 0.0
        %1374 = vmatpush1.msra.mxu0 0.0
        %1375 = vmatprep.subr.mxu0 0.0
        %1376 = vmatpush1.msra.mxu0 0.0
        %1377 = vmatprep.subr.mxu0 0.0
        %1378 = vmatpush1.msra.mxu0 0.0
        %1379 = vmatprep.subr.mxu0 0.0
        %1380 = vmatpush1.msra.mxu0 0.0
        %1381 = vmatprep.subr.mxu0 0.0
        %1382 = vmatpush1.msra.mxu0 0.0
        %1383 = vmatprep.subr.mxu0 0.0
        %1384 = vmatpush1.msra.mxu0 0.0
        %1385 = vmatprep.subr.mxu0 0.0
        %1386 = vmatpush1.msra.mxu0 0.0
        %1387 = vmatprep.subr.mxu0 0.0
        %1388 = vmatpush1.msra.mxu0 0.0
        %1389 = vmatprep.subr.mxu0 0.0
        %1390 = vmatpush1.msra.mxu0 0.0
        %1391 = vmatprep.subr.mxu0 0.0
        %1392 = vmatpush1.msra.mxu0 %v1356
        %1393 = vmatprep.subr.mxu0 0.0
        %1394 = vmatpush2.msra.mxu0 0.0
        %1395 = vmatprep.subr.mxu0 0.0
        %1396 = vmatpush2.msra.mxu0 0.0
        %1397 = vmatprep.subr.mxu0 0.0
        %1398 = vmatpush2.msra.mxu0 0.0
        %1399 = vmatprep.subr.mxu0 0.0
        %1400 = vmatpush2.msra.mxu0 0.0
        %1401 = vmatprep.subr.mxu0 0.0
        %1402 = vmatpush2.msra.mxu0 0.0
        %1403 = vmatprep.subr.mxu0 0.0
        %1404 = vmatpush2.msra.mxu0 0.0
        %1405 = vmatprep.subr.mxu0 0.0
        %1406 = vmatpush2.msra.mxu0 0.0
        %1407 = vmatprep.subr.mxu0 0.0
        %1408 = vmatpush2.msra.mxu0 0.0
        %1409 = vmatprep.subr.mxu0 0.0
        %1410 = vmatpush2.msra.mxu0 0.0
        %1411 = vmatprep.subr.mxu0 0.0
        %1412 = vmatpush2.msra.mxu0 0.0
        %1413 = vmatprep.subr.mxu0 0.0
        %1414 = vmatpush2.msra.mxu0 0.0
        %1415 = vmatprep.subr.mxu0 0.0
        %1416 = vmatpush2.msra.mxu0 0.0
        %1417 = vmatprep.subr.mxu0 0.0
        %1418 = vmatpush2.msra.mxu0 0.0
        %1419 = vmatprep.subr.mxu0 0.0
        %1420 = vmatpush2.msra.mxu0 0.0
        %1421 = vmatprep.subr.mxu0 0.0
        %1422 = vmatpush2.msra.mxu0 0.0
        %1423 = vmatprep.subr.mxu0 0.0
        %1424 = vmatpush2.msra.mxu0 0.0
        %1425 = vmatprep.mubr.f32.mxu0 0.0
        %1426 = vmatmul.mubr.f32.gmra.mxu0 %v1359
        %v1427 = vpop.f32.mrf.mxu0
        %v1428 = vadd.f32 0.0, %v1427
        %v1429 = vpop.f32.mrf.mxu0
        %1430 = vdwg.mxu0
        %1431 = vst.msk [vmem:[#allocation3] sm:$0xff] %vm1268, %v1428
        %1432 = vrot.lane.b32.xlu0 %v1259, 120
        %v1433 = vpop.permute.xlu0 %1432
        %1434 = vrot.lane.b32.xlu0 %v1251, 88
        %v1435 = vpop.permute.xlu0 %1434
        %v1436 = vsel %vm1268, %v1433, 0
        %v1438 = vsel %vm1268, %v1435, 0
        %1440 = vmatprep.subr.mxu0 0.0
        %1441 = vmatpush1.xpose.msra.mxu0 0.0
        %1442 = vmatprep.subr.mxu0 0.0
        %1443 = vmatpush1.xpose.msra.mxu0 0.0
        %1444 = vmatprep.subr.mxu0 0.0
        %1445 = vmatpush1.xpose.msra.mxu0 0.0
        %1446 = vmatprep.subr.mxu0 0.0
        %1447 = vmatpush1.xpose.msra.mxu0 0.0
        %1448 = vmatprep.subr.mxu0 0.0
        %1449 = vmatpush1.xpose.msra.mxu0 0.0
        %1450 = vmatprep.subr.mxu0 0.0
        %1451 = vmatpush1.xpose.msra.mxu0 0.0
        %1452 = vmatprep.subr.mxu0 0.0
        %1453 = vmatpush1.xpose.msra.mxu0 0.0
        %1454 = vmatprep.subr.mxu0 0.0
        %1455 = vmatpush1.xpose.msra.mxu0 0.0
        %1456 = vmatprep.subr.mxu0 0.0
        %1457 = vmatpush1.xpose.msra.mxu0 0.0
        %1458 = vmatprep.subr.mxu0 0.0
        %1459 = vmatpush1.xpose.msra.mxu0 0.0
        %1460 = vmatprep.subr.mxu0 0.0
        %1461 = vmatpush1.xpose.msra.mxu0 0.0
        %1462 = vmatprep.subr.mxu0 0.0
        %1463 = vmatpush1.xpose.msra.mxu0 0.0
        %1464 = vmatprep.subr.mxu0 0.0
        %1465 = vmatpush1.xpose.msra.mxu0 0.0
        %1466 = vmatprep.subr.mxu0 0.0
        %1467 = vmatpush1.xpose.msra.mxu0 0.0
        %1468 = vmatprep.subr.mxu0 0.0
        %1469 = vmatpush1.xpose.msra.mxu0 0.0
        %1470 = vmatprep.subr.mxu0 0.0
        %1471 = vmatpush1.xpose.msra.mxu0 %v1438
        %1472 = vmatprep.subr.mxu0 0.0
        %1473 = vmatpush2.xpose.msra.mxu0 0.0
        %1474 = vmatprep.subr.mxu0 0.0
        %1475 = vmatpush2.xpose.msra.mxu0 0.0
        %1476 = vmatprep.subr.mxu0 0.0
        %1477 = vmatpush2.xpose.msra.mxu0 0.0
        %1478 = vmatprep.subr.mxu0 0.0
        %1479 = vmatpush2.xpose.msra.mxu0 0.0
        %1480 = vmatprep.subr.mxu0 0.0
        %1481 = vmatpush2.xpose.msra.mxu0 0.0
        %1482 = vmatprep.subr.mxu0 0.0
        %1483 = vmatpush2.xpose.msra.mxu0 0.0
        %1484 = vmatprep.subr.mxu0 0.0
        %1485 = vmatpush2.xpose.msra.mxu0 0.0
        %1486 = vmatprep.subr.mxu0 0.0
        %1487 = vmatpush2.xpose.msra.mxu0 0.0
        %1488 = vmatprep.subr.mxu0 0.0
        %1489 = vmatpush2.xpose.msra.mxu0 0.0
        %1490 = vmatprep.subr.mxu0 0.0
        %1491 = vmatpush2.xpose.msra.mxu0 0.0
        %1492 = vmatprep.subr.mxu0 0.0
        %1493 = vmatpush2.xpose.msra.mxu0 0.0
        %1494 = vmatprep.subr.mxu0 0.0
        %1495 = vmatpush2.xpose.msra.mxu0 0.0
        %1496 = vmatprep.subr.mxu0 0.0
        %1497 = vmatpush2.xpose.msra.mxu0 0.0
        %1498 = vmatprep.subr.mxu0 0.0
        %1499 = vmatpush2.xpose.msra.mxu0 0.0
        %1500 = vmatprep.subr.mxu0 0.0
        %1501 = vmatpush2.xpose.msra.mxu0 0.0
        %1502 = vmatprep.subr.mxu0 0.0
        %1503 = vmatpush2.xpose.msra.mxu0 0.0
        %1504 = vmatprep.mubr.f32.mxu0 0.0
        %1505 = vmatmul.mubr.f32.gmra.mxu0 %v1436
        %v1506 = vpop.f32.mrf.mxu0
        %v1507 = vadd.f32 %v1263, %v1506
        %v1508 = vpop.f32.mrf.mxu0
        %1509 = vdwg.mxu0
        %v1510 = vsel %vm1268, %v1507, -inf
        %1511 = vmax.xlane.f32.xlu0 %v1510
        %v1512 = vpop.xlane.xlu0 %1511
        %v1513 = vsub.f32 %v1507, %v1512
        %v1514 = vmul.f32 %v1513, 1.442695
        %v1515 = vpow.pop %v1514
        %v1516 = vsel %vm1268, %v1515, 0.0
        %1517 = vadd.xlane.f32.xlu0 %v1516
        %v1518 = vpop.xlane.xlu0 %1517
        %v1519 = vrcp.pop %v1518
        %v1520 = vmul.f32 %v1515, %v1519
        %1521 = vrot.lane.b32.xlu0 %v1251, 56
        %v1522 = vpop.permute.xlu0 %1521
        %v1525 = vsel %vm1268, %v1520, 0
        %1527 = vmatprep.subr.mxu0 0.0
        %1528 = vmatpush1.msra.mxu0 0.0
        %1529 = vmatprep.subr.mxu0 0.0
        %1530 = vmatpush1.msra.mxu0 0.0
        %1531 = vmatprep.subr.mxu0 0.0
        %1532 = vmatpush1.msra.mxu0 0.0
        %1533 = vmatprep.subr.mxu0 0.0
        %1534 = vmatpush1.msra.mxu0 0.0
        %1535 = vmatprep.subr.mxu0 0.0
        %1536 = vmatpush1.msra.mxu0 0.0
        %1537 = vmatprep.subr.mxu0 0.0
        %1538 = vmatpush1.msra.mxu0 0.0
        %1539 = vmatprep.subr.mxu0 0.0
        %1540 = vmatpush1.msra.mxu0 0.0
        %1541 = vmatprep.subr.mxu0 0.0
        %1542 = vmatpush1.msra.mxu0 0.0
        %1543 = vmatprep.subr.mxu0 0.0
        %1544 = vmatpush1.msra.mxu0 0.0
        %1545 = vmatprep.subr.mxu0 0.0
        %1546 = vmatpush1.msra.mxu0 0.0
        %1547 = vmatprep.subr.mxu0 0.0
        %1548 = vmatpush1.msra.mxu0 0.0
        %1549 = vmatprep.subr.mxu0 0.0
        %1550 = vmatpush1.msra.mxu0 0.0
        %1551 = vmatprep.subr.mxu0 0.0
        %1552 = vmatpush1.msra.mxu0 0.0
        %1553 = vmatprep.subr.mxu0 0.0
        %1554 = vmatpush1.msra.mxu0 0.0
        %1555 = vmatprep.subr.mxu0 0.0
        %1556 = vmatpush1.msra.mxu0 0.0
        %1557 = vmatprep.subr.mxu0 0.0
        %1558 = vmatpush1.msra.mxu0 %v1522
        %1559 = vmatprep.subr.mxu0 0.0
        %1560 = vmatpush2.msra.mxu0 0.0
        %1561 = vmatprep.subr.mxu0 0.0
        %1562 = vmatpush2.msra.mxu0 0.0
        %1563 = vmatprep.subr.mxu0 0.0
        %1564 = vmatpush2.msra.mxu0 0.0
        %1565 = vmatprep.subr.mxu0 0.0
        %1566 = vmatpush2.msra.mxu0 0.0
        %1567 = vmatprep.subr.mxu0 0.0
        %1568 = vmatpush2.msra.mxu0 0.0
        %1569 = vmatprep.subr.mxu0 0.0
        %1570 = vmatpush2.msra.mxu0 0.0
        %1571 = vmatprep.subr.mxu0 0.0
        %1572 = vmatpush2.msra.mxu0 0.0
        %1573 = vmatprep.subr.mxu0 0.0
        %1574 = vmatpush2.msra.mxu0 0.0
        %1575 = vmatprep.subr.mxu0 0.0
        %1576 = vmatpush2.msra.mxu0 0.0
        %1577 = vmatprep.subr.mxu0 0.0
        %1578 = vmatpush2.msra.mxu0 0.0
        %1579 = vmatprep.subr.mxu0 0.0
        %1580 = vmatpush2.msra.mxu0 0.0
        %1581 = vmatprep.subr.mxu0 0.0
        %1582 = vmatpush2.msra.mxu0 0.0
        %1583 = vmatprep.subr.mxu0 0.0
        %1584 = vmatpush2.msra.mxu0 0.0
        %1585 = vmatprep.subr.mxu0 0.0
        %1586 = vmatpush2.msra.mxu0 0.0
        %1587 = vmatprep.subr.mxu0 0.0
        %1588 = vmatpush2.msra.mxu0 0.0
        %1589 = vmatprep.subr.mxu0 0.0
        %1590 = vmatpush2.msra.mxu0 0.0
        %1591 = vmatprep.mubr.f32.mxu0 0.0
        %1592 = vmatmul.mubr.f32.gmra.mxu0 %v1525
        %v1593 = vpop.f32.mrf.mxu0
        %v1594 = vadd.f32 0.0, %v1593
        %v1595 = vpop.f32.mrf.mxu0
        %1596 = vdwg.mxu0
        %1598 = vrot.lane.b32.xlu0 %v1594, 8
        %v1599 = vpop.permute.xlu0 %1598
        %vm1601 = vcmask 130112
        %1602 = vst.msk [vmem:[#allocation3] sm:$0xff] %vm1601, %v1599
        %1603 = vrot.lane.b32.xlu0 %v1259, 112
        %v1604 = vpop.permute.xlu0 %1603
        %1605 = vrot.lane.b32.xlu0 %v1251, 80
        %v1606 = vpop.permute.xlu0 %1605
        %v1607 = vsel %vm1268, %v1604, 0
        %v1609 = vsel %vm1268, %v1606, 0
        %1611 = vmatprep.subr.mxu0 0.0
        %1612 = vmatpush1.xpose.msra.mxu0 0.0
        %1613 = vmatprep.subr.mxu0 0.0
        %1614 = vmatpush1.xpose.msra.mxu0 0.0
        %1615 = vmatprep.subr.mxu0 0.0
        %1616 = vmatpush1.xpose.msra.mxu0 0.0
        %1617 = vmatprep.subr.mxu0 0.0
        %1618 = vmatpush1.xpose.msra.mxu0 0.0
        %1619 = vmatprep.subr.mxu0 0.0
        %1620 = vmatpush1.xpose.msra.mxu0 0.0
        %1621 = vmatprep.subr.mxu0 0.0
        %1622 = vmatpush1.xpose.msra.mxu0 0.0
        %1623 = vmatprep.subr.mxu0 0.0
        %1624 = vmatpush1.xpose.msra.mxu0 0.0
        %1625 = vmatprep.subr.mxu0 0.0
        %1626 = vmatpush1.xpose.msra.mxu0 0.0
        %1627 = vmatprep.subr.mxu0 0.0
        %1628 = vmatpush1.xpose.msra.mxu0 0.0
        %1629 = vmatprep.subr.mxu0 0.0
        %1630 = vmatpush1.xpose.msra.mxu0 0.0
        %1631 = vmatprep.subr.mxu0 0.0
        %1632 = vmatpush1.xpose.msra.mxu0 0.0
        %1633 = vmatprep.subr.mxu0 0.0
        %1634 = vmatpush1.xpose.msra.mxu0 0.0
        %1635 = vmatprep.subr.mxu0 0.0
        %1636 = vmatpush1.xpose.msra.mxu0 0.0
        %1637 = vmatprep.subr.mxu0 0.0
        %1638 = vmatpush1.xpose.msra.mxu0 0.0
        %1639 = vmatprep.subr.mxu0 0.0
        %1640 = vmatpush1.xpose.msra.mxu0 0.0
        %1641 = vmatprep.subr.mxu0 0.0
        %1642 = vmatpush1.xpose.msra.mxu0 %v1609
        %1643 = vmatprep.subr.mxu0 0.0
        %1644 = vmatpush2.xpose.msra.mxu0 0.0
        %1645 = vmatprep.subr.mxu0 0.0
        %1646 = vmatpush2.xpose.msra.mxu0 0.0
        %1647 = vmatprep.subr.mxu0 0.0
        %1648 = vmatpush2.xpose.msra.mxu0 0.0
        %1649 = vmatprep.subr.mxu0 0.0
        %1650 = vmatpush2.xpose.msra.mxu0 0.0
        %1651 = vmatprep.subr.mxu0 0.0
        %1652 = vmatpush2.xpose.msra.mxu0 0.0
        %1653 = vmatprep.subr.mxu0 0.0
        %1654 = vmatpush2.xpose.msra.mxu0 0.0
        %1655 = vmatprep.subr.mxu0 0.0
        %1656 = vmatpush2.xpose.msra.mxu0 0.0
        %1657 = vmatprep.subr.mxu0 0.0
        %1658 = vmatpush2.xpose.msra.mxu0 0.0
        %1659 = vmatprep.subr.mxu0 0.0
        %1660 = vmatpush2.xpose.msra.mxu0 0.0
        %1661 = vmatprep.subr.mxu0 0.0
        %1662 = vmatpush2.xpose.msra.mxu0 0.0
        %1663 = vmatprep.subr.mxu0 0.0
        %1664 = vmatpush2.xpose.msra.mxu0 0.0
        %1665 = vmatprep.subr.mxu0 0.0
        %1666 = vmatpush2.xpose.msra.mxu0 0.0
        %1667 = vmatprep.subr.mxu0 0.0
        %1668 = vmatpush2.xpose.msra.mxu0 0.0
        %1669 = vmatprep.subr.mxu0 0.0
        %1670 = vmatpush2.xpose.msra.mxu0 0.0
        %1671 = vmatprep.subr.mxu0 0.0
        %1672 = vmatpush2.xpose.msra.mxu0 0.0
        %1673 = vmatprep.subr.mxu0 0.0
        %1674 = vmatpush2.xpose.msra.mxu0 0.0
        %1675 = vmatprep.mubr.f32.mxu0 0.0
        %1676 = vmatmul.mubr.f32.gmra.mxu0 %v1607
        %v1677 = vpop.f32.mrf.mxu0
        %v1678 = vadd.f32 %v1263, %v1677
        %v1679 = vpop.f32.mrf.mxu0
        %1680 = vdwg.mxu0
        %v1681 = vsel %vm1268, %v1678, -inf
        %1682 = vmax.xlane.f32.xlu0 %v1681
        %v1683 = vpop.xlane.xlu0 %1682
        %v1684 = vsub.f32 %v1678, %v1683
        %v1685 = vmul.f32 %v1684, 1.442695
        %v1686 = vpow.pop %v1685
        %v1687 = vsel %vm1268, %v1686, 0.0
        %1688 = vadd.xlane.f32.xlu0 %v1687
        %v1689 = vpop.xlane.xlu0 %1688
        %v1690 = vrcp.pop %v1689
        %v1691 = vmul.f32 %v1686, %v1690
        %1692 = vrot.lane.b32.xlu0 %v1251, 48
        %v1693 = vpop.permute.xlu0 %1692
        %v1696 = vsel %vm1268, %v1691, 0
        %1698 = vmatprep.subr.mxu0 0.0
        %1699 = vmatpush1.msra.mxu0 0.0
        %1700 = vmatprep.subr.mxu0 0.0
        %1701 = vmatpush1.msra.mxu0 0.0
        %1702 = vmatprep.subr.mxu0 0.0
        %1703 = vmatpush1.msra.mxu0 0.0
        %1704 = vmatprep.subr.mxu0 0.0
        %1705 = vmatpush1.msra.mxu0 0.0
        %1706 = vmatprep.subr.mxu0 0.0
        %1707 = vmatpush1.msra.mxu0 0.0
        %1708 = vmatprep.subr.mxu0 0.0
        %1709 = vmatpush1.msra.mxu0 0.0
        %1710 = vmatprep.subr.mxu0 0.0
        %1711 = vmatpush1.msra.mxu0 0.0
        %1712 = vmatprep.subr.mxu0 0.0
        %1713 = vmatpush1.msra.mxu0 0.0
        %1714 = vmatprep.subr.mxu0 0.0
        %1715 = vmatpush1.msra.mxu0 0.0
        %1716 = vmatprep.subr.mxu0 0.0
        %1717 = vmatpush1.msra.mxu0 0.0
        %1718 = vmatprep.subr.mxu0 0.0
        %1719 = vmatpush1.msra.mxu0 0.0
        %1720 = vmatprep.subr.mxu0 0.0
        %1721 = vmatpush1.msra.mxu0 0.0
        %1722 = vmatprep.subr.mxu0 0.0
        %1723 = vmatpush1.msra.mxu0 0.0
        %1724 = vmatprep.subr.mxu0 0.0
        %1725 = vmatpush1.msra.mxu0 0.0
        %1726 = vmatprep.subr.mxu0 0.0
        %1727 = vmatpush1.msra.mxu0 0.0
        %1728 = vmatprep.subr.mxu0 0.0
        %1729 = vmatpush1.msra.mxu0 %v1693
        %1730 = vmatprep.subr.mxu0 0.0
        %1731 = vmatpush2.msra.mxu0 0.0
        %1732 = vmatprep.subr.mxu0 0.0
        %1733 = vmatpush2.msra.mxu0 0.0
        %1734 = vmatprep.subr.mxu0 0.0
        %1735 = vmatpush2.msra.mxu0 0.0
        %1736 = vmatprep.subr.mxu0 0.0
        %1737 = vmatpush2.msra.mxu0 0.0
        %1738 = vmatprep.subr.mxu0 0.0
        %1739 = vmatpush2.msra.mxu0 0.0
        %1740 = vmatprep.subr.mxu0 0.0
        %1741 = vmatpush2.msra.mxu0 0.0
        %1742 = vmatprep.subr.mxu0 0.0
        %1743 = vmatpush2.msra.mxu0 0.0
        %1744 = vmatprep.subr.mxu0 0.0
        %1745 = vmatpush2.msra.mxu0 0.0
        %1746 = vmatprep.subr.mxu0 0.0
        %1747 = vmatpush2.msra.mxu0 0.0
        %1748 = vmatprep.subr.mxu0 0.0
        %1749 = vmatpush2.msra.mxu0 0.0
        %1750 = vmatprep.subr.mxu0 0.0
        %1751 = vmatpush2.msra.mxu0 0.0
        %1752 = vmatprep.subr.mxu0 0.0
        %1753 = vmatpush2.msra.mxu0 0.0
        %1754 = vmatprep.subr.mxu0 0.0
        %1755 = vmatpush2.msra.mxu0 0.0
        %1756 = vmatprep.subr.mxu0 0.0
        %1757 = vmatpush2.msra.mxu0 0.0
        %1758 = vmatprep.subr.mxu0 0.0
        %1759 = vmatpush2.msra.mxu0 0.0
        %1760 = vmatprep.subr.mxu0 0.0
        %1761 = vmatpush2.msra.mxu0 0.0
        %1762 = vmatprep.mubr.f32.mxu0 0.0
        %1763 = vmatmul.mubr.f32.gmra.mxu0 %v1696
        %v1764 = vpop.f32.mrf.mxu0
        %v1765 = vadd.f32 0.0, %v1764
        %v1766 = vpop.f32.mrf.mxu0
        %1767 = vdwg.mxu0
        %1769 = vrot.lane.b32.xlu0 %v1765, 16
        %v1770 = vpop.permute.xlu0 %1769
        %vm1772 = vcmask 195712
        %1773 = vst.msk [vmem:[#allocation3] sm:$0xff] %vm1772, %v1770
        %1774 = vrot.lane.b32.xlu0 %v1259, 104
        %v1775 = vpop.permute.xlu0 %1774
        %1776 = vrot.lane.b32.xlu0 %v1251, 72
        %v1777 = vpop.permute.xlu0 %1776
        %v1778 = vsel %vm1268, %v1775, 0
        %v1780 = vsel %vm1268, %v1777, 0
        %1782 = vmatprep.subr.mxu0 0.0
        %1783 = vmatpush1.xpose.msra.mxu0 0.0
        %1784 = vmatprep.subr.mxu0 0.0
        %1785 = vmatpush1.xpose.msra.mxu0 0.0
        %1786 = vmatprep.subr.mxu0 0.0
        %1787 = vmatpush1.xpose.msra.mxu0 0.0
        %1788 = vmatprep.subr.mxu0 0.0
        %1789 = vmatpush1.xpose.msra.mxu0 0.0
        %1790 = vmatprep.subr.mxu0 0.0
        %1791 = vmatpush1.xpose.msra.mxu0 0.0
        %1792 = vmatprep.subr.mxu0 0.0
        %1793 = vmatpush1.xpose.msra.mxu0 0.0
        %1794 = vmatprep.subr.mxu0 0.0
        %1795 = vmatpush1.xpose.msra.mxu0 0.0
        %1796 = vmatprep.subr.mxu0 0.0
        %1797 = vmatpush1.xpose.msra.mxu0 0.0
        %1798 = vmatprep.subr.mxu0 0.0
        %1799 = vmatpush1.xpose.msra.mxu0 0.0
        %1800 = vmatprep.subr.mxu0 0.0
        %1801 = vmatpush1.xpose.msra.mxu0 0.0
        %1802 = vmatprep.subr.mxu0 0.0
        %1803 = vmatpush1.xpose.msra.mxu0 0.0
        %1804 = vmatprep.subr.mxu0 0.0
        %1805 = vmatpush1.xpose.msra.mxu0 0.0
        %1806 = vmatprep.subr.mxu0 0.0
        %1807 = vmatpush1.xpose.msra.mxu0 0.0
        %1808 = vmatprep.subr.mxu0 0.0
        %1809 = vmatpush1.xpose.msra.mxu0 0.0
        %1810 = vmatprep.subr.mxu0 0.0
        %1811 = vmatpush1.xpose.msra.mxu0 0.0
        %1812 = vmatprep.subr.mxu0 0.0
        %1813 = vmatpush1.xpose.msra.mxu0 %v1780
        %1814 = vmatprep.subr.mxu0 0.0
        %1815 = vmatpush2.xpose.msra.mxu0 0.0
        %1816 = vmatprep.subr.mxu0 0.0
        %1817 = vmatpush2.xpose.msra.mxu0 0.0
        %1818 = vmatprep.subr.mxu0 0.0
        %1819 = vmatpush2.xpose.msra.mxu0 0.0
        %1820 = vmatprep.subr.mxu0 0.0
        %1821 = vmatpush2.xpose.msra.mxu0 0.0
        %1822 = vmatprep.subr.mxu0 0.0
        %1823 = vmatpush2.xpose.msra.mxu0 0.0
        %1824 = vmatprep.subr.mxu0 0.0
        %1825 = vmatpush2.xpose.msra.mxu0 0.0
        %1826 = vmatprep.subr.mxu0 0.0
        %1827 = vmatpush2.xpose.msra.mxu0 0.0
        %1828 = vmatprep.subr.mxu0 0.0
        %1829 = vmatpush2.xpose.msra.mxu0 0.0
        %1830 = vmatprep.subr.mxu0 0.0
        %1831 = vmatpush2.xpose.msra.mxu0 0.0
        %1832 = vmatprep.subr.mxu0 0.0
        %1833 = vmatpush2.xpose.msra.mxu0 0.0
        %1834 = vmatprep.subr.mxu0 0.0
        %1835 = vmatpush2.xpose.msra.mxu0 0.0
        %1836 = vmatprep.subr.mxu0 0.0
        %1837 = vmatpush2.xpose.msra.mxu0 0.0
        %1838 = vmatprep.subr.mxu0 0.0
        %1839 = vmatpush2.xpose.msra.mxu0 0.0
        %1840 = vmatprep.subr.mxu0 0.0
        %1841 = vmatpush2.xpose.msra.mxu0 0.0
        %1842 = vmatprep.subr.mxu0 0.0
        %1843 = vmatpush2.xpose.msra.mxu0 0.0
        %1844 = vmatprep.subr.mxu0 0.0
        %1845 = vmatpush2.xpose.msra.mxu0 0.0
        %1846 = vmatprep.mubr.f32.mxu0 0.0
        %1847 = vmatmul.mubr.f32.gmra.mxu0 %v1778
        %v1848 = vpop.f32.mrf.mxu0
        %v1849 = vadd.f32 %v1263, %v1848
        %v1850 = vpop.f32.mrf.mxu0
        %1851 = vdwg.mxu0
        %v1852 = vsel %vm1268, %v1849, -inf
        %1853 = vmax.xlane.f32.xlu0 %v1852
        %v1854 = vpop.xlane.xlu0 %1853
        %v1855 = vsub.f32 %v1849, %v1854
        %v1856 = vmul.f32 %v1855, 1.442695
        %v1857 = vpow.pop %v1856
        %v1858 = vsel %vm1268, %v1857, 0.0
        %1859 = vadd.xlane.f32.xlu0 %v1858
        %v1860 = vpop.xlane.xlu0 %1859
        %v1861 = vrcp.pop %v1860
        %v1862 = vmul.f32 %v1857, %v1861
        %1863 = vrot.lane.b32.xlu0 %v1251, 40
        %v1864 = vpop.permute.xlu0 %1863
        %v1867 = vsel %vm1268, %v1862, 0
        %1869 = vmatprep.subr.mxu0 0.0
        %1870 = vmatpush1.msra.mxu0 0.0
        %1871 = vmatprep.subr.mxu0 0.0
        %1872 = vmatpush1.msra.mxu0 0.0
        %1873 = vmatprep.subr.mxu0 0.0
        %1874 = vmatpush1.msra.mxu0 0.0
        %1875 = vmatprep.subr.mxu0 0.0
        %1876 = vmatpush1.msra.mxu0 0.0
        %1877 = vmatprep.subr.mxu0 0.0
        %1878 = vmatpush1.msra.mxu0 0.0
        %1879 = vmatprep.subr.mxu0 0.0
        %1880 = vmatpush1.msra.mxu0 0.0
        %1881 = vmatprep.subr.mxu0 0.0
        %1882 = vmatpush1.msra.mxu0 0.0
        %1883 = vmatprep.subr.mxu0 0.0
        %1884 = vmatpush1.msra.mxu0 0.0
        %1885 = vmatprep.subr.mxu0 0.0
        %1886 = vmatpush1.msra.mxu0 0.0
        %1887 = vmatprep.subr.mxu0 0.0
        %1888 = vmatpush1.msra.mxu0 0.0
        %1889 = vmatprep.subr.mxu0 0.0
        %1890 = vmatpush1.msra.mxu0 0.0
        %1891 = vmatprep.subr.mxu0 0.0
        %1892 = vmatpush1.msra.mxu0 0.0
        %1893 = vmatprep.subr.mxu0 0.0
        %1894 = vmatpush1.msra.mxu0 0.0
        %1895 = vmatprep.subr.mxu0 0.0
        %1896 = vmatpush1.msra.mxu0 0.0
        %1897 = vmatprep.subr.mxu0 0.0
        %1898 = vmatpush1.msra.mxu0 0.0
        %1899 = vmatprep.subr.mxu0 0.0
        %1900 = vmatpush1.msra.mxu0 %v1864
        %1901 = vmatprep.subr.mxu0 0.0
        %1902 = vmatpush2.msra.mxu0 0.0
        %1903 = vmatprep.subr.mxu0 0.0
        %1904 = vmatpush2.msra.mxu0 0.0
        %1905 = vmatprep.subr.mxu0 0.0
        %1906 = vmatpush2.msra.mxu0 0.0
        %1907 = vmatprep.subr.mxu0 0.0
        %1908 = vmatpush2.msra.mxu0 0.0
        %1909 = vmatprep.subr.mxu0 0.0
        %1910 = vmatpush2.msra.mxu0 0.0
        %1911 = vmatprep.subr.mxu0 0.0
        %1912 = vmatpush2.msra.mxu0 0.0
        %1913 = vmatprep.subr.mxu0 0.0
        %1914 = vmatpush2.msra.mxu0 0.0
        %1915 = vmatprep.subr.mxu0 0.0
        %1916 = vmatpush2.msra.mxu0 0.0
        %1917 = vmatprep.subr.mxu0 0.0
        %1918 = vmatpush2.msra.mxu0 0.0
        %1919 = vmatprep.subr.mxu0 0.0
        %1920 = vmatpush2.msra.mxu0 0.0
        %1921 = vmatprep.subr.mxu0 0.0
        %1922 = vmatpush2.msra.mxu0 0.0
        %1923 = vmatprep.subr.mxu0 0.0
        %1924 = vmatpush2.msra.mxu0 0.0
        %1925 = vmatprep.subr.mxu0 0.0
        %1926 = vmatpush2.msra.mxu0 0.0
        %1927 = vmatprep.subr.mxu0 0.0
        %1928 = vmatpush2.msra.mxu0 0.0
        %1929 = vmatprep.subr.mxu0 0.0
        %1930 = vmatpush2.msra.mxu0 0.0
        %1931 = vmatprep.subr.mxu0 0.0
        %1932 = vmatpush2.msra.mxu0 0.0
        %1933 = vmatprep.mubr.f32.mxu0 0.0
        %1934 = vmatmul.mubr.f32.gmra.mxu0 %v1867
        %v1935 = vpop.f32.mrf.mxu0
        %v1936 = vadd.f32 0.0, %v1935
        %v1937 = vpop.f32.mrf.mxu0
        %1938 = vdwg.mxu0
        %1940 = vrot.lane.b32.xlu0 %v1936, 24
        %v1941 = vpop.permute.xlu0 %1940
        %vm1943 = vcmask 261312
        %1944 = vst.msk [vmem:[#allocation3] sm:$0xff] %vm1943, %v1941
        %1946 = vrot.lane.b32.xlu0 %v1256, 96
        %v1947 = vpop.permute.xlu0 %1946
        %v1949 = vsel %vm1268, %v1260, 0
        %v1951 = vsel %vm1268, %v1947, 0
        %1953 = vmatprep.subr.mxu0 0.0
        %1954 = vmatpush1.xpose.msra.mxu0 0.0
        %1955 = vmatprep.subr.mxu0 0.0
        %1956 = vmatpush1.xpose.msra.mxu0 0.0
        %1957 = vmatprep.subr.mxu0 0.0
        %1958 = vmatpush1.xpose.msra.mxu0 0.0
        %1959 = vmatprep.subr.mxu0 0.0
        %1960 = vmatpush1.xpose.msra.mxu0 0.0
        %1961 = vmatprep.subr.mxu0 0.0
        %1962 = vmatpush1.xpose.msra.mxu0 0.0
        %1963 = vmatprep.subr.mxu0 0.0
        %1964 = vmatpush1.xpose.msra.mxu0 0.0
        %1965 = vmatprep.subr.mxu0 0.0
        %1966 = vmatpush1.xpose.msra.mxu0 0.0
        %1967 = vmatprep.subr.mxu0 0.0
        %1968 = vmatpush1.xpose.msra.mxu0 0.0
        %1969 = vmatprep.subr.mxu0 0.0
        %1970 = vmatpush1.xpose.msra.mxu0 0.0
        %1971 = vmatprep.subr.mxu0 0.0
        %1972 = vmatpush1.xpose.msra.mxu0 0.0
        %1973 = vmatprep.subr.mxu0 0.0
        %1974 = vmatpush1.xpose.msra.mxu0 0.0
        %1975 = vmatprep.subr.mxu0 0.0
        %1976 = vmatpush1.xpose.msra.mxu0 0.0
        %1977 = vmatprep.subr.mxu0 0.0
        %1978 = vmatpush1.xpose.msra.mxu0 0.0
        %1979 = vmatprep.subr.mxu0 0.0
        %1980 = vmatpush1.xpose.msra.mxu0 0.0
        %1981 = vmatprep.subr.mxu0 0.0
        %1982 = vmatpush1.xpose.msra.mxu0 0.0
        %1983 = vmatprep.subr.mxu0 0.0
        %1984 = vmatpush1.xpose.msra.mxu0 %v1951
        %1985 = vmatprep.subr.mxu0 0.0
        %1986 = vmatpush2.xpose.msra.mxu0 0.0
        %1987 = vmatprep.subr.mxu0 0.0
        %1988 = vmatpush2.xpose.msra.mxu0 0.0
        %1989 = vmatprep.subr.mxu0 0.0
        %1990 = vmatpush2.xpose.msra.mxu0 0.0
        %1991 = vmatprep.subr.mxu0 0.0
        %1992 = vmatpush2.xpose.msra.mxu0 0.0
        %1993 = vmatprep.subr.mxu0 0.0
        %1994 = vmatpush2.xpose.msra.mxu0 0.0
        %1995 = vmatprep.subr.mxu0 0.0
        %1996 = vmatpush2.xpose.msra.mxu0 0.0
        %1997 = vmatprep.subr.mxu0 0.0
        %1998 = vmatpush2.xpose.msra.mxu0 0.0
        %1999 = vmatprep.subr.mxu0 0.0
        %2000 = vmatpush2.xpose.msra.mxu0 0.0
        %2001 = vmatprep.subr.mxu0 0.0
        %2002 = vmatpush2.xpose.msra.mxu0 0.0
        %2003 = vmatprep.subr.mxu0 0.0
        %2004 = vmatpush2.xpose.msra.mxu0 0.0
        %2005 = vmatprep.subr.mxu0 0.0
        %2006 = vmatpush2.xpose.msra.mxu0 0.0
        %2007 = vmatprep.subr.mxu0 0.0
        %2008 = vmatpush2.xpose.msra.mxu0 0.0
        %2009 = vmatprep.subr.mxu0 0.0
        %2010 = vmatpush2.xpose.msra.mxu0 0.0
        %2011 = vmatprep.subr.mxu0 0.0
        %2012 = vmatpush2.xpose.msra.mxu0 0.0
        %2013 = vmatprep.subr.mxu0 0.0
        %2014 = vmatpush2.xpose.msra.mxu0 0.0
        %2015 = vmatprep.subr.mxu0 0.0
        %2016 = vmatpush2.xpose.msra.mxu0 0.0
        %2017 = vmatprep.mubr.f32.mxu0 0.0
        %2018 = vmatmul.mubr.f32.gmra.mxu0 %v1949
        %v2019 = vpop.f32.mrf.mxu0
        %v2020 = vadd.f32 %v1264, %v2019
        %v2021 = vpop.f32.mrf.mxu0
        %2022 = vdwg.mxu0
        %v2023 = vsel %vm1268, %v2020, -inf
        %2024 = vmax.xlane.f32.xlu0 %v2023
        %v2025 = vpop.xlane.xlu0 %2024
        %v2026 = vsub.f32 %v2020, %v2025
        %v2027 = vmul.f32 %v2026, 1.442695
        %v2028 = vpow.pop %v2027
        %v2029 = vsel %vm1268, %v2028, 0.0
        %2030 = vadd.xlane.f32.xlu0 %v2029
        %v2031 = vpop.xlane.xlu0 %2030
        %v2032 = vrcp.pop %v2031
        %v2033 = vmul.f32 %v2028, %v2032
        %2034 = vrot.lane.b32.xlu0 %v1256, 64
        %v2035 = vpop.permute.xlu0 %2034
        %v2038 = vsel %vm1268, %v2033, 0
        %2040 = vmatprep.subr.mxu0 0.0
        %2041 = vmatpush1.msra.mxu0 0.0
        %2042 = vmatprep.subr.mxu0 0.0
        %2043 = vmatpush1.msra.mxu0 0.0
        %2044 = vmatprep.subr.mxu0 0.0
        %2045 = vmatpush1.msra.mxu0 0.0
        %2046 = vmatprep.subr.mxu0 0.0
        %2047 = vmatpush1.msra.mxu0 0.0
        %2048 = vmatprep.subr.mxu0 0.0
        %2049 = vmatpush1.msra.mxu0 0.0
        %2050 = vmatprep.subr.mxu0 0.0
        %2051 = vmatpush1.msra.mxu0 0.0
        %2052 = vmatprep.subr.mxu0 0.0
        %2053 = vmatpush1.msra.mxu0 0.0
        %2054 = vmatprep.subr.mxu0 0.0
        %2055 = vmatpush1.msra.mxu0 0.0
        %2056 = vmatprep.subr.mxu0 0.0
        %2057 = vmatpush1.msra.mxu0 0.0
        %2058 = vmatprep.subr.mxu0 0.0
        %2059 = vmatpush1.msra.mxu0 0.0
        %2060 = vmatprep.subr.mxu0 0.0
        %2061 = vmatpush1.msra.mxu0 0.0
        %2062 = vmatprep.subr.mxu0 0.0
        %2063 = vmatpush1.msra.mxu0 0.0
        %2064 = vmatprep.subr.mxu0 0.0
        %2065 = vmatpush1.msra.mxu0 0.0
        %2066 = vmatprep.subr.mxu0 0.0
        %2067 = vmatpush1.msra.mxu0 0.0
        %2068 = vmatprep.subr.mxu0 0.0
        %2069 = vmatpush1.msra.mxu0 0.0
        %2070 = vmatprep.subr.mxu0 0.0
        %2071 = vmatpush1.msra.mxu0 %v2035
        %2072 = vmatprep.subr.mxu0 0.0
        %2073 = vmatpush2.msra.mxu0 0.0
        %2074 = vmatprep.subr.mxu0 0.0
        %2075 = vmatpush2.msra.mxu0 0.0
        %2076 = vmatprep.subr.mxu0 0.0
        %2077 = vmatpush2.msra.mxu0 0.0
        %2078 = vmatprep.subr.mxu0 0.0
        %2079 = vmatpush2.msra.mxu0 0.0
        %2080 = vmatprep.subr.mxu0 0.0
        %2081 = vmatpush2.msra.mxu0 0.0
        %2082 = vmatprep.subr.mxu0 0.0
        %2083 = vmatpush2.msra.mxu0 0.0
        %2084 = vmatprep.subr.mxu0 0.0
        %2085 = vmatpush2.msra.mxu0 0.0
        %2086 = vmatprep.subr.mxu0 0.0
        %2087 = vmatpush2.msra.mxu0 0.0
        %2088 = vmatprep.subr.mxu0 0.0
        %2089 = vmatpush2.msra.mxu0 0.0
        %2090 = vmatprep.subr.mxu0 0.0
        %2091 = vmatpush2.msra.mxu0 0.0
        %2092 = vmatprep.subr.mxu0 0.0
        %2093 = vmatpush2.msra.mxu0 0.0
        %2094 = vmatprep.subr.mxu0 0.0
        %2095 = vmatpush2.msra.mxu0 0.0
        %2096 = vmatprep.subr.mxu0 0.0
        %2097 = vmatpush2.msra.mxu0 0.0
        %2098 = vmatprep.subr.mxu0 0.0
        %2099 = vmatpush2.msra.mxu0 0.0
        %2100 = vmatprep.subr.mxu0 0.0
        %2101 = vmatpush2.msra.mxu0 0.0
        %2102 = vmatprep.subr.mxu0 0.0
        %2103 = vmatpush2.msra.mxu0 0.0
        %2104 = vmatprep.mubr.f32.mxu0 0.0
        %2105 = vmatmul.mubr.f32.gmra.mxu0 %v2038
        %v2106 = vpop.f32.mrf.mxu0
        %v2107 = vadd.f32 0.0, %v2106
        %v2108 = vpop.f32.mrf.mxu0
        %2109 = vdwg.mxu0
        %2110 = vst.msk [vmem:[#allocation3 + $0x8] sm:$0xff] %vm1268, %v2107
        %2111 = vrot.lane.b32.xlu0 %v1260, 120
        %v2112 = vpop.permute.xlu0 %2111
        %2113 = vrot.lane.b32.xlu0 %v1256, 88
        %v2114 = vpop.permute.xlu0 %2113
        %v2115 = vsel %vm1268, %v2112, 0
        %v2117 = vsel %vm1268, %v2114, 0
        %2119 = vmatprep.subr.mxu0 0.0
        %2120 = vmatpush1.xpose.msra.mxu0 0.0
        %2121 = vmatprep.subr.mxu0 0.0
        %2122 = vmatpush1.xpose.msra.mxu0 0.0
        %2123 = vmatprep.subr.mxu0 0.0
        %2124 = vmatpush1.xpose.msra.mxu0 0.0
        %2125 = vmatprep.subr.mxu0 0.0
        %2126 = vmatpush1.xpose.msra.mxu0 0.0
        %2127 = vmatprep.subr.mxu0 0.0
        %2128 = vmatpush1.xpose.msra.mxu0 0.0
        %2129 = vmatprep.subr.mxu0 0.0
        %2130 = vmatpush1.xpose.msra.mxu0 0.0
        %2131 = vmatprep.subr.mxu0 0.0
        %2132 = vmatpush1.xpose.msra.mxu0 0.0
        %2133 = vmatprep.subr.mxu0 0.0
        %2134 = vmatpush1.xpose.msra.mxu0 0.0
        %2135 = vmatprep.subr.mxu0 0.0
        %2136 = vmatpush1.xpose.msra.mxu0 0.0
        %2137 = vmatprep.subr.mxu0 0.0
        %2138 = vmatpush1.xpose.msra.mxu0 0.0
        %2139 = vmatprep.subr.mxu0 0.0
        %2140 = vmatpush1.xpose.msra.mxu0 0.0
        %2141 = vmatprep.subr.mxu0 0.0
        %2142 = vmatpush1.xpose.msra.mxu0 0.0
        %2143 = vmatprep.subr.mxu0 0.0
        %2144 = vmatpush1.xpose.msra.mxu0 0.0
        %2145 = vmatprep.subr.mxu0 0.0
        %2146 = vmatpush1.xpose.msra.mxu0 0.0
        %2147 = vmatprep.subr.mxu0 0.0
        %2148 = vmatpush1.xpose.msra.mxu0 0.0
        %2149 = vmatprep.subr.mxu0 0.0
        %2150 = vmatpush1.xpose.msra.mxu0 %v2117
        %2151 = vmatprep.subr.mxu0 0.0
        %2152 = vmatpush2.xpose.msra.mxu0 0.0
        %2153 = vmatprep.subr.mxu0 0.0
        %2154 = vmatpush2.xpose.msra.mxu0 0.0
        %2155 = vmatprep.subr.mxu0 0.0
        %2156 = vmatpush2.xpose.msra.mxu0 0.0
        %2157 = vmatprep.subr.mxu0 0.0
        %2158 = vmatpush2.xpose.msra.mxu0 0.0
        %2159 = vmatprep.subr.mxu0 0.0
        %2160 = vmatpush2.xpose.msra.mxu0 0.0
        %2161 = vmatprep.subr.mxu0 0.0
        %2162 = vmatpush2.xpose.msra.mxu0 0.0
        %2163 = vmatprep.subr.mxu0 0.0
        %2164 = vmatpush2.xpose.msra.mxu0 0.0
        %2165 = vmatprep.subr.mxu0 0.0
        %2166 = vmatpush2.xpose.msra.mxu0 0.0
        %2167 = vmatprep.subr.mxu0 0.0
        %2168 = vmatpush2.xpose.msra.mxu0 0.0
        %2169 = vmatprep.subr.mxu0 0.0
        %2170 = vmatpush2.xpose.msra.mxu0 0.0
        %2171 = vmatprep.subr.mxu0 0.0
        %2172 = vmatpush2.xpose.msra.mxu0 0.0
        %2173 = vmatprep.subr.mxu0 0.0
        %2174 = vmatpush2.xpose.msra.mxu0 0.0
        %2175 = vmatprep.subr.mxu0 0.0
        %2176 = vmatpush2.xpose.msra.mxu0 0.0
        %2177 = vmatprep.subr.mxu0 0.0
        %2178 = vmatpush2.xpose.msra.mxu0 0.0
        %2179 = vmatprep.subr.mxu0 0.0
        %2180 = vmatpush2.xpose.msra.mxu0 0.0
        %2181 = vmatprep.subr.mxu0 0.0
        %2182 = vmatpush2.xpose.msra.mxu0 0.0
        %2183 = vmatprep.mubr.f32.mxu0 0.0
        %2184 = vmatmul.mubr.f32.gmra.mxu0 %v2115
        %v2185 = vpop.f32.mrf.mxu0
        %v2186 = vadd.f32 %v1264, %v2185
        %v2187 = vpop.f32.mrf.mxu0
        %2188 = vdwg.mxu0
        %v2189 = vsel %vm1268, %v2186, -inf
        %2190 = vmax.xlane.f32.xlu0 %v2189
        %v2191 = vpop.xlane.xlu0 %2190
        %v2192 = vsub.f32 %v2186, %v2191
        %v2193 = vmul.f32 %v2192, 1.442695
        %v2194 = vpow.pop %v2193
        %v2195 = vsel %vm1268, %v2194, 0.0
        %2196 = vadd.xlane.f32.xlu0 %v2195
        %v2197 = vpop.xlane.xlu0 %2196
        %v2198 = vrcp.pop %v2197
        %v2199 = vmul.f32 %v2194, %v2198
        %2200 = vrot.lane.b32.xlu0 %v1256, 56
        %v2201 = vpop.permute.xlu0 %2200
        %v2204 = vsel %vm1268, %v2199, 0
        %2206 = vmatprep.subr.mxu0 0.0
        %2207 = vmatpush1.msra.mxu0 0.0
        %2208 = vmatprep.subr.mxu0 0.0
        %2209 = vmatpush1.msra.mxu0 0.0
        %2210 = vmatprep.subr.mxu0 0.0
        %2211 = vmatpush1.msra.mxu0 0.0
        %2212 = vmatprep.subr.mxu0 0.0
        %2213 = vmatpush1.msra.mxu0 0.0
        %2214 = vmatprep.subr.mxu0 0.0
        %2215 = vmatpush1.msra.mxu0 0.0
        %2216 = vmatprep.subr.mxu0 0.0
        %2217 = vmatpush1.msra.mxu0 0.0
        %2218 = vmatprep.subr.mxu0 0.0
        %2219 = vmatpush1.msra.mxu0 0.0
        %2220 = vmatprep.subr.mxu0 0.0
        %2221 = vmatpush1.msra.mxu0 0.0
        %2222 = vmatprep.subr.mxu0 0.0
        %2223 = vmatpush1.msra.mxu0 0.0
        %2224 = vmatprep.subr.mxu0 0.0
        %2225 = vmatpush1.msra.mxu0 0.0
        %2226 = vmatprep.subr.mxu0 0.0
        %2227 = vmatpush1.msra.mxu0 0.0
        %2228 = vmatprep.subr.mxu0 0.0
        %2229 = vmatpush1.msra.mxu0 0.0
        %2230 = vmatprep.subr.mxu0 0.0
        %2231 = vmatpush1.msra.mxu0 0.0
        %2232 = vmatprep.subr.mxu0 0.0
        %2233 = vmatpush1.msra.mxu0 0.0
        %2234 = vmatprep.subr.mxu0 0.0
        %2235 = vmatpush1.msra.mxu0 0.0
        %2236 = vmatprep.subr.mxu0 0.0
        %2237 = vmatpush1.msra.mxu0 %v2201
        %2238 = vmatprep.subr.mxu0 0.0
        %2239 = vmatpush2.msra.mxu0 0.0
        %2240 = vmatprep.subr.mxu0 0.0
        %2241 = vmatpush2.msra.mxu0 0.0
        %2242 = vmatprep.subr.mxu0 0.0
        %2243 = vmatpush2.msra.mxu0 0.0
        %2244 = vmatprep.subr.mxu0 0.0
        %2245 = vmatpush2.msra.mxu0 0.0
        %2246 = vmatprep.subr.mxu0 0.0
        %2247 = vmatpush2.msra.mxu0 0.0
        %2248 = vmatprep.subr.mxu0 0.0
        %2249 = vmatpush2.msra.mxu0 0.0
        %2250 = vmatprep.subr.mxu0 0.0
        %2251 = vmatpush2.msra.mxu0 0.0
        %2252 = vmatprep.subr.mxu0 0.0
        %2253 = vmatpush2.msra.mxu0 0.0
        %2254 = vmatprep.subr.mxu0 0.0
        %2255 = vmatpush2.msra.mxu0 0.0
        %2256 = vmatprep.subr.mxu0 0.0
        %2257 = vmatpush2.msra.mxu0 0.0
        %2258 = vmatprep.subr.mxu0 0.0
        %2259 = vmatpush2.msra.mxu0 0.0
        %2260 = vmatprep.subr.mxu0 0.0
        %2261 = vmatpush2.msra.mxu0 0.0
        %2262 = vmatprep.subr.mxu0 0.0
        %2263 = vmatpush2.msra.mxu0 0.0
        %2264 = vmatprep.subr.mxu0 0.0
        %2265 = vmatpush2.msra.mxu0 0.0
        %2266 = vmatprep.subr.mxu0 0.0
        %2267 = vmatpush2.msra.mxu0 0.0
        %2268 = vmatprep.subr.mxu0 0.0
        %2269 = vmatpush2.msra.mxu0 0.0
        %2270 = vmatprep.mubr.f32.mxu0 0.0
        %2271 = vmatmul.mubr.f32.gmra.mxu0 %v2204
        %v2272 = vpop.f32.mrf.mxu0
        %v2273 = vadd.f32 0.0, %v2272
        %v2274 = vpop.f32.mrf.mxu0
        %2275 = vdwg.mxu0
        %2277 = vrot.lane.b32.xlu0 %v2273, 8
        %v2278 = vpop.permute.xlu0 %2277
        %2280 = vst.msk [vmem:[#allocation3 + $0x8] sm:$0xff] %vm1601, %v2278
        %2281 = vrot.lane.b32.xlu0 %v1260, 112
        %v2282 = vpop.permute.xlu0 %2281
        %2283 = vrot.lane.b32.xlu0 %v1256, 80
        %v2284 = vpop.permute.xlu0 %2283
        %v2285 = vsel %vm1268, %v2282, 0
        %v2287 = vsel %vm1268, %v2284, 0
        %2289 = vmatprep.subr.mxu0 0.0
        %2290 = vmatpush1.xpose.msra.mxu0 0.0
        %2291 = vmatprep.subr.mxu0 0.0
        %2292 = vmatpush1.xpose.msra.mxu0 0.0
        %2293 = vmatprep.subr.mxu0 0.0
        %2294 = vmatpush1.xpose.msra.mxu0 0.0
        %2295 = vmatprep.subr.mxu0 0.0
        %2296 = vmatpush1.xpose.msra.mxu0 0.0
        %2297 = vmatprep.subr.mxu0 0.0
        %2298 = vmatpush1.xpose.msra.mxu0 0.0
        %2299 = vmatprep.subr.mxu0 0.0
        %2300 = vmatpush1.xpose.msra.mxu0 0.0
        %2301 = vmatprep.subr.mxu0 0.0
        %2302 = vmatpush1.xpose.msra.mxu0 0.0
        %2303 = vmatprep.subr.mxu0 0.0
        %2304 = vmatpush1.xpose.msra.mxu0 0.0
        %2305 = vmatprep.subr.mxu0 0.0
        %2306 = vmatpush1.xpose.msra.mxu0 0.0
        %2307 = vmatprep.subr.mxu0 0.0
        %2308 = vmatpush1.xpose.msra.mxu0 0.0
        %2309 = vmatprep.subr.mxu0 0.0
        %2310 = vmatpush1.xpose.msra.mxu0 0.0
        %2311 = vmatprep.subr.mxu0 0.0
        %2312 = vmatpush1.xpose.msra.mxu0 0.0
        %2313 = vmatprep.subr.mxu0 0.0
        %2314 = vmatpush1.xpose.msra.mxu0 0.0
        %2315 = vmatprep.subr.mxu0 0.0
        %2316 = vmatpush1.xpose.msra.mxu0 0.0
        %2317 = vmatprep.subr.mxu0 0.0
        %2318 = vmatpush1.xpose.msra.mxu0 0.0
        %2319 = vmatprep.subr.mxu0 0.0
        %2320 = vmatpush1.xpose.msra.mxu0 %v2287
        %2321 = vmatprep.subr.mxu0 0.0
        %2322 = vmatpush2.xpose.msra.mxu0 0.0
        %2323 = vmatprep.subr.mxu0 0.0
        %2324 = vmatpush2.xpose.msra.mxu0 0.0
        %2325 = vmatprep.subr.mxu0 0.0
        %2326 = vmatpush2.xpose.msra.mxu0 0.0
        %2327 = vmatprep.subr.mxu0 0.0
        %2328 = vmatpush2.xpose.msra.mxu0 0.0
        %2329 = vmatprep.subr.mxu0 0.0
        %2330 = vmatpush2.xpose.msra.mxu0 0.0
        %2331 = vmatprep.subr.mxu0 0.0
        %2332 = vmatpush2.xpose.msra.mxu0 0.0
        %2333 = vmatprep.subr.mxu0 0.0
        %2334 = vmatpush2.xpose.msra.mxu0 0.0
        %2335 = vmatprep.subr.mxu0 0.0
        %2336 = vmatpush2.xpose.msra.mxu0 0.0
        %2337 = vmatprep.subr.mxu0 0.0
        %2338 = vmatpush2.xpose.msra.mxu0 0.0
        %2339 = vmatprep.subr.mxu0 0.0
        %2340 = vmatpush2.xpose.msra.mxu0 0.0
        %2341 = vmatprep.subr.mxu0 0.0
        %2342 = vmatpush2.xpose.msra.mxu0 0.0
        %2343 = vmatprep.subr.mxu0 0.0
        %2344 = vmatpush2.xpose.msra.mxu0 0.0
        %2345 = vmatprep.subr.mxu0 0.0
        %2346 = vmatpush2.xpose.msra.mxu0 0.0
        %2347 = vmatprep.subr.mxu0 0.0
        %2348 = vmatpush2.xpose.msra.mxu0 0.0
        %2349 = vmatprep.subr.mxu0 0.0
        %2350 = vmatpush2.xpose.msra.mxu0 0.0
        %2351 = vmatprep.subr.mxu0 0.0
        %2352 = vmatpush2.xpose.msra.mxu0 0.0
        %2353 = vmatprep.mubr.f32.mxu0 0.0
        %2354 = vmatmul.mubr.f32.gmra.mxu0 %v2285
        %v2355 = vpop.f32.mrf.mxu0
        %v2356 = vadd.f32 %v1264, %v2355
        %v2357 = vpop.f32.mrf.mxu0
        %2358 = vdwg.mxu0
        %v2359 = vsel %vm1268, %v2356, -inf
        %2360 = vmax.xlane.f32.xlu0 %v2359
        %v2361 = vpop.xlane.xlu0 %2360
        %v2362 = vsub.f32 %v2356, %v2361
        %v2363 = vmul.f32 %v2362, 1.442695
        %v2364 = vpow.pop %v2363
        %v2365 = vsel %vm1268, %v2364, 0.0
        %2366 = vadd.xlane.f32.xlu0 %v2365
        %v2367 = vpop.xlane.xlu0 %2366
        %v2368 = vrcp.pop %v2367
        %v2369 = vmul.f32 %v2364, %v2368
        %2370 = vrot.lane.b32.xlu0 %v1256, 48
        %v2371 = vpop.permute.xlu0 %2370
        %v2374 = vsel %vm1268, %v2369, 0
        %2376 = vmatprep.subr.mxu0 0.0
        %2377 = vmatpush1.msra.mxu0 0.0
        %2378 = vmatprep.subr.mxu0 0.0
        %2379 = vmatpush1.msra.mxu0 0.0
        %2380 = vmatprep.subr.mxu0 0.0
        %2381 = vmatpush1.msra.mxu0 0.0
        %2382 = vmatprep.subr.mxu0 0.0
        %2383 = vmatpush1.msra.mxu0 0.0
        %2384 = vmatprep.subr.mxu0 0.0
        %2385 = vmatpush1.msra.mxu0 0.0
        %2386 = vmatprep.subr.mxu0 0.0
        %2387 = vmatpush1.msra.mxu0 0.0
        %2388 = vmatprep.subr.mxu0 0.0
        %2389 = vmatpush1.msra.mxu0 0.0
        %2390 = vmatprep.subr.mxu0 0.0
        %2391 = vmatpush1.msra.mxu0 0.0
        %2392 = vmatprep.subr.mxu0 0.0
        %2393 = vmatpush1.msra.mxu0 0.0
        %2394 = vmatprep.subr.mxu0 0.0
        %2395 = vmatpush1.msra.mxu0 0.0
        %2396 = vmatprep.subr.mxu0 0.0
        %2397 = vmatpush1.msra.mxu0 0.0
        %2398 = vmatprep.subr.mxu0 0.0
        %2399 = vmatpush1.msra.mxu0 0.0
        %2400 = vmatprep.subr.mxu0 0.0
        %2401 = vmatpush1.msra.mxu0 0.0
        %2402 = vmatprep.subr.mxu0 0.0
        %2403 = vmatpush1.msra.mxu0 0.0
        %2404 = vmatprep.subr.mxu0 0.0
        %2405 = vmatpush1.msra.mxu0 0.0
        %2406 = vmatprep.subr.mxu0 0.0
        %2407 = vmatpush1.msra.mxu0 %v2371
        %2408 = vmatprep.subr.mxu0 0.0
        %2409 = vmatpush2.msra.mxu0 0.0
        %2410 = vmatprep.subr.mxu0 0.0
        %2411 = vmatpush2.msra.mxu0 0.0
        %2412 = vmatprep.subr.mxu0 0.0
        %2413 = vmatpush2.msra.mxu0 0.0
        %2414 = vmatprep.subr.mxu0 0.0
        %2415 = vmatpush2.msra.mxu0 0.0
        %2416 = vmatprep.subr.mxu0 0.0
        %2417 = vmatpush2.msra.mxu0 0.0
        %2418 = vmatprep.subr.mxu0 0.0
        %2419 = vmatpush2.msra.mxu0 0.0
        %2420 = vmatprep.subr.mxu0 0.0
        %2421 = vmatpush2.msra.mxu0 0.0
        %2422 = vmatprep.subr.mxu0 0.0
        %2423 = vmatpush2.msra.mxu0 0.0
        %2424 = vmatprep.subr.mxu0 0.0
        %2425 = vmatpush2.msra.mxu0 0.0
        %2426 = vmatprep.subr.mxu0 0.0
        %2427 = vmatpush2.msra.mxu0 0.0
        %2428 = vmatprep.subr.mxu0 0.0
        %2429 = vmatpush2.msra.mxu0 0.0
        %2430 = vmatprep.subr.mxu0 0.0
        %2431 = vmatpush2.msra.mxu0 0.0
        %2432 = vmatprep.subr.mxu0 0.0
        %2433 = vmatpush2.msra.mxu0 0.0
        %2434 = vmatprep.subr.mxu0 0.0
        %2435 = vmatpush2.msra.mxu0 0.0
        %2436 = vmatprep.subr.mxu0 0.0
        %2437 = vmatpush2.msra.mxu0 0.0
        %2438 = vmatprep.subr.mxu0 0.0
        %2439 = vmatpush2.msra.mxu0 0.0
        %2440 = vmatprep.mubr.f32.mxu0 0.0
        %2441 = vmatmul.mubr.f32.gmra.mxu0 %v2374
        %v2442 = vpop.f32.mrf.mxu0
        %v2443 = vadd.f32 0.0, %v2442
        %v2444 = vpop.f32.mrf.mxu0
        %2445 = vdwg.mxu0
        %2447 = vrot.lane.b32.xlu0 %v2443, 16
        %v2448 = vpop.permute.xlu0 %2447
        %2450 = vst.msk [vmem:[#allocation3 + $0x8] sm:$0xff] %vm1772, %v2448
        %2451 = vrot.lane.b32.xlu0 %v1260, 104
        %v2452 = vpop.permute.xlu0 %2451
        %2453 = vrot.lane.b32.xlu0 %v1256, 72
        %v2454 = vpop.permute.xlu0 %2453
        %v2455 = vsel %vm1268, %v2452, 0
        %v2457 = vsel %vm1268, %v2454, 0
        %2459 = vmatprep.subr.mxu0 0.0
        %2460 = vmatpush1.xpose.msra.mxu0 0.0
        %2461 = vmatprep.subr.mxu0 0.0
        %2462 = vmatpush1.xpose.msra.mxu0 0.0
        %2463 = vmatprep.subr.mxu0 0.0
        %2464 = vmatpush1.xpose.msra.mxu0 0.0
        %2465 = vmatprep.subr.mxu0 0.0
        %2466 = vmatpush1.xpose.msra.mxu0 0.0
        %2467 = vmatprep.subr.mxu0 0.0
        %2468 = vmatpush1.xpose.msra.mxu0 0.0
        %2469 = vmatprep.subr.mxu0 0.0
        %2470 = vmatpush1.xpose.msra.mxu0 0.0
        %2471 = vmatprep.subr.mxu0 0.0
        %2472 = vmatpush1.xpose.msra.mxu0 0.0
        %2473 = vmatprep.subr.mxu0 0.0
        %2474 = vmatpush1.xpose.msra.mxu0 0.0
        %2475 = vmatprep.subr.mxu0 0.0
        %2476 = vmatpush1.xpose.msra.mxu0 0.0
        %2477 = vmatprep.subr.mxu0 0.0
        %2478 = vmatpush1.xpose.msra.mxu0 0.0
        %2479 = vmatprep.subr.mxu0 0.0
        %2480 = vmatpush1.xpose.msra.mxu0 0.0
        %2481 = vmatprep.subr.mxu0 0.0
        %2482 = vmatpush1.xpose.msra.mxu0 0.0
        %2483 = vmatprep.subr.mxu0 0.0
        %2484 = vmatpush1.xpose.msra.mxu0 0.0
        %2485 = vmatprep.subr.mxu0 0.0
        %2486 = vmatpush1.xpose.msra.mxu0 0.0
        %2487 = vmatprep.subr.mxu0 0.0
        %2488 = vmatpush1.xpose.msra.mxu0 0.0
        %2489 = vmatprep.subr.mxu0 0.0
        %2490 = vmatpush1.xpose.msra.mxu0 %v2457
        %2491 = vmatprep.subr.mxu0 0.0
        %2492 = vmatpush2.xpose.msra.mxu0 0.0
        %2493 = vmatprep.subr.mxu0 0.0
        %2494 = vmatpush2.xpose.msra.mxu0 0.0
        %2495 = vmatprep.subr.mxu0 0.0
        %2496 = vmatpush2.xpose.msra.mxu0 0.0
        %2497 = vmatprep.subr.mxu0 0.0
        %2498 = vmatpush2.xpose.msra.mxu0 0.0
        %2499 = vmatprep.subr.mxu0 0.0
        %2500 = vmatpush2.xpose.msra.mxu0 0.0
        %2501 = vmatprep.subr.mxu0 0.0
        %2502 = vmatpush2.xpose.msra.mxu0 0.0
        %2503 = vmatprep.subr.mxu0 0.0
        %2504 = vmatpush2.xpose.msra.mxu0 0.0
        %2505 = vmatprep.subr.mxu0 0.0
        %2506 = vmatpush2.xpose.msra.mxu0 0.0
        %2507 = vmatprep.subr.mxu0 0.0
        %2508 = vmatpush2.xpose.msra.mxu0 0.0
        %2509 = vmatprep.subr.mxu0 0.0
        %2510 = vmatpush2.xpose.msra.mxu0 0.0
        %2511 = vmatprep.subr.mxu0 0.0
        %2512 = vmatpush2.xpose.msra.mxu0 0.0
        %2513 = vmatprep.subr.mxu0 0.0
        %2514 = vmatpush2.xpose.msra.mxu0 0.0
        %2515 = vmatprep.subr.mxu0 0.0
        %2516 = vmatpush2.xpose.msra.mxu0 0.0
        %2517 = vmatprep.subr.mxu0 0.0
        %2518 = vmatpush2.xpose.msra.mxu0 0.0
        %2519 = vmatprep.subr.mxu0 0.0
        %2520 = vmatpush2.xpose.msra.mxu0 0.0
        %2521 = vmatprep.subr.mxu0 0.0
        %2522 = vmatpush2.xpose.msra.mxu0 0.0
        %2523 = vmatprep.mubr.f32.mxu0 0.0
        %2524 = vmatmul.mubr.f32.gmra.mxu0 %v2455
        %v2525 = vpop.f32.mrf.mxu0
        %v2526 = vadd.f32 %v1264, %v2525
        %v2527 = vpop.f32.mrf.mxu0
        %2528 = vdwg.mxu0
        %v2529 = vsel %vm1268, %v2526, -inf
        %2530 = vmax.xlane.f32.xlu0 %v2529
        %v2531 = vpop.xlane.xlu0 %2530
        %v2532 = vsub.f32 %v2526, %v2531
        %v2533 = vmul.f32 %v2532, 1.442695
        %v2534 = vpow.pop %v2533
        %v2535 = vsel %vm1268, %v2534, 0.0
        %2536 = vadd.xlane.f32.xlu0 %v2535
        %v2537 = vpop.xlane.xlu0 %2536
        %v2538 = vrcp.pop %v2537
        %v2539 = vmul.f32 %v2534, %v2538
        %2540 = vrot.lane.b32.xlu0 %v1256, 40
        %v2541 = vpop.permute.xlu0 %2540
        %v2544 = vsel %vm1268, %v2539, 0
        %2546 = vmatprep.subr.mxu0 0.0
        %2547 = vmatpush1.msra.mxu0 0.0
        %2548 = vmatprep.subr.mxu0 0.0
        %2549 = vmatpush1.msra.mxu0 0.0
        %2550 = vmatprep.subr.mxu0 0.0
        %2551 = vmatpush1.msra.mxu0 0.0
        %2552 = vmatprep.subr.mxu0 0.0
        %2553 = vmatpush1.msra.mxu0 0.0
        %2554 = vmatprep.subr.mxu0 0.0
        %2555 = vmatpush1.msra.mxu0 0.0
        %2556 = vmatprep.subr.mxu0 0.0
        %2557 = vmatpush1.msra.mxu0 0.0
        %2558 = vmatprep.subr.mxu0 0.0
        %2559 = vmatpush1.msra.mxu0 0.0
        %2560 = vmatprep.subr.mxu0 0.0
        %2561 = vmatpush1.msra.mxu0 0.0
        %2562 = vmatprep.subr.mxu0 0.0
        %2563 = vmatpush1.msra.mxu0 0.0
        %2564 = vmatprep.subr.mxu0 0.0
        %2565 = vmatpush1.msra.mxu0 0.0
        %2566 = vmatprep.subr.mxu0 0.0
        %2567 = vmatpush1.msra.mxu0 0.0
        %2568 = vmatprep.subr.mxu0 0.0
        %2569 = vmatpush1.msra.mxu0 0.0
        %2570 = vmatprep.subr.mxu0 0.0
        %2571 = vmatpush1.msra.mxu0 0.0
        %2572 = vmatprep.subr.mxu0 0.0
        %2573 = vmatpush1.msra.mxu0 0.0
        %2574 = vmatprep.subr.mxu0 0.0
        %2575 = vmatpush1.msra.mxu0 0.0
        %2576 = vmatprep.subr.mxu0 0.0
        %2577 = vmatpush1.msra.mxu0 %v2541
        %2578 = vmatprep.subr.mxu0 0.0
        %2579 = vmatpush2.msra.mxu0 0.0
        %2580 = vmatprep.subr.mxu0 0.0
        %2581 = vmatpush2.msra.mxu0 0.0
        %2582 = vmatprep.subr.mxu0 0.0
        %2583 = vmatpush2.msra.mxu0 0.0
        %2584 = vmatprep.subr.mxu0 0.0
        %2585 = vmatpush2.msra.mxu0 0.0
        %2586 = vmatprep.subr.mxu0 0.0
        %2587 = vmatpush2.msra.mxu0 0.0
        %2588 = vmatprep.subr.mxu0 0.0
        %2589 = vmatpush2.msra.mxu0 0.0
        %2590 = vmatprep.subr.mxu0 0.0
        %2591 = vmatpush2.msra.mxu0 0.0
        %2592 = vmatprep.subr.mxu0 0.0
        %2593 = vmatpush2.msra.mxu0 0.0
        %2594 = vmatprep.subr.mxu0 0.0
        %2595 = vmatpush2.msra.mxu0 0.0
        %2596 = vmatprep.subr.mxu0 0.0
        %2597 = vmatpush2.msra.mxu0 0.0
        %2598 = vmatprep.subr.mxu0 0.0
        %2599 = vmatpush2.msra.mxu0 0.0
        %2600 = vmatprep.subr.mxu0 0.0
        %2601 = vmatpush2.msra.mxu0 0.0
        %2602 = vmatprep.subr.mxu0 0.0
        %2603 = vmatpush2.msra.mxu0 0.0
        %2604 = vmatprep.subr.mxu0 0.0
        %2605 = vmatpush2.msra.mxu0 0.0
        %2606 = vmatprep.subr.mxu0 0.0
        %2607 = vmatpush2.msra.mxu0 0.0
        %2608 = vmatprep.subr.mxu0 0.0
        %2609 = vmatpush2.msra.mxu0 0.0
        %2610 = vmatprep.mubr.f32.mxu0 0.0
        %2611 = vmatmul.mubr.f32.gmra.mxu0 %v2544
        %v2612 = vpop.f32.mrf.mxu0
        %v2613 = vadd.f32 0.0, %v2612
        %v2614 = vpop.f32.mrf.mxu0
        %2615 = vdwg.mxu0
        %2617 = vrot.lane.b32.xlu0 %v2613, 24
        %v2618 = vpop.permute.xlu0 %2617
        %2620 = vst.msk [vmem:[#allocation3 + $0x8] sm:$0xff] %vm1943, %v2618
        %v2621 = vld [vmem:[#allocation3] sm:$0xff]
        %v2622 = vld [vmem:[#allocation3 + $0x8] sm:$0xff]
        %v2623 = vld [vmem:[%s1047] sm:$0xff]
        %v2624 = vld [vmem:[%s1047 + $0x8] sm:$0xff]
        %v2625 = vld [vmem:[%s1047 + $0x10] sm:$0xff]
        %v2626 = vld [vmem:[%s1047 + $0x18] sm:$0xff]
        %v2628 = vsel %vm1113, %v2621, 0
        %v2631 = vsel %vm1113, %v2622, 0
        %2633 = vmatprep.subr.mxu0 0.0
        %2634 = vmatpush1.msra.mxu0 0.0
        %2635 = vmatprep.subr.mxu0 0.0
        %2636 = vmatpush1.msra.mxu0 0.0
        %2637 = vmatprep.subr.mxu0 0.0
        %2638 = vmatpush1.msra.mxu0 0.0
        %2639 = vmatprep.subr.mxu0 0.0
        %2640 = vmatpush1.msra.mxu0 0.0
        %2641 = vmatprep.subr.mxu0 0.0
        %2642 = vmatpush1.msra.mxu0 0.0
        %2643 = vmatprep.subr.mxu0 0.0
        %2644 = vmatpush1.msra.mxu0 0.0
        %2645 = vmatprep.subr.mxu0 0.0
        %2646 = vmatpush1.msra.mxu0 0.0
        %2647 = vmatprep.subr.mxu0 0.0
        %2648 = vmatpush1.msra.mxu0 0.0
        %2649 = vmatprep.subr.mxu0 0.0
        %2650 = vmatpush1.msra.mxu0 0.0
        %2651 = vmatprep.subr.mxu0 0.0
        %2652 = vmatpush1.msra.mxu0 0.0
        %2653 = vmatprep.subr.mxu0 0.0
        %2654 = vmatpush1.msra.mxu0 0.0
        %2655 = vmatprep.subr.mxu0 0.0
        %2656 = vmatpush1.msra.mxu0 0.0
        %2657 = vmatprep.subr.mxu0 0.0
        %2658 = vmatpush1.msra.mxu0 %v2626
        %2659 = vmatprep.subr.mxu0 0.0
        %2660 = vmatpush1.msra.mxu0 %v2625
        %2661 = vmatprep.subr.mxu0 0.0
        %2662 = vmatpush1.msra.mxu0 %v2624
        %2663 = vmatprep.subr.mxu0 0.0
        %2664 = vmatpush1.msra.mxu0 %v2623
        %2665 = vmatprep.subr.mxu0 0.0
        %2666 = vmatpush2.msra.mxu0 0.0
        %2667 = vmatprep.subr.mxu0 0.0
        %2668 = vmatpush2.msra.mxu0 0.0
        %2669 = vmatprep.subr.mxu0 0.0
        %2670 = vmatpush2.msra.mxu0 0.0
        %2671 = vmatprep.subr.mxu0 0.0
        %2672 = vmatpush2.msra.mxu0 0.0
        %2673 = vmatprep.subr.mxu0 0.0
        %2674 = vmatpush2.msra.mxu0 0.0
        %2675 = vmatprep.subr.mxu0 0.0
        %2676 = vmatpush2.msra.mxu0 0.0
        %2677 = vmatprep.subr.mxu0 0.0
        %2678 = vmatpush2.msra.mxu0 0.0
        %2679 = vmatprep.subr.mxu0 0.0
        %2680 = vmatpush2.msra.mxu0 0.0
        %2681 = vmatprep.subr.mxu0 0.0
        %2682 = vmatpush2.msra.mxu0 0.0
        %2683 = vmatprep.subr.mxu0 0.0
        %2684 = vmatpush2.msra.mxu0 0.0
        %2685 = vmatprep.subr.mxu0 0.0
        %2686 = vmatpush2.msra.mxu0 0.0
        %2687 = vmatprep.subr.mxu0 0.0
        %2688 = vmatpush2.msra.mxu0 0.0
        %2689 = vmatprep.subr.mxu0 0.0
        %2690 = vmatpush2.msra.mxu0 0.0
        %2691 = vmatprep.subr.mxu0 0.0
        %2692 = vmatpush2.msra.mxu0 0.0
        %2693 = vmatprep.subr.mxu0 0.0
        %2694 = vmatpush2.msra.mxu0 0.0
        %2695 = vmatprep.subr.mxu0 0.0
        %2696 = vmatpush2.msra.mxu0 0.0
        %2697 = vmatprep.mubr.f32.mxu0 0.0
        %2698 = vmatmul.mubr.f32.gmra.mxu0 %v2628
        %v2699 = vpop.f32.mrf.mxu0
        %v2700 = vadd.f32 0.0, %v2699
        %v2701 = vpop.f32.mrf.mxu0
        %2702 = vmatprep.mubr.f32.mxu0 0.0
        %2703 = vmatmul.mubr.f32.gmra.mxu0 %v2631
        %v2704 = vpop.f32.mrf.mxu0
        %v2705 = vadd.f32 0.0, %v2704
        %v2706 = vpop.f32.mrf.mxu0
        %2707 = vdwg.mxu0
        %v2708 = vadd.f32 %v1111, %v2700
        %v2709 = vadd.f32 %v1112, %v2705
        %v2710 = vld [vmem:[%s1050] sm:$0x1]
        %v2712 = vlaneseq
        %v2713 = vshrl.u32 %v2712, 7
        %v2714 = vsub.s32 0, %v2713
        %v2715 = vrot.slane %v2710, %v2714
        %v2717 = vadd.f32 %v2708, %v2715
        %v2718 = vadd.f32 %v2709, %v2715
        %v2719 = vsel %vm1113, %v2717, 0.0
        %2720 = vadd.xlane.f32.xlu0 %v2719
        %v2721 = vpop.xlane.xlu0 %2720
        %v2722 = vsel %vm1113, %v2718, 0.0
        %2723 = vadd.xlane.f32.xlu0 %v2722
        %v2724 = vpop.xlane.xlu0 %2723
        %v2725 = vmul.f32 %v2721, %v1120
        %v2726 = vmul.f32 %v2724, %v1120
        %v2727 = vsub.f32 %v2717, %v2725
        %v2728 = vsub.f32 %v2718, %v2726
        %v2729 = vmul.f32 %v2727, %v2727
        %v2730 = vmul.f32 %v2728, %v2728
        %v2731 = vsel %vm1113, %v2729, 0.0
        %2732 = vadd.xlane.f32.xlu0 %v2731
        %v2733 = vpop.xlane.xlu0 %2732
        %v2734 = vsel %vm1113, %v2730, 0.0
        %2735 = vadd.xlane.f32.xlu0 %v2734
        %v2736 = vpop.xlane.xlu0 %2735
        %v2737 = vmul.f32 %v2733, 0.032258064
        %v2738 = vmul.f32 %v2736, 0.032258064
        %v2739 = vrsqrt.pop %v2737
        %v2740 = vmul.f32 %v2737, %v2739
        %vm2741 = vcmp.eq.f32.partialorder %v2737, inf
        %v2742 = vsel %vm2741, %v2737, %v2740
        %vm2743 = vcmp.eq.f32.partialorder %v2737, 0.0
        %v2744 = vand.u32 %v2737, 2147483648
        %v2745 = vsel %vm2743, %v2744, %v2742
        %v2746 = vrsqrt.pop %v2738
        %v2747 = vmul.f32 %v2738, %v2746
        %vm2748 = vcmp.eq.f32.partialorder %v2738, inf
        %v2749 = vsel %vm2748, %v2738, %v2747
        %vm2750 = vcmp.eq.f32.partialorder %v2738, 0.0
        %v2751 = vand.u32 %v2738, 2147483648
        %v2752 = vsel %vm2750, %v2751, %v2749
        %v2753 = vadd.f32 %v2745, 1e-06
        %v2754 = vadd.f32 %v2752, 1e-06
        %v2755 = vrcp.pop %v2753
        %v2756 = vrcp.pop %v2754
        %v2757 = vmul.f32 %v2727, %v2755
        %v2758 = vmul.f32 %v2728, %v2756
        %v2759 = vlaneseq
        %v2760 = vshrl.u32 %v2759, 7
        %v2761 = vsub.s32 1, %v2760
        %v2762 = vrot.slane %v1109, %v2761
        %v2763 = vmul.f32 %v2762, %v2757
        %v2764 = vmul.f32 %v2762, %v2758
        %v2765 = vlaneseq
        %v2766 = vshrl.u32 %v2765, 7
        %v2767 = vsub.s32 1, %v2766
        %v2768 = vrot.slane %v1110, %v2767
        %v2769 = vadd.f32 %v2763, %v2768
        %v2770 = vadd.f32 %v2764, %v2768
        %v2771 = vld [vmem:[%s1055] sm:$0xff]
        %v2772 = vld [vmem:[%s1055 + $0x8] sm:$0xff]
        %v2773 = vld [vmem:[%s1055 + $0x10] sm:$0xff]
        %v2774 = vld [vmem:[%s1055 + $0x18] sm:$0xff]
        %v2775 = vld [vmem:[%s1058] sm:$0x1]
        %v2777 = vlaneseq
        %v2778 = vshrl.u32 %v2777, 7
        %v2779 = vsub.s32 0, %v2778
        %v2780 = vrot.slane %v2775, %v2779
        %v2783 = vsel %vm1113, %v2769, 0
        %v2786 = vsel %vm1113, %v2770, 0
        %2788 = vmatprep.subr.mxu0 0.0
        %2789 = vmatpush1.msra.mxu0 0.0
        %2790 = vmatprep.subr.mxu0 0.0
        %2791 = vmatpush1.msra.mxu0 0.0
        %2792 = vmatprep.subr.mxu0 0.0
        %2793 = vmatpush1.msra.mxu0 0.0
        %2794 = vmatprep.subr.mxu0 0.0
        %2795 = vmatpush1.msra.mxu0 0.0
        %2796 = vmatprep.subr.mxu0 0.0
        %2797 = vmatpush1.msra.mxu0 0.0
        %2798 = vmatprep.subr.mxu0 0.0
        %2799 = vmatpush1.msra.mxu0 0.0
        %2800 = vmatprep.subr.mxu0 0.0
        %2801 = vmatpush1.msra.mxu0 0.0
        %2802 = vmatprep.subr.mxu0 0.0
        %2803 = vmatpush1.msra.mxu0 0.0
        %2804 = vmatprep.subr.mxu0 0.0
        %2805 = vmatpush1.msra.mxu0 0.0
        %2806 = vmatprep.subr.mxu0 0.0
        %2807 = vmatpush1.msra.mxu0 0.0
        %2808 = vmatprep.subr.mxu0 0.0
        %2809 = vmatpush1.msra.mxu0 0.0
        %2810 = vmatprep.subr.mxu0 0.0
        %2811 = vmatpush1.msra.mxu0 0.0
        %2812 = vmatprep.subr.mxu0 0.0
        %2813 = vmatpush1.msra.mxu0 %v2774
        %2814 = vmatprep.subr.mxu0 0.0
        %2815 = vmatpush1.msra.mxu0 %v2773
        %2816 = vmatprep.subr.mxu0 0.0
        %2817 = vmatpush1.msra.mxu0 %v2772
        %2818 = vmatprep.subr.mxu0 0.0
        %2819 = vmatpush1.msra.mxu0 %v2771
        %2820 = vmatprep.subr.mxu0 0.0
        %2821 = vmatpush2.msra.mxu0 0.0
        %2822 = vmatprep.subr.mxu0 0.0
        %2823 = vmatpush2.msra.mxu0 0.0
        %2824 = vmatprep.subr.mxu0 0.0
        %2825 = vmatpush2.msra.mxu0 0.0
        %2826 = vmatprep.subr.mxu0 0.0
        %2827 = vmatpush2.msra.mxu0 0.0
        %2828 = vmatprep.subr.mxu0 0.0
        %2829 = vmatpush2.msra.mxu0 0.0
        %2830 = vmatprep.subr.mxu0 0.0
        %2831 = vmatpush2.msra.mxu0 0.0
        %2832 = vmatprep.subr.mxu0 0.0
        %2833 = vmatpush2.msra.mxu0 0.0
        %2834 = vmatprep.subr.mxu0 0.0
        %2835 = vmatpush2.msra.mxu0 0.0
        %2836 = vmatprep.subr.mxu0 0.0
        %2837 = vmatpush2.msra.mxu0 0.0
        %2838 = vmatprep.subr.mxu0 0.0
        %2839 = vmatpush2.msra.mxu0 0.0
        %2840 = vmatprep.subr.mxu0 0.0
        %2841 = vmatpush2.msra.mxu0 0.0
        %2842 = vmatprep.subr.mxu0 0.0
        %2843 = vmatpush2.msra.mxu0 0.0
        %2844 = vmatprep.subr.mxu0 0.0
        %2845 = vmatpush2.msra.mxu0 0.0
        %2846 = vmatprep.subr.mxu0 0.0
        %2847 = vmatpush2.msra.mxu0 0.0
        %2848 = vmatprep.subr.mxu0 0.0
        %2849 = vmatpush2.msra.mxu0 0.0
        %2850 = vmatprep.subr.mxu0 0.0
        %2851 = vmatpush2.msra.mxu0 0.0
        %2852 = vmatprep.mubr.f32.mxu0 0.0
        %2853 = vmatmul.mubr.f32.gmra.mxu0 %v2783
        %v2854 = vpop.f32.mrf.mxu0
        %v2855 = vadd.f32 %v2780, %v2854
        %v2856 = vpop.f32.mrf.mxu0
        %2857 = vmatprep.mubr.f32.mxu0 0.0
        %2858 = vmatmul.mubr.f32.gmra.mxu0 %v2786
        %v2859 = vpop.f32.mrf.mxu0
        %v2860 = vadd.f32 %v2780, %v2859
        %v2861 = vpop.f32.mrf.mxu0
        %2862 = vdwg.mxu0
        %v2863 = vld [vmem:[#allocation4] sm:$0xff]
        %v2864 = vld [vmem:[#allocation4 + $0x8] sm:$0xff]
        %v2865 = vld [vmem:[#allocation4 + $0x10] sm:$0xff]
        %v2866 = vld [vmem:[#allocation4 + $0x18] sm:$0xff]
        %v2867 = vld [vmem:[%s858] sm:$0xff]
        %v2868 = vld [vmem:[%s858 + $0x8] sm:$0xff]
        %v2869 = vld [vmem:[%s858 + $0x10] sm:$0xff]
        %v2870 = vld [vmem:[%s858 + $0x18] sm:$0xff]
        %v2871 = vld [vmem:[%s1061] sm:$0x1]
        %v2873 = vlaneseq
        %v2874 = vshrl.u32 %v2873, 7
        %v2875 = vsub.s32 0, %v2874
        %v2876 = vrot.slane %v2871, %v2875
        %v2879 = vsel %vm1113, %v2863, 0
        %v2882 = vsel %vm1113, %v2864, 0
        %v2885 = vsel %vm1113, %v2865, 0
        %v2888 = vsel %vm1113, %v2866, 0
        %2890 = vmatprep.subr.mxu0 0.0
        %2891 = vmatpush1.msra.mxu0 0.0
        %2892 = vmatprep.subr.mxu0 0.0
        %2893 = vmatpush1.msra.mxu0 0.0
        %2894 = vmatprep.subr.mxu0 0.0
        %2895 = vmatpush1.msra.mxu0 0.0
        %2896 = vmatprep.subr.mxu0 0.0
        %2897 = vmatpush1.msra.mxu0 0.0
        %2898 = vmatprep.subr.mxu0 0.0
        %2899 = vmatpush1.msra.mxu0 0.0
        %2900 = vmatprep.subr.mxu0 0.0
        %2901 = vmatpush1.msra.mxu0 0.0
        %2902 = vmatprep.subr.mxu0 0.0
        %2903 = vmatpush1.msra.mxu0 0.0
        %2904 = vmatprep.subr.mxu0 0.0
        %2905 = vmatpush1.msra.mxu0 0.0
        %2906 = vmatprep.subr.mxu0 0.0
        %2907 = vmatpush1.msra.mxu0 0.0
        %2908 = vmatprep.subr.mxu0 0.0
        %2909 = vmatpush1.msra.mxu0 0.0
        %2910 = vmatprep.subr.mxu0 0.0
        %2911 = vmatpush1.msra.mxu0 0.0
        %2912 = vmatprep.subr.mxu0 0.0
        %2913 = vmatpush1.msra.mxu0 0.0
        %2914 = vmatprep.subr.mxu0 0.0
        %2915 = vmatpush1.msra.mxu0 %v2870
        %2916 = vmatprep.subr.mxu0 0.0
        %2917 = vmatpush1.msra.mxu0 %v2869
        %2918 = vmatprep.subr.mxu0 0.0
        %2919 = vmatpush1.msra.mxu0 %v2868
        %2920 = vmatprep.subr.mxu0 0.0
        %2921 = vmatpush1.msra.mxu0 %v2867
        %2922 = vmatprep.subr.mxu0 0.0
        %2923 = vmatpush2.msra.mxu0 0.0
        %2924 = vmatprep.subr.mxu0 0.0
        %2925 = vmatpush2.msra.mxu0 0.0
        %2926 = vmatprep.subr.mxu0 0.0
        %2927 = vmatpush2.msra.mxu0 0.0
        %2928 = vmatprep.subr.mxu0 0.0
        %2929 = vmatpush2.msra.mxu0 0.0
        %2930 = vmatprep.subr.mxu0 0.0
        %2931 = vmatpush2.msra.mxu0 0.0
        %2932 = vmatprep.subr.mxu0 0.0
        %2933 = vmatpush2.msra.mxu0 0.0
        %2934 = vmatprep.subr.mxu0 0.0
        %2935 = vmatpush2.msra.mxu0 0.0
        %2936 = vmatprep.subr.mxu0 0.0
        %2937 = vmatpush2.msra.mxu0 0.0
        %2938 = vmatprep.subr.mxu0 0.0
        %2939 = vmatpush2.msra.mxu0 0.0
        %2940 = vmatprep.subr.mxu0 0.0
        %2941 = vmatpush2.msra.mxu0 0.0
        %2942 = vmatprep.subr.mxu0 0.0
        %2943 = vmatpush2.msra.mxu0 0.0
        %2944 = vmatprep.subr.mxu0 0.0
        %2945 = vmatpush2.msra.mxu0 0.0
        %2946 = vmatprep.subr.mxu0 0.0
        %2947 = vmatpush2.msra.mxu0 0.0
        %2948 = vmatprep.subr.mxu0 0.0
        %2949 = vmatpush2.msra.mxu0 0.0
        %2950 = vmatprep.subr.mxu0 0.0
        %2951 = vmatpush2.msra.mxu0 0.0
        %2952 = vmatprep.subr.mxu0 0.0
        %2953 = vmatpush2.msra.mxu0 0.0
        %2954 = vmatprep.mubr.f32.mxu0 0.0
        %2955 = vmatmul.mubr.f32.gmra.mxu0 %v2879
        %v2956 = vpop.f32.mrf.mxu0
        %v2957 = vadd.f32 %v2876, %v2956
        %v2958 = vpop.f32.mrf.mxu0
        %2959 = vmatprep.mubr.f32.mxu0 0.0
        %2960 = vmatmul.mubr.f32.gmra.mxu0 %v2882
        %v2961 = vpop.f32.mrf.mxu0
        %v2962 = vadd.f32 %v2876, %v2961
        %v2963 = vpop.f32.mrf.mxu0
        %2964 = vmatprep.mubr.f32.mxu0 0.0
        %2965 = vmatmul.mubr.f32.gmra.mxu0 %v2885
        %v2966 = vpop.f32.mrf.mxu0
        %v2967 = vadd.f32 %v2876, %v2966
        %v2968 = vpop.f32.mrf.mxu0
        %2969 = vmatprep.mubr.f32.mxu0 0.0
        %2970 = vmatmul.mubr.f32.gmra.mxu0 %v2888
        %v2971 = vpop.f32.mrf.mxu0
        %v2972 = vadd.f32 %v2876, %v2971
        %v2973 = vpop.f32.mrf.mxu0
        %2974 = vdwg.mxu0
        %v2975 = vmul.f32 %v2855, 0.35355338
        %v2976 = vmul.f32 %v2860, 0.35355338
        %v2977 = vld [vmem:[%s1033] sm:$0x1]
        %v2978 = vld [vmem:[%s1033 + $0x1] sm:$0x1]
        %v2979 = vunpack.c.l.bf16 %v2977
        %v2980 = vunpack.c.l.bf16 %v2978
        %v2981 = vlaneseq
        %v2982 = vshrl.u32 %v2981, 7
        %v2983 = vsub.s32 0, %v2982
        %v2984 = vrot.slane %v2979, %v2983
        %v2986 = vsel %vm1268, %v2975, 0
        %v2989 = vsel %vm1268, %v2957, 0
        %v2992 = vsel %vm1268, %v2962, 0
        %2994 = vmatprep.subr.mxu0 0.0
        %2995 = vmatpush1.xpose.msra.mxu0 0.0
        %2996 = vmatprep.subr.mxu0 0.0
        %2997 = vmatpush1.xpose.msra.mxu0 0.0
        %2998 = vmatprep.subr.mxu0 0.0
        %2999 = vmatpush1.xpose.msra.mxu0 0.0
        %3000 = vmatprep.subr.mxu0 0.0
        %3001 = vmatpush1.xpose.msra.mxu0 0.0
        %3002 = vmatprep.subr.mxu0 0.0
        %3003 = vmatpush1.xpose.msra.mxu0 0.0
        %3004 = vmatprep.subr.mxu0 0.0
        %3005 = vmatpush1.xpose.msra.mxu0 0.0
        %3006 = vmatprep.subr.mxu0 0.0
        %3007 = vmatpush1.xpose.msra.mxu0 0.0
        %3008 = vmatprep.subr.mxu0 0.0
        %3009 = vmatpush1.xpose.msra.mxu0 0.0
        %3010 = vmatprep.subr.mxu0 0.0
        %3011 = vmatpush1.xpose.msra.mxu0 0.0
        %3012 = vmatprep.subr.mxu0 0.0
        %3013 = vmatpush1.xpose.msra.mxu0 0.0
        %3014 = vmatprep.subr.mxu0 0.0
        %3015 = vmatpush1.xpose.msra.mxu0 0.0
        %3016 = vmatprep.subr.mxu0 0.0
        %3017 = vmatpush1.xpose.msra.mxu0 0.0
        %3018 = vmatprep.subr.mxu0 0.0
        %3019 = vmatpush1.xpose.msra.mxu0 0.0
        %3020 = vmatprep.subr.mxu0 0.0
        %3021 = vmatpush1.xpose.msra.mxu0 0.0
        %3022 = vmatprep.subr.mxu0 0.0
        %3023 = vmatpush1.xpose.msra.mxu0 %v2992
        %3024 = vmatprep.subr.mxu0 0.0
        %3025 = vmatpush1.xpose.msra.mxu0 %v2989
        %3026 = vmatprep.subr.mxu0 0.0
        %3027 = vmatpush2.xpose.msra.mxu0 0.0
        %3028 = vmatprep.subr.mxu0 0.0
        %3029 = vmatpush2.xpose.msra.mxu0 0.0
        %3030 = vmatprep.subr.mxu0 0.0
        %3031 = vmatpush2.xpose.msra.mxu0 0.0
        %3032 = vmatprep.subr.mxu0 0.0
        %3033 = vmatpush2.xpose.msra.mxu0 0.0
        %3034 = vmatprep.subr.mxu0 0.0
        %3035 = vmatpush2.xpose.msra.mxu0 0.0
        %3036 = vmatprep.subr.mxu0 0.0
        %3037 = vmatpush2.xpose.msra.mxu0 0.0
        %3038 = vmatprep.subr.mxu0 0.0
        %3039 = vmatpush2.xpose.msra.mxu0 0.0
        %3040 = vmatprep.subr.mxu0 0.0
        %3041 = vmatpush2.xpose.msra.mxu0 0.0
        %3042 = vmatprep.subr.mxu0 0.0
        %3043 = vmatpush2.xpose.msra.mxu0 0.0
        %3044 = vmatprep.subr.mxu0 0.0
        %3045 = vmatpush2.xpose.msra.mxu0 0.0
        %3046 = vmatprep.subr.mxu0 0.0
        %3047 = vmatpush2.xpose.msra.mxu0 0.0
        %3048 = vmatprep.subr.mxu0 0.0
        %3049 = vmatpush2.xpose.msra.mxu0 0.0
        %3050 = vmatprep.subr.mxu0 0.0
        %3051 = vmatpush2.xpose.msra.mxu0 0.0
        %3052 = vmatprep.subr.mxu0 0.0
        %3053 = vmatpush2.xpose.msra.mxu0 0.0
        %3054 = vmatprep.subr.mxu0 0.0
        %3055 = vmatpush2.xpose.msra.mxu0 0.0
        %3056 = vmatprep.subr.mxu0 0.0
        %3057 = vmatpush2.xpose.msra.mxu0 0.0
        %3058 = vmatprep.mubr.f32.mxu0 0.0
        %3059 = vmatmul.mubr.f32.gmra.mxu0 %v2986
        %v3060 = vpop.f32.mrf.mxu0
        %v3061 = vadd.f32 %v2984, %v3060
        %v3062 = vpop.f32.mrf.mxu0
        %3063 = vdwg.mxu0
        %vm3064 = vcmask 80896
        %v3065 = vsel %vm3064, %v3061, -inf
        %3066 = vmax.xlane.f32.xlu0 %v3065
        %v3067 = vpop.xlane.xlu0 %3066
        %v3068 = vsub.f32 %v3061, %v3067
        %v3069 = vmul.f32 %v3068, 1.442695
        %v3070 = vpow.pop %v3069
        %v3071 = vsel %vm3064, %v3070, 0.0
        %3072 = vadd.xlane.f32.xlu0 %v3071
        %v3073 = vpop.xlane.xlu0 %3072
        %v3074 = vrcp.pop %v3073
        %v3075 = vmul.f32 %v3070, %v3074
        %3076 = vrot.lane.b32.xlu0 %v2957, 96
        %v3077 = vpop.permute.xlu0 %3076
        %3078 = vrot.lane.b32.xlu0 %v2962, 96
        %v3079 = vpop.permute.xlu0 %3078
        %v3082 = vsel %vm3064, %v3075, 0
        %vm3084 = vcmask 1041408
        %v3085 = vsel %vm3084, %v3079, 0
        %3087 = vmatprep.subr.mxu0 0.0
        %3088 = vmatpush1.msra.mxu0 0.0
        %3089 = vmatprep.subr.mxu0 0.0
        %3090 = vmatpush1.msra.mxu0 0.0
        %3091 = vmatprep.subr.mxu0 0.0
        %3092 = vmatpush1.msra.mxu0 0.0
        %3093 = vmatprep.subr.mxu0 0.0
        %3094 = vmatpush1.msra.mxu0 0.0
        %3095 = vmatprep.subr.mxu0 0.0
        %3096 = vmatpush1.msra.mxu0 0.0
        %3097 = vmatprep.subr.mxu0 0.0
        %3098 = vmatpush1.msra.mxu0 0.0
        %3099 = vmatprep.subr.mxu0 0.0
        %3100 = vmatpush1.msra.mxu0 0.0
        %3101 = vmatprep.subr.mxu0 0.0
        %3102 = vmatpush1.msra.mxu0 0.0
        %3103 = vmatprep.subr.mxu0 0.0
        %3104 = vmatpush1.msra.mxu0 0.0
        %3105 = vmatprep.subr.mxu0 0.0
        %3106 = vmatpush1.msra.mxu0 0.0
        %3107 = vmatprep.subr.mxu0 0.0
        %3108 = vmatpush1.msra.mxu0 0.0
        %3109 = vmatprep.subr.mxu0 0.0
        %3110 = vmatpush1.msra.mxu0 0.0
        %3111 = vmatprep.subr.mxu0 0.0
        %3112 = vmatpush1.msra.mxu0 0.0
        %3113 = vmatprep.subr.mxu0 0.0
        %3114 = vmatpush1.msra.mxu0 0.0
        %3115 = vmatprep.subr.mxu0 0.0
        %3116 = vmatpush1.msra.mxu0 %v3085
        %3117 = vmatprep.subr.mxu0 0.0
        %3118 = vmatpush1.msra.mxu0 %v3077
        %3119 = vmatprep.subr.mxu0 0.0
        %3120 = vmatpush2.msra.mxu0 0.0
        %3121 = vmatprep.subr.mxu0 0.0
        %3122 = vmatpush2.msra.mxu0 0.0
        %3123 = vmatprep.subr.mxu0 0.0
        %3124 = vmatpush2.msra.mxu0 0.0
        %3125 = vmatprep.subr.mxu0 0.0
        %3126 = vmatpush2.msra.mxu0 0.0
        %3127 = vmatprep.subr.mxu0 0.0
        %3128 = vmatpush2.msra.mxu0 0.0
        %3129 = vmatprep.subr.mxu0 0.0
        %3130 = vmatpush2.msra.mxu0 0.0
        %3131 = vmatprep.subr.mxu0 0.0
        %3132 = vmatpush2.msra.mxu0 0.0
        %3133 = vmatprep.subr.mxu0 0.0
        %3134 = vmatpush2.msra.mxu0 0.0
        %3135 = vmatprep.subr.mxu0 0.0
        %3136 = vmatpush2.msra.mxu0 0.0
        %3137 = vmatprep.subr.mxu0 0.0
        %3138 = vmatpush2.msra.mxu0 0.0
        %3139 = vmatprep.subr.mxu0 0.0
        %3140 = vmatpush2.msra.mxu0 0.0
        %3141 = vmatprep.subr.mxu0 0.0
        %3142 = vmatpush2.msra.mxu0 0.0
        %3143 = vmatprep.subr.mxu0 0.0
        %3144 = vmatpush2.msra.mxu0 0.0
        %3145 = vmatprep.subr.mxu0 0.0
        %3146 = vmatpush2.msra.mxu0 0.0
        %3147 = vmatprep.subr.mxu0 0.0
        %3148 = vmatpush2.msra.mxu0 0.0
        %3149 = vmatprep.subr.mxu0 0.0
        %3150 = vmatpush2.msra.mxu0 0.0
        %3151 = vmatprep.mubr.f32.mxu0 0.0
        %3152 = vmatmul.mubr.f32.gmra.mxu0 %v3082
        %v3153 = vpop.f32.mrf.mxu0
        %v3154 = vadd.f32 0.0, %v3153
        %v3155 = vpop.f32.mrf.mxu0
        %3156 = vdwg.mxu0
        %3157 = vst.msk [vmem:[#allocation3] sm:$0xff] %vm1268, %v3154
        %3158 = vrot.lane.b32.xlu0 %v2975, 120
        %v3159 = vpop.permute.xlu0 %3158
        %3160 = vrot.lane.b32.xlu0 %v2957, 120
        %v3161 = vpop.permute.xlu0 %3160
        %3162 = vrot.lane.b32.xlu0 %v2962, 120
        %v3163 = vpop.permute.xlu0 %3162
        %v3164 = vsel %vm1268, %v3159, 0
        %v3166 = vsel %vm1268, %v3161, 0
        %v3168 = vsel %vm1268, %v3163, 0
        %3170 = vmatprep.subr.mxu0 0.0
        %3171 = vmatpush1.xpose.msra.mxu0 0.0
        %3172 = vmatprep.subr.mxu0 0.0
        %3173 = vmatpush1.xpose.msra.mxu0 0.0
        %3174 = vmatprep.subr.mxu0 0.0
        %3175 = vmatpush1.xpose.msra.mxu0 0.0
        %3176 = vmatprep.subr.mxu0 0.0
        %3177 = vmatpush1.xpose.msra.mxu0 0.0
        %3178 = vmatprep.subr.mxu0 0.0
        %3179 = vmatpush1.xpose.msra.mxu0 0.0
        %3180 = vmatprep.subr.mxu0 0.0
        %3181 = vmatpush1.xpose.msra.mxu0 0.0
        %3182 = vmatprep.subr.mxu0 0.0
        %3183 = vmatpush1.xpose.msra.mxu0 0.0
        %3184 = vmatprep.subr.mxu0 0.0
        %3185 = vmatpush1.xpose.msra.mxu0 0.0
        %3186 = vmatprep.subr.mxu0 0.0
        %3187 = vmatpush1.xpose.msra.mxu0 0.0
        %3188 = vmatprep.subr.mxu0 0.0
        %3189 = vmatpush1.xpose.msra.mxu0 0.0
        %3190 = vmatprep.subr.mxu0 0.0
        %3191 = vmatpush1.xpose.msra.mxu0 0.0
        %3192 = vmatprep.subr.mxu0 0.0
        %3193 = vmatpush1.xpose.msra.mxu0 0.0
        %3194 = vmatprep.subr.mxu0 0.0
        %3195 = vmatpush1.xpose.msra.mxu0 0.0
        %3196 = vmatprep.subr.mxu0 0.0
        %3197 = vmatpush1.xpose.msra.mxu0 0.0
        %3198 = vmatprep.subr.mxu0 0.0
        %3199 = vmatpush1.xpose.msra.mxu0 %v3168
        %3200 = vmatprep.subr.mxu0 0.0
        %3201 = vmatpush1.xpose.msra.mxu0 %v3166
        %3202 = vmatprep.subr.mxu0 0.0
        %3203 = vmatpush2.xpose.msra.mxu0 0.0
        %3204 = vmatprep.subr.mxu0 0.0
        %3205 = vmatpush2.xpose.msra.mxu0 0.0
        %3206 = vmatprep.subr.mxu0 0.0
        %3207 = vmatpush2.xpose.msra.mxu0 0.0
        %3208 = vmatprep.subr.mxu0 0.0
        %3209 = vmatpush2.xpose.msra.mxu0 0.0
        %3210 = vmatprep.subr.mxu0 0.0
        %3211 = vmatpush2.xpose.msra.mxu0 0.0
        %3212 = vmatprep.subr.mxu0 0.0
        %3213 = vmatpush2.xpose.msra.mxu0 0.0
        %3214 = vmatprep.subr.mxu0 0.0
        %3215 = vmatpush2.xpose.msra.mxu0 0.0
        %3216 = vmatprep.subr.mxu0 0.0
        %3217 = vmatpush2.xpose.msra.mxu0 0.0
        %3218 = vmatprep.subr.mxu0 0.0
        %3219 = vmatpush2.xpose.msra.mxu0 0.0
        %3220 = vmatprep.subr.mxu0 0.0
        %3221 = vmatpush2.xpose.msra.mxu0 0.0
        %3222 = vmatprep.subr.mxu0 0.0
        %3223 = vmatpush2.xpose.msra.mxu0 0.0
        %3224 = vmatprep.subr.mxu0 0.0
        %3225 = vmatpush2.xpose.msra.mxu0 0.0
        %3226 = vmatprep.subr.mxu0 0.0
        %3227 = vmatpush2.xpose.msra.mxu0 0.0
        %3228 = vmatprep.subr.mxu0 0.0
        %3229 = vmatpush2.xpose.msra.mxu0 0.0
        %3230 = vmatprep.subr.mxu0 0.0
        %3231 = vmatpush2.xpose.msra.mxu0 0.0
        %3232 = vmatprep.subr.mxu0 0.0
        %3233 = vmatpush2.xpose.msra.mxu0 0.0
        %3234 = vmatprep.mubr.f32.mxu0 0.0
        %3235 = vmatmul.mubr.f32.gmra.mxu0 %v3164
        %v3236 = vpop.f32.mrf.mxu0
        %v3237 = vadd.f32 %v2984, %v3236
        %v3238 = vpop.f32.mrf.mxu0
        %3239 = vdwg.mxu0
        %v3240 = vsel %vm3064, %v3237, -inf
        %3241 = vmax.xlane.f32.xlu0 %v3240
        %v3242 = vpop.xlane.xlu0 %3241
        %v3243 = vsub.f32 %v3237, %v3242
        %v3244 = vmul.f32 %v3243, 1.442695
        %v3245 = vpow.pop %v3244
        %v3246 = vsel %vm3064, %v3245, 0.0
        %3247 = vadd.xlane.f32.xlu0 %v3246
        %v3248 = vpop.xlane.xlu0 %3247
        %v3249 = vrcp.pop %v3248
        %v3250 = vmul.f32 %v3245, %v3249
        %3251 = vrot.lane.b32.xlu0 %v2957, 88
        %v3252 = vpop.permute.xlu0 %3251
        %3253 = vrot.lane.b32.xlu0 %v2962, 88
        %v3254 = vpop.permute.xlu0 %3253
        %v3257 = vsel %vm3064, %v3250, 0
        %v3259 = vsel %vm3084, %v3254, 0
        %3261 = vmatprep.subr.mxu0 0.0
        %3262 = vmatpush1.msra.mxu0 0.0
        %3263 = vmatprep.subr.mxu0 0.0
        %3264 = vmatpush1.msra.mxu0 0.0
        %3265 = vmatprep.subr.mxu0 0.0
        %3266 = vmatpush1.msra.mxu0 0.0
        %3267 = vmatprep.subr.mxu0 0.0
        %3268 = vmatpush1.msra.mxu0 0.0
        %3269 = vmatprep.subr.mxu0 0.0
        %3270 = vmatpush1.msra.mxu0 0.0
        %3271 = vmatprep.subr.mxu0 0.0
        %3272 = vmatpush1.msra.mxu0 0.0
        %3273 = vmatprep.subr.mxu0 0.0
        %3274 = vmatpush1.msra.mxu0 0.0
        %3275 = vmatprep.subr.mxu0 0.0
        %3276 = vmatpush1.msra.mxu0 0.0
        %3277 = vmatprep.subr.mxu0 0.0
        %3278 = vmatpush1.msra.mxu0 0.0
        %3279 = vmatprep.subr.mxu0 0.0
        %3280 = vmatpush1.msra.mxu0 0.0
        %3281 = vmatprep.subr.mxu0 0.0
        %3282 = vmatpush1.msra.mxu0 0.0
        %3283 = vmatprep.subr.mxu0 0.0
        %3284 = vmatpush1.msra.mxu0 0.0
        %3285 = vmatprep.subr.mxu0 0.0
        %3286 = vmatpush1.msra.mxu0 0.0
        %3287 = vmatprep.subr.mxu0 0.0
        %3288 = vmatpush1.msra.mxu0 0.0
        %3289 = vmatprep.subr.mxu0 0.0
        %3290 = vmatpush1.msra.mxu0 %v3259
        %3291 = vmatprep.subr.mxu0 0.0
        %3292 = vmatpush1.msra.mxu0 %v3252
        %3293 = vmatprep.subr.mxu0 0.0
        %3294 = vmatpush2.msra.mxu0 0.0
        %3295 = vmatprep.subr.mxu0 0.0
        %3296 = vmatpush2.msra.mxu0 0.0
        %3297 = vmatprep.subr.mxu0 0.0
        %3298 = vmatpush2.msra.mxu0 0.0
        %3299 = vmatprep.subr.mxu0 0.0
        %3300 = vmatpush2.msra.mxu0 0.0
        %3301 = vmatprep.subr.mxu0 0.0
        %3302 = vmatpush2.msra.mxu0 0.0
        %3303 = vmatprep.subr.mxu0 0.0
        %3304 = vmatpush2.msra.mxu0 0.0
        %3305 = vmatprep.subr.mxu0 0.0
        %3306 = vmatpush2.msra.mxu0 0.0
        %3307 = vmatprep.subr.mxu0 0.0
        %3308 = vmatpush2.msra.mxu0 0.0
        %3309 = vmatprep.subr.mxu0 0.0
        %3310 = vmatpush2.msra.mxu0 0.0
        %3311 = vmatprep.subr.mxu0 0.0
        %3312 = vmatpush2.msra.mxu0 0.0
        %3313 = vmatprep.subr.mxu0 0.0
        %3314 = vmatpush2.msra.mxu0 0.0
        %3315 = vmatprep.subr.mxu0 0.0
        %3316 = vmatpush2.msra.mxu0 0.0
        %3317 = vmatprep.subr.mxu0 0.0
        %3318 = vmatpush2.msra.mxu0 0.0
        %3319 = vmatprep.subr.mxu0 0.0
        %3320 = vmatpush2.msra.mxu0 0.0
        %3321 = vmatprep.subr.mxu0 0.0
        %3322 = vmatpush2.msra.mxu0 0.0
        %3323 = vmatprep.subr.mxu0 0.0
        %3324 = vmatpush2.msra.mxu0 0.0
        %3325 = vmatprep.mubr.f32.mxu0 0.0
        %3326 = vmatmul.mubr.f32.gmra.mxu0 %v3257
        %v3327 = vpop.f32.mrf.mxu0
        %v3328 = vadd.f32 0.0, %v3327
        %v3329 = vpop.f32.mrf.mxu0
        %3330 = vdwg.mxu0
        %3332 = vrot.lane.b32.xlu0 %v3328, 8
        %v3333 = vpop.permute.xlu0 %3332
        %3335 = vst.msk [vmem:[#allocation3] sm:$0xff] %vm1601, %v3333
        %3336 = vrot.lane.b32.xlu0 %v2975, 112
        %v3337 = vpop.permute.xlu0 %3336
        %3338 = vrot.lane.b32.xlu0 %v2957, 112
        %v3339 = vpop.permute.xlu0 %3338
        %3340 = vrot.lane.b32.xlu0 %v2962, 112
        %v3341 = vpop.permute.xlu0 %3340
        %v3342 = vsel %vm1268, %v3337, 0
        %v3344 = vsel %vm1268, %v3339, 0
        %v3346 = vsel %vm1268, %v3341, 0
        %3348 = vmatprep.subr.mxu0 0.0
        %3349 = vmatpush1.xpose.msra.mxu0 0.0
        %3350 = vmatprep.subr.mxu0 0.0
        %3351 = vmatpush1.xpose.msra.mxu0 0.0
        %3352 = vmatprep.subr.mxu0 0.0
        %3353 = vmatpush1.xpose.msra.mxu0 0.0
        %3354 = vmatprep.subr.mxu0 0.0
        %3355 = vmatpush1.xpose.msra.mxu0 0.0
        %3356 = vmatprep.subr.mxu0 0.0
        %3357 = vmatpush1.xpose.msra.mxu0 0.0
        %3358 = vmatprep.subr.mxu0 0.0
        %3359 = vmatpush1.xpose.msra.mxu0 0.0
        %3360 = vmatprep.subr.mxu0 0.0
        %3361 = vmatpush1.xpose.msra.mxu0 0.0
        %3362 = vmatprep.subr.mxu0 0.0
        %3363 = vmatpush1.xpose.msra.mxu0 0.0
        %3364 = vmatprep.subr.mxu0 0.0
        %3365 = vmatpush1.xpose.msra.mxu0 0.0
        %3366 = vmatprep.subr.mxu0 0.0
        %3367 = vmatpush1.xpose.msra.mxu0 0.0
        %3368 = vmatprep.subr.mxu0 0.0
        %3369 = vmatpush1.xpose.msra.mxu0 0.0
        %3370 = vmatprep.subr.mxu0 0.0
        %3371 = vmatpush1.xpose.msra.mxu0 0.0
        %3372 = vmatprep.subr.mxu0 0.0
        %3373 = vmatpush1.xpose.msra.mxu0 0.0
        %3374 = vmatprep.subr.mxu0 0.0
        %3375 = vmatpush1.xpose.msra.mxu0 0.0
        %3376 = vmatprep.subr.mxu0 0.0
        %3377 = vmatpush1.xpose.msra.mxu0 %v3346
        %3378 = vmatprep.subr.mxu0 0.0
        %3379 = vmatpush1.xpose.msra.mxu0 %v3344
        %3380 = vmatprep.subr.mxu0 0.0
        %3381 = vmatpush2.xpose.msra.mxu0 0.0
        %3382 = vmatprep.subr.mxu0 0.0
        %3383 = vmatpush2.xpose.msra.mxu0 0.0
        %3384 = vmatprep.subr.mxu0 0.0
        %3385 = vmatpush2.xpose.msra.mxu0 0.0
        %3386 = vmatprep.subr.mxu0 0.0
        %3387 = vmatpush2.xpose.msra.mxu0 0.0
        %3388 = vmatprep.subr.mxu0 0.0
        %3389 = vmatpush2.xpose.msra.mxu0 0.0
        %3390 = vmatprep.subr.mxu0 0.0
        %3391 = vmatpush2.xpose.msra.mxu0 0.0
        %3392 = vmatprep.subr.mxu0 0.0
        %3393 = vmatpush2.xpose.msra.mxu0 0.0
        %3394 = vmatprep.subr.mxu0 0.0
        %3395 = vmatpush2.xpose.msra.mxu0 0.0
        %3396 = vmatprep.subr.mxu0 0.0
        %3397 = vmatpush2.xpose.msra.mxu0 0.0
        %3398 = vmatprep.subr.mxu0 0.0
        %3399 = vmatpush2.xpose.msra.mxu0 0.0
        %3400 = vmatprep.subr.mxu0 0.0
        %3401 = vmatpush2.xpose.msra.mxu0 0.0
        %3402 = vmatprep.subr.mxu0 0.0
        %3403 = vmatpush2.xpose.msra.mxu0 0.0
        %3404 = vmatprep.subr.mxu0 0.0
        %3405 = vmatpush2.xpose.msra.mxu0 0.0
        %3406 = vmatprep.subr.mxu0 0.0
        %3407 = vmatpush2.xpose.msra.mxu0 0.0
        %3408 = vmatprep.subr.mxu0 0.0
        %3409 = vmatpush2.xpose.msra.mxu0 0.0
        %3410 = vmatprep.subr.mxu0 0.0
        %3411 = vmatpush2.xpose.msra.mxu0 0.0
        %3412 = vmatprep.mubr.f32.mxu0 0.0
        %3413 = vmatmul.mubr.f32.gmra.mxu0 %v3342
        %v3414 = vpop.f32.mrf.mxu0
        %v3415 = vadd.f32 %v2984, %v3414
        %v3416 = vpop.f32.mrf.mxu0
        %3417 = vdwg.mxu0
        %v3418 = vsel %vm3064, %v3415, -inf
        %3419 = vmax.xlane.f32.xlu0 %v3418
        %v3420 = vpop.xlane.xlu0 %3419
        %v3421 = vsub.f32 %v3415, %v3420
        %v3422 = vmul.f32 %v3421, 1.442695
        %v3423 = vpow.pop %v3422
        %v3424 = vsel %vm3064, %v3423, 0.0
        %3425 = vadd.xlane.f32.xlu0 %v3424
        %v3426 = vpop.xlane.xlu0 %3425
        %v3427 = vrcp.pop %v3426
        %v3428 = vmul.f32 %v3423, %v3427
        %3429 = vrot.lane.b32.xlu0 %v2957, 80
        %v3430 = vpop.permute.xlu0 %3429
        %3431 = vrot.lane.b32.xlu0 %v2962, 80
        %v3432 = vpop.permute.xlu0 %3431
        %v3435 = vsel %vm3064, %v3428, 0
        %v3437 = vsel %vm3084, %v3432, 0
        %3439 = vmatprep.subr.mxu0 0.0
        %3440 = vmatpush1.msra.mxu0 0.0
        %3441 = vmatprep.subr.mxu0 0.0
        %3442 = vmatpush1.msra.mxu0 0.0
        %3443 = vmatprep.subr.mxu0 0.0
        %3444 = vmatpush1.msra.mxu0 0.0
        %3445 = vmatprep.subr.mxu0 0.0
        %3446 = vmatpush1.msra.mxu0 0.0
        %3447 = vmatprep.subr.mxu0 0.0
        %3448 = vmatpush1.msra.mxu0 0.0
        %3449 = vmatprep.subr.mxu0 0.0
        %3450 = vmatpush1.msra.mxu0 0.0
        %3451 = vmatprep.subr.mxu0 0.0
        %3452 = vmatpush1.msra.mxu0 0.0
        %3453 = vmatprep.subr.mxu0 0.0
        %3454 = vmatpush1.msra.mxu0 0.0
        %3455 = vmatprep.subr.mxu0 0.0
        %3456 = vmatpush1.msra.mxu0 0.0
        %3457 = vmatprep.subr.mxu0 0.0
        %3458 = vmatpush1.msra.mxu0 0.0
        %3459 = vmatprep.subr.mxu0 0.0
        %3460 = vmatpush1.msra.mxu0 0.0
        %3461 = vmatprep.subr.mxu0 0.0
        %3462 = vmatpush1.msra.mxu0 0.0
        %3463 = vmatprep.subr.mxu0 0.0
        %3464 = vmatpush1.msra.mxu0 0.0
        %3465 = vmatprep.subr.mxu0 0.0
        %3466 = vmatpush1.msra.mxu0 0.0
        %3467 = vmatprep.subr.mxu0 0.0
        %3468 = vmatpush1.msra.mxu0 %v3437
        %3469 = vmatprep.subr.mxu0 0.0
        %3470 = vmatpush1.msra.mxu0 %v3430
        %3471 = vmatprep.subr.mxu0 0.0
        %3472 = vmatpush2.msra.mxu0 0.0
        %3473 = vmatprep.subr.mxu0 0.0
        %3474 = vmatpush2.msra.mxu0 0.0
        %3475 = vmatprep.subr.mxu0 0.0
        %3476 = vmatpush2.msra.mxu0 0.0
        %3477 = vmatprep.subr.mxu0 0.0
        %3478 = vmatpush2.msra.mxu0 0.0
        %3479 = vmatprep.subr.mxu0 0.0
        %3480 = vmatpush2.msra.mxu0 0.0
        %3481 = vmatprep.subr.mxu0 0.0
        %3482 = vmatpush2.msra.mxu0 0.0
        %3483 = vmatprep.subr.mxu0 0.0
        %3484 = vmatpush2.msra.mxu0 0.0
        %3485 = vmatprep.subr.mxu0 0.0
        %3486 = vmatpush2.msra.mxu0 0.0
        %3487 = vmatprep.subr.mxu0 0.0
        %3488 = vmatpush2.msra.mxu0 0.0
        %3489 = vmatprep.subr.mxu0 0.0
        %3490 = vmatpush2.msra.mxu0 0.0
        %3491 = vmatprep.subr.mxu0 0.0
        %3492 = vmatpush2.msra.mxu0 0.0
        %3493 = vmatprep.subr.mxu0 0.0
        %3494 = vmatpush2.msra.mxu0 0.0
        %3495 = vmatprep.subr.mxu0 0.0
        %3496 = vmatpush2.msra.mxu0 0.0
        %3497 = vmatprep.subr.mxu0 0.0
        %3498 = vmatpush2.msra.mxu0 0.0
        %3499 = vmatprep.subr.mxu0 0.0
        %3500 = vmatpush2.msra.mxu0 0.0
        %3501 = vmatprep.subr.mxu0 0.0
        %3502 = vmatpush2.msra.mxu0 0.0
        %3503 = vmatprep.mubr.f32.mxu0 0.0
        %3504 = vmatmul.mubr.f32.gmra.mxu0 %v3435
        %v3505 = vpop.f32.mrf.mxu0
        %v3506 = vadd.f32 0.0, %v3505
        %v3507 = vpop.f32.mrf.mxu0
        %3508 = vdwg.mxu0
        %3510 = vrot.lane.b32.xlu0 %v3506, 16
        %v3511 = vpop.permute.xlu0 %3510
        %3513 = vst.msk [vmem:[#allocation3] sm:$0xff] %vm1772, %v3511
        %3514 = vrot.lane.b32.xlu0 %v2975, 104
        %v3515 = vpop.permute.xlu0 %3514
        %3516 = vrot.lane.b32.xlu0 %v2957, 104
        %v3517 = vpop.permute.xlu0 %3516
        %3518 = vrot.lane.b32.xlu0 %v2962, 104
        %v3519 = vpop.permute.xlu0 %3518
        %v3520 = vsel %vm1268, %v3515, 0
        %v3522 = vsel %vm1268, %v3517, 0
        %v3524 = vsel %vm1268, %v3519, 0
        %3526 = vmatprep.subr.mxu0 0.0
        %3527 = vmatpush1.xpose.msra.mxu0 0.0
        %3528 = vmatprep.subr.mxu0 0.0
        %3529 = vmatpush1.xpose.msra.mxu0 0.0
        %3530 = vmatprep.subr.mxu0 0.0
        %3531 = vmatpush1.xpose.msra.mxu0 0.0
        %3532 = vmatprep.subr.mxu0 0.0
        %3533 = vmatpush1.xpose.msra.mxu0 0.0
        %3534 = vmatprep.subr.mxu0 0.0
        %3535 = vmatpush1.xpose.msra.mxu0 0.0
        %3536 = vmatprep.subr.mxu0 0.0
        %3537 = vmatpush1.xpose.msra.mxu0 0.0
        %3538 = vmatprep.subr.mxu0 0.0
        %3539 = vmatpush1.xpose.msra.mxu0 0.0
        %3540 = vmatprep.subr.mxu0 0.0
        %3541 = vmatpush1.xpose.msra.mxu0 0.0
        %3542 = vmatprep.subr.mxu0 0.0
        %3543 = vmatpush1.xpose.msra.mxu0 0.0
        %3544 = vmatprep.subr.mxu0 0.0
        %3545 = vmatpush1.xpose.msra.mxu0 0.0
        %3546 = vmatprep.subr.mxu0 0.0
        %3547 = vmatpush1.xpose.msra.mxu0 0.0
        %3548 = vmatprep.subr.mxu0 0.0
        %3549 = vmatpush1.xpose.msra.mxu0 0.0
        %3550 = vmatprep.subr.mxu0 0.0
        %3551 = vmatpush1.xpose.msra.mxu0 0.0
        %3552 = vmatprep.subr.mxu0 0.0
        %3553 = vmatpush1.xpose.msra.mxu0 0.0
        %3554 = vmatprep.subr.mxu0 0.0
        %3555 = vmatpush1.xpose.msra.mxu0 %v3524
        %3556 = vmatprep.subr.mxu0 0.0
        %3557 = vmatpush1.xpose.msra.mxu0 %v3522
        %3558 = vmatprep.subr.mxu0 0.0
        %3559 = vmatpush2.xpose.msra.mxu0 0.0
        %3560 = vmatprep.subr.mxu0 0.0
        %3561 = vmatpush2.xpose.msra.mxu0 0.0
        %3562 = vmatprep.subr.mxu0 0.0
        %3563 = vmatpush2.xpose.msra.mxu0 0.0
        %3564 = vmatprep.subr.mxu0 0.0
        %3565 = vmatpush2.xpose.msra.mxu0 0.0
        %3566 = vmatprep.subr.mxu0 0.0
        %3567 = vmatpush2.xpose.msra.mxu0 0.0
        %3568 = vmatprep.subr.mxu0 0.0
        %3569 = vmatpush2.xpose.msra.mxu0 0.0
        %3570 = vmatprep.subr.mxu0 0.0
        %3571 = vmatpush2.xpose.msra.mxu0 0.0
        %3572 = vmatprep.subr.mxu0 0.0
        %3573 = vmatpush2.xpose.msra.mxu0 0.0
        %3574 = vmatprep.subr.mxu0 0.0
        %3575 = vmatpush2.xpose.msra.mxu0 0.0
        %3576 = vmatprep.subr.mxu0 0.0
        %3577 = vmatpush2.xpose.msra.mxu0 0.0
        %3578 = vmatprep.subr.mxu0 0.0
        %3579 = vmatpush2.xpose.msra.mxu0 0.0
        %3580 = vmatprep.subr.mxu0 0.0
        %3581 = vmatpush2.xpose.msra.mxu0 0.0
        %3582 = vmatprep.subr.mxu0 0.0
        %3583 = vmatpush2.xpose.msra.mxu0 0.0
        %3584 = vmatprep.subr.mxu0 0.0
        %3585 = vmatpush2.xpose.msra.mxu0 0.0
        %3586 = vmatprep.subr.mxu0 0.0
        %3587 = vmatpush2.xpose.msra.mxu0 0.0
        %3588 = vmatprep.subr.mxu0 0.0
        %3589 = vmatpush2.xpose.msra.mxu0 0.0
        %3590 = vmatprep.mubr.f32.mxu0 0.0
        %3591 = vmatmul.mubr.f32.gmra.mxu0 %v3520
        %v3592 = vpop.f32.mrf.mxu0
        %v3593 = vadd.f32 %v2984, %v3592
        %v3594 = vpop.f32.mrf.mxu0
        %3595 = vdwg.mxu0
        %v3596 = vsel %vm3064, %v3593, -inf
        %3597 = vmax.xlane.f32.xlu0 %v3596
        %v3598 = vpop.xlane.xlu0 %3597
        %v3599 = vsub.f32 %v3593, %v3598
        %v3600 = vmul.f32 %v3599, 1.442695
        %v3601 = vpow.pop %v3600
        %v3602 = vsel %vm3064, %v3601, 0.0
        %3603 = vadd.xlane.f32.xlu0 %v3602
        %v3604 = vpop.xlane.xlu0 %3603
        %v3605 = vrcp.pop %v3604
        %v3606 = vmul.f32 %v3601, %v3605
        %3607 = vrot.lane.b32.xlu0 %v2957, 72
        %v3608 = vpop.permute.xlu0 %3607
        %3609 = vrot.lane.b32.xlu0 %v2962, 72
        %v3610 = vpop.permute.xlu0 %3609
        %v3613 = vsel %vm3064, %v3606, 0
        %v3615 = vsel %vm3084, %v3610, 0
        %3617 = vmatprep.subr.mxu0 0.0
        %3618 = vmatpush1.msra.mxu0 0.0
        %3619 = vmatprep.subr.mxu0 0.0
        %3620 = vmatpush1.msra.mxu0 0.0
        %3621 = vmatprep.subr.mxu0 0.0
        %3622 = vmatpush1.msra.mxu0 0.0
        %3623 = vmatprep.subr.mxu0 0.0
        %3624 = vmatpush1.msra.mxu0 0.0
        %3625 = vmatprep.subr.mxu0 0.0
        %3626 = vmatpush1.msra.mxu0 0.0
        %3627 = vmatprep.subr.mxu0 0.0
        %3628 = vmatpush1.msra.mxu0 0.0
        %3629 = vmatprep.subr.mxu0 0.0
        %3630 = vmatpush1.msra.mxu0 0.0
        %3631 = vmatprep.subr.mxu0 0.0
        %3632 = vmatpush1.msra.mxu0 0.0
        %3633 = vmatprep.subr.mxu0 0.0
        %3634 = vmatpush1.msra.mxu0 0.0
        %3635 = vmatprep.subr.mxu0 0.0
        %3636 = vmatpush1.msra.mxu0 0.0
        %3637 = vmatprep.subr.mxu0 0.0
        %3638 = vmatpush1.msra.mxu0 0.0
        %3639 = vmatprep.subr.mxu0 0.0
        %3640 = vmatpush1.msra.mxu0 0.0
        %3641 = vmatprep.subr.mxu0 0.0
        %3642 = vmatpush1.msra.mxu0 0.0
        %3643 = vmatprep.subr.mxu0 0.0
        %3644 = vmatpush1.msra.mxu0 0.0
        %3645 = vmatprep.subr.mxu0 0.0
        %3646 = vmatpush1.msra.mxu0 %v3615
        %3647 = vmatprep.subr.mxu0 0.0
        %3648 = vmatpush1.msra.mxu0 %v3608
        %3649 = vmatprep.subr.mxu0 0.0
        %3650 = vmatpush2.msra.mxu0 0.0
        %3651 = vmatprep.subr.mxu0 0.0
        %3652 = vmatpush2.msra.mxu0 0.0
        %3653 = vmatprep.subr.mxu0 0.0
        %3654 = vmatpush2.msra.mxu0 0.0
        %3655 = vmatprep.subr.mxu0 0.0
        %3656 = vmatpush2.msra.mxu0 0.0
        %3657 = vmatprep.subr.mxu0 0.0
        %3658 = vmatpush2.msra.mxu0 0.0
        %3659 = vmatprep.subr.mxu0 0.0
        %3660 = vmatpush2.msra.mxu0 0.0
        %3661 = vmatprep.subr.mxu0 0.0
        %3662 = vmatpush2.msra.mxu0 0.0
        %3663 = vmatprep.subr.mxu0 0.0
        %3664 = vmatpush2.msra.mxu0 0.0
        %3665 = vmatprep.subr.mxu0 0.0
        %3666 = vmatpush2.msra.mxu0 0.0
        %3667 = vmatprep.subr.mxu0 0.0
        %3668 = vmatpush2.msra.mxu0 0.0
        %3669 = vmatprep.subr.mxu0 0.0
        %3670 = vmatpush2.msra.mxu0 0.0
        %3671 = vmatprep.subr.mxu0 0.0
        %3672 = vmatpush2.msra.mxu0 0.0
        %3673 = vmatprep.subr.mxu0 0.0
        %3674 = vmatpush2.msra.mxu0 0.0
        %3675 = vmatprep.subr.mxu0 0.0
        %3676 = vmatpush2.msra.mxu0 0.0
        %3677 = vmatprep.subr.mxu0 0.0
        %3678 = vmatpush2.msra.mxu0 0.0
        %3679 = vmatprep.subr.mxu0 0.0
        %3680 = vmatpush2.msra.mxu0 0.0
        %3681 = vmatprep.mubr.f32.mxu0 0.0
        %3682 = vmatmul.mubr.f32.gmra.mxu0 %v3613
        %v3683 = vpop.f32.mrf.mxu0
        %v3684 = vadd.f32 0.0, %v3683
        %v3685 = vpop.f32.mrf.mxu0
        %3686 = vdwg.mxu0
        %3688 = vrot.lane.b32.xlu0 %v3684, 24
        %v3689 = vpop.permute.xlu0 %3688
        %3691 = vst.msk [vmem:[#allocation3] sm:$0xff] %vm1943, %v3689
        %v3692 = vlaneseq
        %v3693 = vshrl.u32 %v3692, 7
        %v3694 = vsub.s32 0, %v3693
        %v3695 = vrot.slane %v2980, %v3694
        %v3697 = vsel %vm1268, %v2976, 0
        %v3700 = vsel %vm1268, %v2967, 0
        %v3703 = vsel %vm1268, %v2972, 0
        %3705 = vmatprep.subr.mxu0 0.0
        %3706 = vmatpush1.xpose.msra.mxu0 0.0
        %3707 = vmatprep.subr.mxu0 0.0
        %3708 = vmatpush1.xpose.msra.mxu0 0.0
        %3709 = vmatprep.subr.mxu0 0.0
        %3710 = vmatpush1.xpose.msra.mxu0 0.0
        %3711 = vmatprep.subr.mxu0 0.0
        %3712 = vmatpush1.xpose.msra.mxu0 0.0
        %3713 = vmatprep.subr.mxu0 0.0
        %3714 = vmatpush1.xpose.msra.mxu0 0.0
        %3715 = vmatprep.subr.mxu0 0.0
        %3716 = vmatpush1.xpose.msra.mxu0 0.0
        %3717 = vmatprep.subr.mxu0 0.0
        %3718 = vmatpush1.xpose.msra.mxu0 0.0
        %3719 = vmatprep.subr.mxu0 0.0
        %3720 = vmatpush1.xpose.msra.mxu0 0.0
        %3721 = vmatprep.subr.mxu0 0.0
        %3722 = vmatpush1.xpose.msra.mxu0 0.0
        %3723 = vmatprep.subr.mxu0 0.0
        %3724 = vmatpush1.xpose.msra.mxu0 0.0
        %3725 = vmatprep.subr.mxu0 0.0
        %3726 = vmatpush1.xpose.msra.mxu0 0.0
        %3727 = vmatprep.subr.mxu0 0.0
        %3728 = vmatpush1.xpose.msra.mxu0 0.0
        %3729 = vmatprep.subr.mxu0 0.0
        %3730 = vmatpush1.xpose.msra.mxu0 0.0
        %3731 = vmatprep.subr.mxu0 0.0
        %3732 = vmatpush1.xpose.msra.mxu0 0.0
        %3733 = vmatprep.subr.mxu0 0.0
        %3734 = vmatpush1.xpose.msra.mxu0 %v3703
        %3735 = vmatprep.subr.mxu0 0.0
        %3736 = vmatpush1.xpose.msra.mxu0 %v3700
        %3737 = vmatprep.subr.mxu0 0.0
        %3738 = vmatpush2.xpose.msra.mxu0 0.0
        %3739 = vmatprep.subr.mxu0 0.0
        %3740 = vmatpush2.xpose.msra.mxu0 0.0
        %3741 = vmatprep.subr.mxu0 0.0
        %3742 = vmatpush2.xpose.msra.mxu0 0.0
        %3743 = vmatprep.subr.mxu0 0.0
        %3744 = vmatpush2.xpose.msra.mxu0 0.0
        %3745 = vmatprep.subr.mxu0 0.0
        %3746 = vmatpush2.xpose.msra.mxu0 0.0
        %3747 = vmatprep.subr.mxu0 0.0
        %3748 = vmatpush2.xpose.msra.mxu0 0.0
        %3749 = vmatprep.subr.mxu0 0.0
        %3750 = vmatpush2.xpose.msra.mxu0 0.0
        %3751 = vmatprep.subr.mxu0 0.0
        %3752 = vmatpush2.xpose.msra.mxu0 0.0
        %3753 = vmatprep.subr.mxu0 0.0
        %3754 = vmatpush2.xpose.msra.mxu0 0.0
        %3755 = vmatprep.subr.mxu0 0.0
        %3756 = vmatpush2.xpose.msra.mxu0 0.0
        %3757 = vmatprep.subr.mxu0 0.0
        %3758 = vmatpush2.xpose.msra.mxu0 0.0
        %3759 = vmatprep.subr.mxu0 0.0
        %3760 = vmatpush2.xpose.msra.mxu0 0.0
        %3761 = vmatprep.subr.mxu0 0.0
        %3762 = vmatpush2.xpose.msra.mxu0 0.0
        %3763 = vmatprep.subr.mxu0 0.0
        %3764 = vmatpush2.xpose.msra.mxu0 0.0
        %3765 = vmatprep.subr.mxu0 0.0
        %3766 = vmatpush2.xpose.msra.mxu0 0.0
        %3767 = vmatprep.subr.mxu0 0.0
        %3768 = vmatpush2.xpose.msra.mxu0 0.0
        %3769 = vmatprep.mubr.f32.mxu0 0.0
        %3770 = vmatmul.mubr.f32.gmra.mxu0 %v3697
        %v3771 = vpop.f32.mrf.mxu0
        %v3772 = vadd.f32 %v3695, %v3771
        %v3773 = vpop.f32.mrf.mxu0
        %3774 = vdwg.mxu0
        %v3775 = vsel %vm3064, %v3772, -inf
        %3776 = vmax.xlane.f32.xlu0 %v3775
        %v3777 = vpop.xlane.xlu0 %3776
        %v3778 = vsub.f32 %v3772, %v3777
        %v3779 = vmul.f32 %v3778, 1.442695
        %v3780 = vpow.pop %v3779
        %v3781 = vsel %vm3064, %v3780, 0.0
        %3782 = vadd.xlane.f32.xlu0 %v3781
        %v3783 = vpop.xlane.xlu0 %3782
        %v3784 = vrcp.pop %v3783
        %v3785 = vmul.f32 %v3780, %v3784
        %3786 = vrot.lane.b32.xlu0 %v2967, 96
        %v3787 = vpop.permute.xlu0 %3786
        %3788 = vrot.lane.b32.xlu0 %v2972, 96
        %v3789 = vpop.permute.xlu0 %3788
        %v3792 = vsel %vm3064, %v3785, 0
        %v3794 = vsel %vm3084, %v3789, 0
        %3796 = vmatprep.subr.mxu0 0.0
        %3797 = vmatpush1.msra.mxu0 0.0
        %3798 = vmatprep.subr.mxu0 0.0
        %3799 = vmatpush1.msra.mxu0 0.0
        %3800 = vmatprep.subr.mxu0 0.0
        %3801 = vmatpush1.msra.mxu0 0.0
        %3802 = vmatprep.subr.mxu0 0.0
        %3803 = vmatpush1.msra.mxu0 0.0
        %3804 = vmatprep.subr.mxu0 0.0
        %3805 = vmatpush1.msra.mxu0 0.0
        %3806 = vmatprep.subr.mxu0 0.0
        %3807 = vmatpush1.msra.mxu0 0.0
        %3808 = vmatprep.subr.mxu0 0.0
        %3809 = vmatpush1.msra.mxu0 0.0
        %3810 = vmatprep.subr.mxu0 0.0
        %3811 = vmatpush1.msra.mxu0 0.0
        %3812 = vmatprep.subr.mxu0 0.0
        %3813 = vmatpush1.msra.mxu0 0.0
        %3814 = vmatprep.subr.mxu0 0.0
        %3815 = vmatpush1.msra.mxu0 0.0
        %3816 = vmatprep.subr.mxu0 0.0
        %3817 = vmatpush1.msra.mxu0 0.0
        %3818 = vmatprep.subr.mxu0 0.0
        %3819 = vmatpush1.msra.mxu0 0.0
        %3820 = vmatprep.subr.mxu0 0.0
        %3821 = vmatpush1.msra.mxu0 0.0
        %3822 = vmatprep.subr.mxu0 0.0
        %3823 = vmatpush1.msra.mxu0 0.0
        %3824 = vmatprep.subr.mxu0 0.0
        %3825 = vmatpush1.msra.mxu0 %v3794
        %3826 = vmatprep.subr.mxu0 0.0
        %3827 = vmatpush1.msra.mxu0 %v3787
        %3828 = vmatprep.subr.mxu0 0.0
        %3829 = vmatpush2.msra.mxu0 0.0
        %3830 = vmatprep.subr.mxu0 0.0
        %3831 = vmatpush2.msra.mxu0 0.0
        %3832 = vmatprep.subr.mxu0 0.0
        %3833 = vmatpush2.msra.mxu0 0.0
        %3834 = vmatprep.subr.mxu0 0.0
        %3835 = vmatpush2.msra.mxu0 0.0
        %3836 = vmatprep.subr.mxu0 0.0
        %3837 = vmatpush2.msra.mxu0 0.0
        %3838 = vmatprep.subr.mxu0 0.0
        %3839 = vmatpush2.msra.mxu0 0.0
        %3840 = vmatprep.subr.mxu0 0.0
        %3841 = vmatpush2.msra.mxu0 0.0
        %3842 = vmatprep.subr.mxu0 0.0
        %3843 = vmatpush2.msra.mxu0 0.0
        %3844 = vmatprep.subr.mxu0 0.0
        %3845 = vmatpush2.msra.mxu0 0.0
        %3846 = vmatprep.subr.mxu0 0.0
        %3847 = vmatpush2.msra.mxu0 0.0
        %3848 = vmatprep.subr.mxu0 0.0
        %3849 = vmatpush2.msra.mxu0 0.0
        %3850 = vmatprep.subr.mxu0 0.0
        %3851 = vmatpush2.msra.mxu0 0.0
        %3852 = vmatprep.subr.mxu0 0.0
        %3853 = vmatpush2.msra.mxu0 0.0
        %3854 = vmatprep.subr.mxu0 0.0
        %3855 = vmatpush2.msra.mxu0 0.0
        %3856 = vmatprep.subr.mxu0 0.0
        %3857 = vmatpush2.msra.mxu0 0.0
        %3858 = vmatprep.subr.mxu0 0.0
        %3859 = vmatpush2.msra.mxu0 0.0
        %3860 = vmatprep.mubr.f32.mxu0 0.0
        %3861 = vmatmul.mubr.f32.gmra.mxu0 %v3792
        %v3862 = vpop.f32.mrf.mxu0
        %v3863 = vadd.f32 0.0, %v3862
        %v3864 = vpop.f32.mrf.mxu0
        %3865 = vdwg.mxu0
        %3866 = vst.msk [vmem:[#allocation3 + $0x8] sm:$0xff] %vm1268, %v3863
        %3867 = vrot.lane.b32.xlu0 %v2976, 120
        %v3868 = vpop.permute.xlu0 %3867
        %3869 = vrot.lane.b32.xlu0 %v2967, 120
        %v3870 = vpop.permute.xlu0 %3869
        %3871 = vrot.lane.b32.xlu0 %v2972, 120
        %v3872 = vpop.permute.xlu0 %3871
        %v3873 = vsel %vm1268, %v3868, 0
        %v3875 = vsel %vm1268, %v3870, 0
        %v3877 = vsel %vm1268, %v3872, 0
        %3879 = vmatprep.subr.mxu0 0.0
        %3880 = vmatpush1.xpose.msra.mxu0 0.0
        %3881 = vmatprep.subr.mxu0 0.0
        %3882 = vmatpush1.xpose.msra.mxu0 0.0
        %3883 = vmatprep.subr.mxu0 0.0
        %3884 = vmatpush1.xpose.msra.mxu0 0.0
        %3885 = vmatprep.subr.mxu0 0.0
        %3886 = vmatpush1.xpose.msra.mxu0 0.0
        %3887 = vmatprep.subr.mxu0 0.0
        %3888 = vmatpush1.xpose.msra.mxu0 0.0
        %3889 = vmatprep.subr.mxu0 0.0
        %3890 = vmatpush1.xpose.msra.mxu0 0.0
        %3891 = vmatprep.subr.mxu0 0.0
        %3892 = vmatpush1.xpose.msra.mxu0 0.0
        %3893 = vmatprep.subr.mxu0 0.0
        %3894 = vmatpush1.xpose.msra.mxu0 0.0
        %3895 = vmatprep.subr.mxu0 0.0
        %3896 = vmatpush1.xpose.msra.mxu0 0.0
        %3897 = vmatprep.subr.mxu0 0.0
        %3898 = vmatpush1.xpose.msra.mxu0 0.0
        %3899 = vmatprep.subr.mxu0 0.0
        %3900 = vmatpush1.xpose.msra.mxu0 0.0
        %3901 = vmatprep.subr.mxu0 0.0
        %3902 = vmatpush1.xpose.msra.mxu0 0.0
        %3903 = vmatprep.subr.mxu0 0.0
        %3904 = vmatpush1.xpose.msra.mxu0 0.0
        %3905 = vmatprep.subr.mxu0 0.0
        %3906 = vmatpush1.xpose.msra.mxu0 0.0
        %3907 = vmatprep.subr.mxu0 0.0
        %3908 = vmatpush1.xpose.msra.mxu0 %v3877
        %3909 = vmatprep.subr.mxu0 0.0
        %3910 = vmatpush1.xpose.msra.mxu0 %v3875
        %3911 = vmatprep.subr.mxu0 0.0
        %3912 = vmatpush2.xpose.msra.mxu0 0.0
        %3913 = vmatprep.subr.mxu0 0.0
        %3914 = vmatpush2.xpose.msra.mxu0 0.0
        %3915 = vmatprep.subr.mxu0 0.0
        %3916 = vmatpush2.xpose.msra.mxu0 0.0
        %3917 = vmatprep.subr.mxu0 0.0
        %3918 = vmatpush2.xpose.msra.mxu0 0.0
        %3919 = vmatprep.subr.mxu0 0.0
        %3920 = vmatpush2.xpose.msra.mxu0 0.0
        %3921 = vmatprep.subr.mxu0 0.0
        %3922 = vmatpush2.xpose.msra.mxu0 0.0
        %3923 = vmatprep.subr.mxu0 0.0
        %3924 = vmatpush2.xpose.msra.mxu0 0.0
        %3925 = vmatprep.subr.mxu0 0.0
        %3926 = vmatpush2.xpose.msra.mxu0 0.0
        %3927 = vmatprep.subr.mxu0 0.0
        %3928 = vmatpush2.xpose.msra.mxu0 0.0
        %3929 = vmatprep.subr.mxu0 0.0
        %3930 = vmatpush2.xpose.msra.mxu0 0.0
        %3931 = vmatprep.subr.mxu0 0.0
        %3932 = vmatpush2.xpose.msra.mxu0 0.0
        %3933 = vmatprep.subr.mxu0 0.0
        %3934 = vmatpush2.xpose.msra.mxu0 0.0
        %3935 = vmatprep.subr.mxu0 0.0
        %3936 = vmatpush2.xpose.msra.mxu0 0.0
        %3937 = vmatprep.subr.mxu0 0.0
        %3938 = vmatpush2.xpose.msra.mxu0 0.0
        %3939 = vmatprep.subr.mxu0 0.0
        %3940 = vmatpush2.xpose.msra.mxu0 0.0
        %3941 = vmatprep.subr.mxu0 0.0
        %3942 = vmatpush2.xpose.msra.mxu0 0.0
        %3943 = vmatprep.mubr.f32.mxu0 0.0
        %3944 = vmatmul.mubr.f32.gmra.mxu0 %v3873
        %v3945 = vpop.f32.mrf.mxu0
        %v3946 = vadd.f32 %v3695, %v3945
        %v3947 = vpop.f32.mrf.mxu0
        %3948 = vdwg.mxu0
        %v3949 = vsel %vm3064, %v3946, -inf
        %3950 = vmax.xlane.f32.xlu0 %v3949
        %v3951 = vpop.xlane.xlu0 %3950
        %v3952 = vsub.f32 %v3946, %v3951
        %v3953 = vmul.f32 %v3952, 1.442695
        %v3954 = vpow.pop %v3953
        %v3955 = vsel %vm3064, %v3954, 0.0
        %3956 = vadd.xlane.f32.xlu0 %v3955
        %v3957 = vpop.xlane.xlu0 %3956
        %v3958 = vrcp.pop %v3957
        %v3959 = vmul.f32 %v3954, %v3958
        %3960 = vrot.lane.b32.xlu0 %v2967, 88
        %v3961 = vpop.permute.xlu0 %3960
        %3962 = vrot.lane.b32.xlu0 %v2972, 88
        %v3963 = vpop.permute.xlu0 %3962
        %v3966 = vsel %vm3064, %v3959, 0
        %v3968 = vsel %vm3084, %v3963, 0
        %3970 = vmatprep.subr.mxu0 0.0
        %3971 = vmatpush1.msra.mxu0 0.0
        %3972 = vmatprep.subr.mxu0 0.0
        %3973 = vmatpush1.msra.mxu0 0.0
        %3974 = vmatprep.subr.mxu0 0.0
        %3975 = vmatpush1.msra.mxu0 0.0
        %3976 = vmatprep.subr.mxu0 0.0
        %3977 = vmatpush1.msra.mxu0 0.0
        %3978 = vmatprep.subr.mxu0 0.0
        %3979 = vmatpush1.msra.mxu0 0.0
        %3980 = vmatprep.subr.mxu0 0.0
        %3981 = vmatpush1.msra.mxu0 0.0
        %3982 = vmatprep.subr.mxu0 0.0
        %3983 = vmatpush1.msra.mxu0 0.0
        %3984 = vmatprep.subr.mxu0 0.0
        %3985 = vmatpush1.msra.mxu0 0.0
        %3986 = vmatprep.subr.mxu0 0.0
        %3987 = vmatpush1.msra.mxu0 0.0
        %3988 = vmatprep.subr.mxu0 0.0
        %3989 = vmatpush1.msra.mxu0 0.0
        %3990 = vmatprep.subr.mxu0 0.0
        %3991 = vmatpush1.msra.mxu0 0.0
        %3992 = vmatprep.subr.mxu0 0.0
        %3993 = vmatpush1.msra.mxu0 0.0
        %3994 = vmatprep.subr.mxu0 0.0
        %3995 = vmatpush1.msra.mxu0 0.0
        %3996 = vmatprep.subr.mxu0 0.0
        %3997 = vmatpush1.msra.mxu0 0.0
        %3998 = vmatprep.subr.mxu0 0.0
        %3999 = vmatpush1.msra.mxu0 %v3968
        %4000 = vmatprep.subr.mxu0 0.0
        %4001 = vmatpush1.msra.mxu0 %v3961
        %4002 = vmatprep.subr.mxu0 0.0
        %4003 = vmatpush2.msra.mxu0 0.0
        %4004 = vmatprep.subr.mxu0 0.0
        %4005 = vmatpush2.msra.mxu0 0.0
        %4006 = vmatprep.subr.mxu0 0.0
        %4007 = vmatpush2.msra.mxu0 0.0
        %4008 = vmatprep.subr.mxu0 0.0
        %4009 = vmatpush2.msra.mxu0 0.0
        %4010 = vmatprep.subr.mxu0 0.0
        %4011 = vmatpush2.msra.mxu0 0.0
        %4012 = vmatprep.subr.mxu0 0.0
        %4013 = vmatpush2.msra.mxu0 0.0
        %4014 = vmatprep.subr.mxu0 0.0
        %4015 = vmatpush2.msra.mxu0 0.0
        %4016 = vmatprep.subr.mxu0 0.0
        %4017 = vmatpush2.msra.mxu0 0.0
        %4018 = vmatprep.subr.mxu0 0.0
        %4019 = vmatpush2.msra.mxu0 0.0
        %4020 = vmatprep.subr.mxu0 0.0
        %4021 = vmatpush2.msra.mxu0 0.0
        %4022 = vmatprep.subr.mxu0 0.0
        %4023 = vmatpush2.msra.mxu0 0.0
        %4024 = vmatprep.subr.mxu0 0.0
        %4025 = vmatpush2.msra.mxu0 0.0
        %4026 = vmatprep.subr.mxu0 0.0
        %4027 = vmatpush2.msra.mxu0 0.0
        %4028 = vmatprep.subr.mxu0 0.0
        %4029 = vmatpush2.msra.mxu0 0.0
        %4030 = vmatprep.subr.mxu0 0.0
        %4031 = vmatpush2.msra.mxu0 0.0
        %4032 = vmatprep.subr.mxu0 0.0
        %4033 = vmatpush2.msra.mxu0 0.0
        %4034 = vmatprep.mubr.f32.mxu0 0.0
        %4035 = vmatmul.mubr.f32.gmra.mxu0 %v3966
        %v4036 = vpop.f32.mrf.mxu0
        %v4037 = vadd.f32 0.0, %v4036
        %v4038 = vpop.f32.mrf.mxu0
        %4039 = vdwg.mxu0
        %4041 = vrot.lane.b32.xlu0 %v4037, 8
        %v4042 = vpop.permute.xlu0 %4041
        %4044 = vst.msk [vmem:[#allocation3 + $0x8] sm:$0xff] %vm1601, %v4042
        %4045 = vrot.lane.b32.xlu0 %v2976, 112
        %v4046 = vpop.permute.xlu0 %4045
        %4047 = vrot.lane.b32.xlu0 %v2967, 112
        %v4048 = vpop.permute.xlu0 %4047
        %4049 = vrot.lane.b32.xlu0 %v2972, 112
        %v4050 = vpop.permute.xlu0 %4049
        %v4051 = vsel %vm1268, %v4046, 0
        %v4053 = vsel %vm1268, %v4048, 0
        %v4055 = vsel %vm1268, %v4050, 0
        %4057 = vmatprep.subr.mxu0 0.0
        %4058 = vmatpush1.xpose.msra.mxu0 0.0
        %4059 = vmatprep.subr.mxu0 0.0
        %4060 = vmatpush1.xpose.msra.mxu0 0.0
        %4061 = vmatprep.subr.mxu0 0.0
        %4062 = vmatpush1.xpose.msra.mxu0 0.0
        %4063 = vmatprep.subr.mxu0 0.0
        %4064 = vmatpush1.xpose.msra.mxu0 0.0
        %4065 = vmatprep.subr.mxu0 0.0
        %4066 = vmatpush1.xpose.msra.mxu0 0.0
        %4067 = vmatprep.subr.mxu0 0.0
        %4068 = vmatpush1.xpose.msra.mxu0 0.0
        %4069 = vmatprep.subr.mxu0 0.0
        %4070 = vmatpush1.xpose.msra.mxu0 0.0
        %4071 = vmatprep.subr.mxu0 0.0
        %4072 = vmatpush1.xpose.msra.mxu0 0.0
        %4073 = vmatprep.subr.mxu0 0.0
        %4074 = vmatpush1.xpose.msra.mxu0 0.0
        %4075 = vmatprep.subr.mxu0 0.0
        %4076 = vmatpush1.xpose.msra.mxu0 0.0
        %4077 = vmatprep.subr.mxu0 0.0
        %4078 = vmatpush1.xpose.msra.mxu0 0.0
        %4079 = vmatprep.subr.mxu0 0.0
        %4080 = vmatpush1.xpose.msra.mxu0 0.0
        %4081 = vmatprep.subr.mxu0 0.0
        %4082 = vmatpush1.xpose.msra.mxu0 0.0
        %4083 = vmatprep.subr.mxu0 0.0
        %4084 = vmatpush1.xpose.msra.mxu0 0.0
        %4085 = vmatprep.subr.mxu0 0.0
        %4086 = vmatpush1.xpose.msra.mxu0 %v4055
        %4087 = vmatprep.subr.mxu0 0.0
        %4088 = vmatpush1.xpose.msra.mxu0 %v4053
        %4089 = vmatprep.subr.mxu0 0.0
        %4090 = vmatpush2.xpose.msra.mxu0 0.0
        %4091 = vmatprep.subr.mxu0 0.0
        %4092 = vmatpush2.xpose.msra.mxu0 0.0
        %4093 = vmatprep.subr.mxu0 0.0
        %4094 = vmatpush2.xpose.msra.mxu0 0.0
        %4095 = vmatprep.subr.mxu0 0.0
        %4096 = vmatpush2.xpose.msra.mxu0 0.0
        %4097 = vmatprep.subr.mxu0 0.0
        %4098 = vmatpush2.xpose.msra.mxu0 0.0
        %4099 = vmatprep.subr.mxu0 0.0
        %4100 = vmatpush2.xpose.msra.mxu0 0.0
        %4101 = vmatprep.subr.mxu0 0.0
        %4102 = vmatpush2.xpose.msra.mxu0 0.0
        %4103 = vmatprep.subr.mxu0 0.0
        %4104 = vmatpush2.xpose.msra.mxu0 0.0
        %4105 = vmatprep.subr.mxu0 0.0
        %4106 = vmatpush2.xpose.msra.mxu0 0.0
        %4107 = vmatprep.subr.mxu0 0.0
        %4108 = vmatpush2.xpose.msra.mxu0 0.0
        %4109 = vmatprep.subr.mxu0 0.0
        %4110 = vmatpush2.xpose.msra.mxu0 0.0
        %4111 = vmatprep.subr.mxu0 0.0
        %4112 = vmatpush2.xpose.msra.mxu0 0.0
        %4113 = vmatprep.subr.mxu0 0.0
        %4114 = vmatpush2.xpose.msra.mxu0 0.0
        %4115 = vmatprep.subr.mxu0 0.0
        %4116 = vmatpush2.xpose.msra.mxu0 0.0
        %4117 = vmatprep.subr.mxu0 0.0
        %4118 = vmatpush2.xpose.msra.mxu0 0.0
        %4119 = vmatprep.subr.mxu0 0.0
        %4120 = vmatpush2.xpose.msra.mxu0 0.0
        %4121 = vmatprep.mubr.f32.mxu0 0.0
        %4122 = vmatmul.mubr.f32.gmra.mxu0 %v4051
        %v4123 = vpop.f32.mrf.mxu0
        %v4124 = vadd.f32 %v3695, %v4123
        %v4125 = vpop.f32.mrf.mxu0
        %4126 = vdwg.mxu0
        %v4127 = vsel %vm3064, %v4124, -inf
        %4128 = vmax.xlane.f32.xlu0 %v4127
        %v4129 = vpop.xlane.xlu0 %4128
        %v4130 = vsub.f32 %v4124, %v4129
        %v4131 = vmul.f32 %v4130, 1.442695
        %v4132 = vpow.pop %v4131
        %v4133 = vsel %vm3064, %v4132, 0.0
        %4134 = vadd.xlane.f32.xlu0 %v4133
        %v4135 = vpop.xlane.xlu0 %4134
        %v4136 = vrcp.pop %v4135
        %v4137 = vmul.f32 %v4132, %v4136
        %4138 = vrot.lane.b32.xlu0 %v2967, 80
        %v4139 = vpop.permute.xlu0 %4138
        %4140 = vrot.lane.b32.xlu0 %v2972, 80
        %v4141 = vpop.permute.xlu0 %4140
        %v4144 = vsel %vm3064, %v4137, 0
        %v4146 = vsel %vm3084, %v4141, 0
        %4148 = vmatprep.subr.mxu0 0.0
        %4149 = vmatpush1.msra.mxu0 0.0
        %4150 = vmatprep.subr.mxu0 0.0
        %4151 = vmatpush1.msra.mxu0 0.0
        %4152 = vmatprep.subr.mxu0 0.0
        %4153 = vmatpush1.msra.mxu0 0.0
        %4154 = vmatprep.subr.mxu0 0.0
        %4155 = vmatpush1.msra.mxu0 0.0
        %4156 = vmatprep.subr.mxu0 0.0
        %4157 = vmatpush1.msra.mxu0 0.0
        %4158 = vmatprep.subr.mxu0 0.0
        %4159 = vmatpush1.msra.mxu0 0.0
        %4160 = vmatprep.subr.mxu0 0.0
        %4161 = vmatpush1.msra.mxu0 0.0
        %4162 = vmatprep.subr.mxu0 0.0
        %4163 = vmatpush1.msra.mxu0 0.0
        %4164 = vmatprep.subr.mxu0 0.0
        %4165 = vmatpush1.msra.mxu0 0.0
        %4166 = vmatprep.subr.mxu0 0.0
        %4167 = vmatpush1.msra.mxu0 0.0
        %4168 = vmatprep.subr.mxu0 0.0
        %4169 = vmatpush1.msra.mxu0 0.0
        %4170 = vmatprep.subr.mxu0 0.0
        %4171 = vmatpush1.msra.mxu0 0.0
        %4172 = vmatprep.subr.mxu0 0.0
        %4173 = vmatpush1.msra.mxu0 0.0
        %4174 = vmatprep.subr.mxu0 0.0
        %4175 = vmatpush1.msra.mxu0 0.0
        %4176 = vmatprep.subr.mxu0 0.0
        %4177 = vmatpush1.msra.mxu0 %v4146
        %4178 = vmatprep.subr.mxu0 0.0
        %4179 = vmatpush1.msra.mxu0 %v4139
        %4180 = vmatprep.subr.mxu0 0.0
        %4181 = vmatpush2.msra.mxu0 0.0
        %4182 = vmatprep.subr.mxu0 0.0
        %4183 = vmatpush2.msra.mxu0 0.0
        %4184 = vmatprep.subr.mxu0 0.0
        %4185 = vmatpush2.msra.mxu0 0.0
        %4186 = vmatprep.subr.mxu0 0.0
        %4187 = vmatpush2.msra.mxu0 0.0
        %4188 = vmatprep.subr.mxu0 0.0
        %4189 = vmatpush2.msra.mxu0 0.0
        %4190 = vmatprep.subr.mxu0 0.0
        %4191 = vmatpush2.msra.mxu0 0.0
        %4192 = vmatprep.subr.mxu0 0.0
        %4193 = vmatpush2.msra.mxu0 0.0
        %4194 = vmatprep.subr.mxu0 0.0
        %4195 = vmatpush2.msra.mxu0 0.0
        %4196 = vmatprep.subr.mxu0 0.0
        %4197 = vmatpush2.msra.mxu0 0.0
        %4198 = vmatprep.subr.mxu0 0.0
        %4199 = vmatpush2.msra.mxu0 0.0
        %4200 = vmatprep.subr.mxu0 0.0
        %4201 = vmatpush2.msra.mxu0 0.0
        %4202 = vmatprep.subr.mxu0 0.0
        %4203 = vmatpush2.msra.mxu0 0.0
        %4204 = vmatprep.subr.mxu0 0.0
        %4205 = vmatpush2.msra.mxu0 0.0
        %4206 = vmatprep.subr.mxu0 0.0
        %4207 = vmatpush2.msra.mxu0 0.0
        %4208 = vmatprep.subr.mxu0 0.0
        %4209 = vmatpush2.msra.mxu0 0.0
        %4210 = vmatprep.subr.mxu0 0.0
        %4211 = vmatpush2.msra.mxu0 0.0
        %4212 = vmatprep.mubr.f32.mxu0 0.0
        %4213 = vmatmul.mubr.f32.gmra.mxu0 %v4144
        %v4214 = vpop.f32.mrf.mxu0
        %v4215 = vadd.f32 0.0, %v4214
        %v4216 = vpop.f32.mrf.mxu0
        %4217 = vdwg.mxu0
        %4219 = vrot.lane.b32.xlu0 %v4215, 16
        %v4220 = vpop.permute.xlu0 %4219
        %4222 = vst.msk [vmem:[#allocation3 + $0x8] sm:$0xff] %vm1772, %v4220
        %4223 = vrot.lane.b32.xlu0 %v2976, 104
        %v4224 = vpop.permute.xlu0 %4223
        %4225 = vrot.lane.b32.xlu0 %v2967, 104
        %v4226 = vpop.permute.xlu0 %4225
        %4227 = vrot.lane.b32.xlu0 %v2972, 104
        %v4228 = vpop.permute.xlu0 %4227
        %v4229 = vsel %vm1268, %v4224, 0
        %v4231 = vsel %vm1268, %v4226, 0
        %v4233 = vsel %vm1268, %v4228, 0
        %4235 = vmatprep.subr.mxu0 0.0
        %4236 = vmatpush1.xpose.msra.mxu0 0.0
        %4237 = vmatprep.subr.mxu0 0.0
        %4238 = vmatpush1.xpose.msra.mxu0 0.0
        %4239 = vmatprep.subr.mxu0 0.0
        %4240 = vmatpush1.xpose.msra.mxu0 0.0
        %4241 = vmatprep.subr.mxu0 0.0
        %4242 = vmatpush1.xpose.msra.mxu0 0.0
        %4243 = vmatprep.subr.mxu0 0.0
        %4244 = vmatpush1.xpose.msra.mxu0 0.0
        %4245 = vmatprep.subr.mxu0 0.0
        %4246 = vmatpush1.xpose.msra.mxu0 0.0
        %4247 = vmatprep.subr.mxu0 0.0
        %4248 = vmatpush1.xpose.msra.mxu0 0.0
        %4249 = vmatprep.subr.mxu0 0.0
        %4250 = vmatpush1.xpose.msra.mxu0 0.0
        %4251 = vmatprep.subr.mxu0 0.0
        %4252 = vmatpush1.xpose.msra.mxu0 0.0
        %4253 = vmatprep.subr.mxu0 0.0
        %4254 = vmatpush1.xpose.msra.mxu0 0.0
        %4255 = vmatprep.subr.mxu0 0.0
        %4256 = vmatpush1.xpose.msra.mxu0 0.0
        %4257 = vmatprep.subr.mxu0 0.0
        %4258 = vmatpush1.xpose.msra.mxu0 0.0
        %4259 = vmatprep.subr.mxu0 0.0
        %4260 = vmatpush1.xpose.msra.mxu0 0.0
        %4261 = vmatprep.subr.mxu0 0.0
        %4262 = vmatpush1.xpose.msra.mxu0 0.0
        %4263 = vmatprep.subr.mxu0 0.0
        %4264 = vmatpush1.xpose.msra.mxu0 %v4233
        %4265 = vmatprep.subr.mxu0 0.0
        %4266 = vmatpush1.xpose.msra.mxu0 %v4231
        %4267 = vmatprep.subr.mxu0 0.0
        %4268 = vmatpush2.xpose.msra.mxu0 0.0
        %4269 = vmatprep.subr.mxu0 0.0
        %4270 = vmatpush2.xpose.msra.mxu0 0.0
        %4271 = vmatprep.subr.mxu0 0.0
        %4272 = vmatpush2.xpose.msra.mxu0 0.0
        %4273 = vmatprep.subr.mxu0 0.0
        %4274 = vmatpush2.xpose.msra.mxu0 0.0
        %4275 = vmatprep.subr.mxu0 0.0
        %4276 = vmatpush2.xpose.msra.mxu0 0.0
        %4277 = vmatprep.subr.mxu0 0.0
        %4278 = vmatpush2.xpose.msra.mxu0 0.0
        %4279 = vmatprep.subr.mxu0 0.0
        %4280 = vmatpush2.xpose.msra.mxu0 0.0
        %4281 = vmatprep.subr.mxu0 0.0
        %4282 = vmatpush2.xpose.msra.mxu0 0.0
        %4283 = vmatprep.subr.mxu0 0.0
        %4284 = vmatpush2.xpose.msra.mxu0 0.0
        %4285 = vmatprep.subr.mxu0 0.0
        %4286 = vmatpush2.xpose.msra.mxu0 0.0
        %4287 = vmatprep.subr.mxu0 0.0
        %4288 = vmatpush2.xpose.msra.mxu0 0.0
        %4289 = vmatprep.subr.mxu0 0.0
        %4290 = vmatpush2.xpose.msra.mxu0 0.0
        %4291 = vmatprep.subr.mxu0 0.0
        %4292 = vmatpush2.xpose.msra.mxu0 0.0
        %4293 = vmatprep.subr.mxu0 0.0
        %4294 = vmatpush2.xpose.msra.mxu0 0.0
        %4295 = vmatprep.subr.mxu0 0.0
        %4296 = vmatpush2.xpose.msra.mxu0 0.0
        %4297 = vmatprep.subr.mxu0 0.0
        %4298 = vmatpush2.xpose.msra.mxu0 0.0
        %4299 = vmatprep.mubr.f32.mxu0 0.0
        %4300 = vmatmul.mubr.f32.gmra.mxu0 %v4229
        %v4301 = vpop.f32.mrf.mxu0
        %v4302 = vadd.f32 %v3695, %v4301
        %v4303 = vpop.f32.mrf.mxu0
        %4304 = vdwg.mxu0
        %v4305 = vsel %vm3064, %v4302, -inf
        %4306 = vmax.xlane.f32.xlu0 %v4305
        %v4307 = vpop.xlane.xlu0 %4306
        %v4308 = vsub.f32 %v4302, %v4307
        %v4309 = vmul.f32 %v4308, 1.442695
        %v4310 = vpow.pop %v4309
        %v4311 = vsel %vm3064, %v4310, 0.0
        %4312 = vadd.xlane.f32.xlu0 %v4311
        %v4313 = vpop.xlane.xlu0 %4312
        %v4314 = vrcp.pop %v4313
        %v4315 = vmul.f32 %v4310, %v4314
        %4316 = vrot.lane.b32.xlu0 %v2967, 72
        %v4317 = vpop.permute.xlu0 %4316
        %4318 = vrot.lane.b32.xlu0 %v2972, 72
        %v4319 = vpop.permute.xlu0 %4318
        %v4322 = vsel %vm3064, %v4315, 0
        %v4324 = vsel %vm3084, %v4319, 0
        %4326 = vmatprep.subr.mxu0 0.0
        %4327 = vmatpush1.msra.mxu0 0.0
        %4328 = vmatprep.subr.mxu0 0.0
        %4329 = vmatpush1.msra.mxu0 0.0
        %4330 = vmatprep.subr.mxu0 0.0
        %4331 = vmatpush1.msra.mxu0 0.0
        %4332 = vmatprep.subr.mxu0 0.0
        %4333 = vmatpush1.msra.mxu0 0.0
        %4334 = vmatprep.subr.mxu0 0.0
        %4335 = vmatpush1.msra.mxu0 0.0
        %4336 = vmatprep.subr.mxu0 0.0
        %4337 = vmatpush1.msra.mxu0 0.0
        %4338 = vmatprep.subr.mxu0 0.0
        %4339 = vmatpush1.msra.mxu0 0.0
        %4340 = vmatprep.subr.mxu0 0.0
        %4341 = vmatpush1.msra.mxu0 0.0
        %4342 = vmatprep.subr.mxu0 0.0
        %4343 = vmatpush1.msra.mxu0 0.0
        %4344 = vmatprep.subr.mxu0 0.0
        %4345 = vmatpush1.msra.mxu0 0.0
        %4346 = vmatprep.subr.mxu0 0.0
        %4347 = vmatpush1.msra.mxu0 0.0
        %4348 = vmatprep.subr.mxu0 0.0
        %4349 = vmatpush1.msra.mxu0 0.0
        %4350 = vmatprep.subr.mxu0 0.0
        %4351 = vmatpush1.msra.mxu0 0.0
        %4352 = vmatprep.subr.mxu0 0.0
        %4353 = vmatpush1.msra.mxu0 0.0
        %4354 = vmatprep.subr.mxu0 0.0
        %4355 = vmatpush1.msra.mxu0 %v4324
        %4356 = vmatprep.subr.mxu0 0.0
        %4357 = vmatpush1.msra.mxu0 %v4317
        %4358 = vmatprep.subr.mxu0 0.0
        %4359 = vmatpush2.msra.mxu0 0.0
        %4360 = vmatprep.subr.mxu0 0.0
        %4361 = vmatpush2.msra.mxu0 0.0
        %4362 = vmatprep.subr.mxu0 0.0
        %4363 = vmatpush2.msra.mxu0 0.0
        %4364 = vmatprep.subr.mxu0 0.0
        %4365 = vmatpush2.msra.mxu0 0.0
        %4366 = vmatprep.subr.mxu0 0.0
        %4367 = vmatpush2.msra.mxu0 0.0
        %4368 = vmatprep.subr.mxu0 0.0
        %4369 = vmatpush2.msra.mxu0 0.0
        %4370 = vmatprep.subr.mxu0 0.0
        %4371 = vmatpush2.msra.mxu0 0.0
        %4372 = vmatprep.subr.mxu0 0.0
        %4373 = vmatpush2.msra.mxu0 0.0
        %4374 = vmatprep.subr.mxu0 0.0
        %4375 = vmatpush2.msra.mxu0 0.0
        %4376 = vmatprep.subr.mxu0 0.0
        %4377 = vmatpush2.msra.mxu0 0.0
        %4378 = vmatprep.subr.mxu0 0.0
        %4379 = vmatpush2.msra.mxu0 0.0
        %4380 = vmatprep.subr.mxu0 0.0
        %4381 = vmatpush2.msra.mxu0 0.0
        %4382 = vmatprep.subr.mxu0 0.0
        %4383 = vmatpush2.msra.mxu0 0.0
        %4384 = vmatprep.subr.mxu0 0.0
        %4385 = vmatpush2.msra.mxu0 0.0
        %4386 = vmatprep.subr.mxu0 0.0
        %4387 = vmatpush2.msra.mxu0 0.0
        %4388 = vmatprep.subr.mxu0 0.0
        %4389 = vmatpush2.msra.mxu0 0.0
        %4390 = vmatprep.mubr.f32.mxu0 0.0
        %4391 = vmatmul.mubr.f32.gmra.mxu0 %v4322
        %v4392 = vpop.f32.mrf.mxu0
        %v4393 = vadd.f32 0.0, %v4392
        %v4394 = vpop.f32.mrf.mxu0
        %4395 = vdwg.mxu0
        %4397 = vrot.lane.b32.xlu0 %v4393, 24
        %v4398 = vpop.permute.xlu0 %4397
        %4400 = vst.msk [vmem:[#allocation3 + $0x8] sm:$0xff] %vm1943, %v4398
        %v4401 = vld [vmem:[#allocation3] sm:$0xff]
        %v4402 = vld [vmem:[#allocation3 + $0x8] sm:$0xff]
        %v4403 = vld [vmem:[%s867] sm:$0xff]
        %v4404 = vld [vmem:[%s867 + $0x8] sm:$0xff]
        %v4405 = vld [vmem:[%s867 + $0x10] sm:$0xff]
        %v4406 = vld [vmem:[%s867 + $0x18] sm:$0xff]
        %v4408 = vsel %vm1113, %v4401, 0
        %v4411 = vsel %vm1113, %v4402, 0
        %4413 = vmatprep.subr.mxu0 0.0
        %4414 = vmatpush1.msra.mxu0 0.0
        %4415 = vmatprep.subr.mxu0 0.0
        %4416 = vmatpush1.msra.mxu0 0.0
        %4417 = vmatprep.subr.mxu0 0.0
        %4418 = vmatpush1.msra.mxu0 0.0
        %4419 = vmatprep.subr.mxu0 0.0
        %4420 = vmatpush1.msra.mxu0 0.0
        %4421 = vmatprep.subr.mxu0 0.0
        %4422 = vmatpush1.msra.mxu0 0.0
        %4423 = vmatprep.subr.mxu0 0.0
        %4424 = vmatpush1.msra.mxu0 0.0
        %4425 = vmatprep.subr.mxu0 0.0
        %4426 = vmatpush1.msra.mxu0 0.0
        %4427 = vmatprep.subr.mxu0 0.0
        %4428 = vmatpush1.msra.mxu0 0.0
        %4429 = vmatprep.subr.mxu0 0.0
        %4430 = vmatpush1.msra.mxu0 0.0
        %4431 = vmatprep.subr.mxu0 0.0
        %4432 = vmatpush1.msra.mxu0 0.0
        %4433 = vmatprep.subr.mxu0 0.0
        %4434 = vmatpush1.msra.mxu0 0.0
        %4435 = vmatprep.subr.mxu0 0.0
        %4436 = vmatpush1.msra.mxu0 0.0
        %4437 = vmatprep.subr.mxu0 0.0
        %4438 = vmatpush1.msra.mxu0 %v4406
        %4439 = vmatprep.subr.mxu0 0.0
        %4440 = vmatpush1.msra.mxu0 %v4405
        %4441 = vmatprep.subr.mxu0 0.0
        %4442 = vmatpush1.msra.mxu0 %v4404
        %4443 = vmatprep.subr.mxu0 0.0
        %4444 = vmatpush1.msra.mxu0 %v4403
        %4445 = vmatprep.subr.mxu0 0.0
        %4446 = vmatpush2.msra.mxu0 0.0
        %4447 = vmatprep.subr.mxu0 0.0
        %4448 = vmatpush2.msra.mxu0 0.0
        %4449 = vmatprep.subr.mxu0 0.0
        %4450 = vmatpush2.msra.mxu0 0.0
        %4451 = vmatprep.subr.mxu0 0.0
        %4452 = vmatpush2.msra.mxu0 0.0
        %4453 = vmatprep.subr.mxu0 0.0
        %4454 = vmatpush2.msra.mxu0 0.0
        %4455 = vmatprep.subr.mxu0 0.0
        %4456 = vmatpush2.msra.mxu0 0.0
        %4457 = vmatprep.subr.mxu0 0.0
        %4458 = vmatpush2.msra.mxu0 0.0
        %4459 = vmatprep.subr.mxu0 0.0
        %4460 = vmatpush2.msra.mxu0 0.0
        %4461 = vmatprep.subr.mxu0 0.0
        %4462 = vmatpush2.msra.mxu0 0.0
        %4463 = vmatprep.subr.mxu0 0.0
        %4464 = vmatpush2.msra.mxu0 0.0
        %4465 = vmatprep.subr.mxu0 0.0
        %4466 = vmatpush2.msra.mxu0 0.0
        %4467 = vmatprep.subr.mxu0 0.0
        %4468 = vmatpush2.msra.mxu0 0.0
        %4469 = vmatprep.subr.mxu0 0.0
        %4470 = vmatpush2.msra.mxu0 0.0
        %4471 = vmatprep.subr.mxu0 0.0
        %4472 = vmatpush2.msra.mxu0 0.0
        %4473 = vmatprep.subr.mxu0 0.0
        %4474 = vmatpush2.msra.mxu0 0.0
        %4475 = vmatprep.subr.mxu0 0.0
        %4476 = vmatpush2.msra.mxu0 0.0
        %4477 = vmatprep.mubr.f32.mxu0 0.0
        %4478 = vmatmul.mubr.f32.gmra.mxu0 %v4408
        %v4479 = vpop.f32.mrf.mxu0
        %v4480 = vadd.f32 0.0, %v4479
        %v4481 = vpop.f32.mrf.mxu0
        %4482 = vmatprep.mubr.f32.mxu0 0.0
        %4483 = vmatmul.mubr.f32.gmra.mxu0 %v4411
        %v4484 = vpop.f32.mrf.mxu0
        %v4485 = vadd.f32 0.0, %v4484
        %v4486 = vpop.f32.mrf.mxu0
        %4487 = vdwg.mxu0
        %v4488 = vadd.f32 %v2717, %v4480
        %v4489 = vadd.f32 %v2718, %v4485
        %v4490 = vld [vmem:[%s1064] sm:$0x1]
        %v4492 = vlaneseq
        %v4493 = vshrl.u32 %v4492, 7
        %v4494 = vsub.s32 0, %v4493
        %v4495 = vrot.slane %v4490, %v4494
        %v4497 = vadd.f32 %v4488, %v4495
        %v4498 = vadd.f32 %v4489, %v4495
        %v4499 = vsel %vm1113, %v4497, 0.0
        %4500 = vadd.xlane.f32.xlu0 %v4499
        %v4501 = vpop.xlane.xlu0 %4500
        %v4502 = vsel %vm1113, %v4498, 0.0
        %4503 = vadd.xlane.f32.xlu0 %v4502
        %v4504 = vpop.xlane.xlu0 %4503
        %v4505 = vmul.f32 %v4501, %v1120
        %v4506 = vmul.f32 %v4504, %v1120
        %v4507 = vsub.f32 %v4497, %v4505
        %v4508 = vsub.f32 %v4498, %v4506
        %v4509 = vmul.f32 %v4507, %v4507
        %v4510 = vmul.f32 %v4508, %v4508
        %v4511 = vsel %vm1113, %v4509, 0.0
        %4512 = vadd.xlane.f32.xlu0 %v4511
        %v4513 = vpop.xlane.xlu0 %4512
        %v4514 = vsel %vm1113, %v4510, 0.0
        %4515 = vadd.xlane.f32.xlu0 %v4514
        %v4516 = vpop.xlane.xlu0 %4515
        %v4517 = vmul.f32 %v4513, 0.032258064
        %v4518 = vmul.f32 %v4516, 0.032258064
        %v4519 = vrsqrt.pop %v4517
        %v4520 = vmul.f32 %v4517, %v4519
        %vm4521 = vcmp.eq.f32.partialorder %v4517, inf
        %v4522 = vsel %vm4521, %v4517, %v4520
        %vm4523 = vcmp.eq.f32.partialorder %v4517, 0.0
        %v4524 = vand.u32 %v4517, 2147483648
        %v4525 = vsel %vm4523, %v4524, %v4522
        %v4526 = vrsqrt.pop %v4518
        %v4527 = vmul.f32 %v4518, %v4526
        %vm4528 = vcmp.eq.f32.partialorder %v4518, inf
        %v4529 = vsel %vm4528, %v4518, %v4527
        %vm4530 = vcmp.eq.f32.partialorder %v4518, 0.0
        %v4531 = vand.u32 %v4518, 2147483648
        %v4532 = vsel %vm4530, %v4531, %v4529
        %v4533 = vadd.f32 %v4525, 1e-06
        %v4534 = vadd.f32 %v4532, 1e-06
        %v4535 = vrcp.pop %v4533
        %v4536 = vrcp.pop %v4534
        %v4537 = vmul.f32 %v4507, %v4535
        %v4538 = vmul.f32 %v4508, %v4536
        %v4539 = vlaneseq
        %v4540 = vshrl.u32 %v4539, 7
        %v4541 = vsub.s32 2, %v4540
        %v4542 = vrot.slane %v1109, %v4541
        %v4543 = vmul.f32 %v4542, %v4537
        %v4544 = vmul.f32 %v4542, %v4538
        %v4545 = vlaneseq
        %v4546 = vshrl.u32 %v4545, 7
        %v4547 = vsub.s32 2, %v4546
        %v4548 = vrot.slane %v1110, %v4547
        %v4549 = vadd.f32 %v4543, %v4548
        %v4550 = vadd.f32 %v4544, %v4548
        %v4551 = vld [vmem:[%s876] sm:$0xff]
        %v4552 = vld [vmem:[%s876 + $0x8] sm:$0xff]
        %v4553 = vld [vmem:[%s876 + $0x10] sm:$0xff]
        %v4554 = vld [vmem:[%s876 + $0x18] sm:$0xff]
        %v4555 = vld [vmem:[%s1067] sm:$0x1]
        %v4557 = vlaneseq
        %v4558 = vshrl.u32 %v4557, 7
        %v4559 = vsub.s32 0, %v4558
        %v4560 = vrot.slane %v4555, %v4559
        %v4563 = vsel %vm1113, %v4549, 0
        %v4566 = vsel %vm1113, %v4550, 0
        %4568 = vmatprep.subr.mxu0 0.0
        %4569 = vmatpush1.msra.mxu0 0.0
        %4570 = vmatprep.subr.mxu0 0.0
        %4571 = vmatpush1.msra.mxu0 0.0
        %4572 = vmatprep.subr.mxu0 0.0
        %4573 = vmatpush1.msra.mxu0 0.0
        %4574 = vmatprep.subr.mxu0 0.0
        %4575 = vmatpush1.msra.mxu0 0.0
        %4576 = vmatprep.subr.mxu0 0.0
        %4577 = vmatpush1.msra.mxu0 0.0
        %4578 = vmatprep.subr.mxu0 0.0
        %4579 = vmatpush1.msra.mxu0 0.0
        %4580 = vmatprep.subr.mxu0 0.0
        %4581 = vmatpush1.msra.mxu0 0.0
        %4582 = vmatprep.subr.mxu0 0.0
        %4583 = vmatpush1.msra.mxu0 0.0
        %4584 = vmatprep.subr.mxu0 0.0
        %4585 = vmatpush1.msra.mxu0 0.0
        %4586 = vmatprep.subr.mxu0 0.0
        %4587 = vmatpush1.msra.mxu0 0.0
        %4588 = vmatprep.subr.mxu0 0.0
        %4589 = vmatpush1.msra.mxu0 0.0
        %4590 = vmatprep.subr.mxu0 0.0
        %4591 = vmatpush1.msra.mxu0 0.0
        %4592 = vmatprep.subr.mxu0 0.0
        %4593 = vmatpush1.msra.mxu0 %v4554
        %4594 = vmatprep.subr.mxu0 0.0
        %4595 = vmatpush1.msra.mxu0 %v4553
        %4596 = vmatprep.subr.mxu0 0.0
        %4597 = vmatpush1.msra.mxu0 %v4552
        %4598 = vmatprep.subr.mxu0 0.0
        %4599 = vmatpush1.msra.mxu0 %v4551
        %4600 = vmatprep.subr.mxu0 0.0
        %4601 = vmatpush2.msra.mxu0 0.0
        %4602 = vmatprep.subr.mxu0 0.0
        %4603 = vmatpush2.msra.mxu0 0.0
        %4604 = vmatprep.subr.mxu0 0.0
        %4605 = vmatpush2.msra.mxu0 0.0
        %4606 = vmatprep.subr.mxu0 0.0
        %4607 = vmatpush2.msra.mxu0 0.0
        %4608 = vmatprep.subr.mxu0 0.0
        %4609 = vmatpush2.msra.mxu0 0.0
        %4610 = vmatprep.subr.mxu0 0.0
        %4611 = vmatpush2.msra.mxu0 0.0
        %4612 = vmatprep.subr.mxu0 0.0
        %4613 = vmatpush2.msra.mxu0 0.0
        %4614 = vmatprep.subr.mxu0 0.0
        %4615 = vmatpush2.msra.mxu0 0.0
        %4616 = vmatprep.subr.mxu0 0.0
        %4617 = vmatpush2.msra.mxu0 0.0
        %4618 = vmatprep.subr.mxu0 0.0
        %4619 = vmatpush2.msra.mxu0 0.0
        %4620 = vmatprep.subr.mxu0 0.0
        %4621 = vmatpush2.msra.mxu0 0.0
        %4622 = vmatprep.subr.mxu0 0.0
        %4623 = vmatpush2.msra.mxu0 0.0
        %4624 = vmatprep.subr.mxu0 0.0
        %4625 = vmatpush2.msra.mxu0 0.0
        %4626 = vmatprep.subr.mxu0 0.0
        %4627 = vmatpush2.msra.mxu0 0.0
        %4628 = vmatprep.subr.mxu0 0.0
        %4629 = vmatpush2.msra.mxu0 0.0
        %4630 = vmatprep.subr.mxu0 0.0
        %4631 = vmatpush2.msra.mxu0 0.0
        %4632 = vmatprep.mubr.f32.mxu0 0.0
        %4633 = vmatmul.mubr.f32.gmra.mxu0 %v4563
        %v4634 = vpop.f32.mrf.mxu0
        %v4635 = vadd.f32 %v4560, %v4634
        %v4636 = vpop.f32.mrf.mxu0
        %4637 = vmatprep.mubr.f32.mxu0 0.0
        %4638 = vmatmul.mubr.f32.gmra.mxu0 %v4566
        %v4639 = vpop.f32.mrf.mxu0
        %v4640 = vadd.f32 %v4560, %v4639
        %v4641 = vpop.f32.mrf.mxu0
        %4642 = vdwg.mxu0
        %v4643 = vmax.f32 %v4635, 0.0
        %v4644 = vmax.f32 %v4640, 0.0
        %v4645 = vld [vmem:[%s1072] sm:$0xff]
        %v4646 = vld [vmem:[%s1072 + $0x8] sm:$0xff]
        %v4647 = vld [vmem:[%s1072 + $0x10] sm:$0xff]
        %v4648 = vld [vmem:[%s1072 + $0x18] sm:$0xff]
        %v4649 = vld [vmem:[%s1072 + $0x20] sm:$0xff]
        %v4650 = vld [vmem:[%s1072 + $0x28] sm:$0xff]
        %v4651 = vld [vmem:[%s1072 + $0x30] sm:$0xff]
        %v4652 = vld [vmem:[%s1072 + $0x38] sm:$0xff]
        %vm4653 = vcmask 523264
        %v4655 = vsel %vm4653, %v4643, 0
        %v4658 = vsel %vm4653, %v4644, 0
        %4660 = vmatprep.subr.mxu0 0.0
        %4661 = vmatpush1.msra.mxu0 0.0
        %4662 = vmatprep.subr.mxu0 0.0
        %4663 = vmatpush1.msra.mxu0 0.0
        %4664 = vmatprep.subr.mxu0 0.0
        %4665 = vmatpush1.msra.mxu0 0.0
        %4666 = vmatprep.subr.mxu0 0.0
        %4667 = vmatpush1.msra.mxu0 0.0
        %4668 = vmatprep.subr.mxu0 0.0
        %4669 = vmatpush1.msra.mxu0 0.0
        %4670 = vmatprep.subr.mxu0 0.0
        %4671 = vmatpush1.msra.mxu0 0.0
        %4672 = vmatprep.subr.mxu0 0.0
        %4673 = vmatpush1.msra.mxu0 0.0
        %4674 = vmatprep.subr.mxu0 0.0
        %4675 = vmatpush1.msra.mxu0 0.0
        %4676 = vmatprep.subr.mxu0 0.0
        %4677 = vmatpush1.msra.mxu0 %v4652
        %4678 = vmatprep.subr.mxu0 0.0
        %4679 = vmatpush1.msra.mxu0 %v4651
        %4680 = vmatprep.subr.mxu0 0.0
        %4681 = vmatpush1.msra.mxu0 %v4650
        %4682 = vmatprep.subr.mxu0 0.0
        %4683 = vmatpush1.msra.mxu0 %v4649
        %4684 = vmatprep.subr.mxu0 0.0
        %4685 = vmatpush1.msra.mxu0 %v4648
        %4686 = vmatprep.subr.mxu0 0.0
        %4687 = vmatpush1.msra.mxu0 %v4647
        %4688 = vmatprep.subr.mxu0 0.0
        %4689 = vmatpush1.msra.mxu0 %v4646
        %4690 = vmatprep.subr.mxu0 0.0
        %4691 = vmatpush1.msra.mxu0 %v4645
        %4692 = vmatprep.subr.mxu0 0.0
        %4693 = vmatpush2.msra.mxu0 0.0
        %4694 = vmatprep.subr.mxu0 0.0
        %4695 = vmatpush2.msra.mxu0 0.0
        %4696 = vmatprep.subr.mxu0 0.0
        %4697 = vmatpush2.msra.mxu0 0.0
        %4698 = vmatprep.subr.mxu0 0.0
        %4699 = vmatpush2.msra.mxu0 0.0
        %4700 = vmatprep.subr.mxu0 0.0
        %4701 = vmatpush2.msra.mxu0 0.0
        %4702 = vmatprep.subr.mxu0 0.0
        %4703 = vmatpush2.msra.mxu0 0.0
        %4704 = vmatprep.subr.mxu0 0.0
        %4705 = vmatpush2.msra.mxu0 0.0
        %4706 = vmatprep.subr.mxu0 0.0
        %4707 = vmatpush2.msra.mxu0 0.0
        %4708 = vmatprep.subr.mxu0 0.0
        %4709 = vmatpush2.msra.mxu0 0.0
        %4710 = vmatprep.subr.mxu0 0.0
        %4711 = vmatpush2.msra.mxu0 0.0
        %4712 = vmatprep.subr.mxu0 0.0
        %4713 = vmatpush2.msra.mxu0 0.0
        %4714 = vmatprep.subr.mxu0 0.0
        %4715 = vmatpush2.msra.mxu0 0.0
        %4716 = vmatprep.subr.mxu0 0.0
        %4717 = vmatpush2.msra.mxu0 0.0
        %4718 = vmatprep.subr.mxu0 0.0
        %4719 = vmatpush2.msra.mxu0 0.0
        %4720 = vmatprep.subr.mxu0 0.0
        %4721 = vmatpush2.msra.mxu0 0.0
        %4722 = vmatprep.subr.mxu0 0.0
        %4723 = vmatpush2.msra.mxu0 0.0
        %4724 = vmatprep.mubr.f32.mxu0 0.0
        %4725 = vmatmul.mubr.f32.gmra.mxu0 %v4655
        %v4726 = vpop.f32.mrf.mxu0
        %v4727 = vadd.f32 0.0, %v4726
        %v4728 = vpop.f32.mrf.mxu0
        %4729 = vmatprep.mubr.f32.mxu0 0.0
        %4730 = vmatmul.mubr.f32.gmra.mxu0 %v4658
        %v4731 = vpop.f32.mrf.mxu0
        %v4732 = vadd.f32 0.0, %v4731
        %v4733 = vpop.f32.mrf.mxu0
        %4734 = vdwg.mxu0
        %v4735 = vadd.f32 %v4497, %v4727
        %v4736 = vadd.f32 %v4498, %v4732
        %v4737 = vld [vmem:[%s1075] sm:$0x1]
        %v4739 = vlaneseq
        %v4740 = vshrl.u32 %v4739, 7
        %v4741 = vsub.s32 0, %v4740
        %v4742 = vrot.slane %v4737, %v4741
        %v4744 = vadd.f32 %v4735, %v4742
        %v4745 = vadd.f32 %v4736, %v4742
        %4746 = vst.msk [vmem:[#allocation2] sm:$0xff] %vm1113, %v4744
        %4747 = vst.msk [vmem:[#allocation2 + $0x8] sm:$0xff] %vm1113, %v4745
        %p4748 = scmp.eq.s32.totalorder %s45, 1
        // Predicated region
        $region125: #{tpu_custom_call.1} parent=107 // pred_check
          %p4749 = pneg %p4748
        $region126: #{tpu_custom_call.1} parent=107 // pred_check_branch
          %4751 = sbr.rel (%p4749) target = $region128
        $region127: #{tpu_custom_call.1} parent=107 // pred_region
          %v4752 = vld [vmem:[%s20] sm:$0x1]
          %v4753 = vld [vmem:[%s21] sm:$0x1]
          %v4754 = vsel %vm1113, %v4744, 0.0
          %4755 = vadd.xlane.f32.xlu0 %v4754
          %v4756 = vpop.xlane.xlu0 %4755
          %v4757 = vsel %vm1113, %v4745, 0.0
          %4758 = vadd.xlane.f32.xlu0 %v4757
          %v4759 = vpop.xlane.xlu0 %4758
          %v4760 = vmul.f32 %v4756, %v1120
          %v4761 = vmul.f32 %v4759, %v1120
          %v4762 = vsub.f32 %v4744, %v4760
          %v4763 = vsub.f32 %v4745, %v4761
          %v4764 = vmul.f32 %v4762, %v4762
          %v4765 = vmul.f32 %v4763, %v4763
          %v4766 = vsel %vm1113, %v4764, 0.0
          %4767 = vadd.xlane.f32.xlu0 %v4766
          %v4768 = vpop.xlane.xlu0 %4767
          %v4769 = vsel %vm1113, %v4765, 0.0
          %4770 = vadd.xlane.f32.xlu0 %v4769
          %v4771 = vpop.xlane.xlu0 %4770
          %v4772 = vmul.f32 %v4768, 0.032258064
          %v4773 = vmul.f32 %v4771, 0.032258064
          %v4774 = vrsqrt.pop %v4772
          %v4775 = vmul.f32 %v4772, %v4774
          %vm4776 = vcmp.eq.f32.partialorder %v4772, inf
          %v4777 = vsel %vm4776, %v4772, %v4775
          %vm4778 = vcmp.eq.f32.partialorder %v4772, 0.0
          %v4779 = vand.u32 %v4772, 2147483648
          %v4780 = vsel %vm4778, %v4779, %v4777
          %v4781 = vrsqrt.pop %v4773
          %v4782 = vmul.f32 %v4773, %v4781
          %vm4783 = vcmp.eq.f32.partialorder %v4773, inf
          %v4784 = vsel %vm4783, %v4773, %v4782
          %vm4785 = vcmp.eq.f32.partialorder %v4773, 0.0
          %v4786 = vand.u32 %v4773, 2147483648
          %v4787 = vsel %vm4785, %v4786, %v4784
          %v4788 = vadd.f32 %v4780, 1e-06
          %v4789 = vadd.f32 %v4787, 1e-06
          %v4790 = vrcp.pop %v4788
          %v4791 = vrcp.pop %v4789
          %v4792 = vmul.f32 %v4762, %v4790
          %v4793 = vmul.f32 %v4763, %v4791
          %v4795 = vlaneseq
          %v4796 = vshrl.u32 %v4795, 7
          %v4797 = vsub.s32 0, %v4796
          %v4798 = vrot.slane %v4752, %v4797
          %v4800 = vmul.f32 %v4798, %v4792
          %v4801 = vmul.f32 %v4798, %v4793
          %v4803 = vlaneseq
          %v4804 = vshrl.u32 %v4803, 7
          %v4805 = vsub.s32 0, %v4804
          %v4806 = vrot.slane %v4753, %v4805
          %v4808 = vadd.f32 %v4800, %v4806
          %v4809 = vadd.f32 %v4801, %v4806
          %4810 = vst.msk [vmem:[#allocation11] sm:$0xff] %vm1113, %v4808
          %s4811 = scalar_lea.vmem [#allocation11], 8
          %4812 = vst.msk [vmem:[%s4811] sm:$0xff] %vm1113, %v4809
        $region128: #{tpu_custom_call.1} parent=107 // pred_fallthru
          _
        // Predicated region
        $region129: #{tpu_custom_call.1} parent=107 // pred_check
          %p4813 = pneg %p632
        $region130: #{tpu_custom_call.1} parent=107 // pred_check_branch
          %4815 = sbr.rel (%p4813) target = $region132
        $region131: #{tpu_custom_call.1} parent=107 // pred_region
          %s4816 = smul.u32 2, %s44
          %s4818 = ssub.s32 256, 256
          %4819 = vsyncadd [#allocation7], %s4818
          %s4820 = smul.addr %s4816, 128
          %s4821 = scalar_lea.hbm %s22, %s4820
          %s4822 = sshll.u32 [#allocation11], 4
          %s4823 = int_to_ptr.vmem [resolvable:$true] %s4822
          %4828 = dma.vmem_to_hbm [thread:$0]  %s4823, 256, %s4821, [#allocation7], 128, 128, 8
        $region132: #{tpu_custom_call.1} parent=107 // pred_fallthru
          _
        // Predicated region
        $region133: #{tpu_custom_call.1} parent=107 // pred_check
          %p4829 = pneg %p632
        $region134: #{tpu_custom_call.1} parent=107 // pred_check_branch
          %4831 = sbr.rel (%p4829) target = $region136
        $region135: #{tpu_custom_call.1} parent=107 // pred_region
          %4832 = dma.done [#allocation7], 256
        $region136: #{tpu_custom_call.1} parent=107 // pred_fallthru
          _
      $region108: #{tpu_custom_call.1} parent=5 // pred_fallthru
        _
      %p4833 = scmp.le.s32.totalorder 2, %s35
      // Predicated region
      $region137: #{tpu_custom_call.1} parent=5 // pred_check
        %p4834 = pneg %p4833
      $region138: #{tpu_custom_call.1} parent=5 // pred_check_branch
        %4836 = sbr.rel (%p4834) target = $region140
      $region139: #{tpu_custom_call.1} parent=5 // pred_region
        %s4837 = ssub.s32 %s35, 2
      $region140: #{tpu_custom_call.1} parent=5 // pred_fallthru
        _
    $region6: #{tpu_custom_call.1} parent=1 // loop_footer
      %s39 = sadd.s32 1, %s35
    $region7: #{tpu_custom_call.1} parent=1 // loop_footer_branch
      %34 = sbr.rel target = $region3
    $region8: #{tpu_custom_call.1} parent=1 // loop_exit
      _
    %4838 = vsyncpa [#allocation6], 1
    %s4839 = scalar_lea.sflag [#allocation6], 1
    %4840 = vsyncpa %s4839, 1
    %4841 = vsyncpa [#allocation9], 1
    %s4842 = scalar_lea.sflag [#allocation9], 1
    %4843 = vsyncpa %s4842, 1
    %4844 = vsyncpa [#allocation7], 1
    %s4845 = scalar_lea.sflag [#allocation7], 1
    %4846 = vsyncpa %s4845, 1

</llo_original>
